<compile_context>
chip_gen: v5e
topology: v5e:2x2
jax: 0.10.0
libtpu: 0.0.40
codegen_flags: <defaults>
</compile_context>

<pallas_src>
import functools

import jax
import jax.numpy as jnp
from jax import lax
from jax.experimental import pallas as pl
from jax.experimental.pallas import tpu as pltpu


LANE = 128
RHS_RESIDENT_MAX_BYTES = 4 * 1024 * 1024  # single-copy cap for VMEM-resident RHS


def _round_up(x, m):
    return ((x + m - 1) // m) * m


def _device_config():
    """Return (row_tile, vmem_limit_bytes) for the current TPU generation.

    These kernels are HBM-bound streaming the dense normalized adjacency, so the
    main lever is wide A tiles (DMA efficiency, fewer grid steps) within VMEM.
    """
    try:
        kind = jax.devices()[0].device_kind.lower()
    except Exception:
        kind = ""
    if "v5" in kind:
        return 256, 64 * 1024 * 1024
    if "v6" in kind:
        return 512, 96 * 1024 * 1024
    if "v7" in kind:
        return 512, 48 * 1024 * 1024
    return 256, 32 * 1024 * 1024  # conservative default for unknown chips


def _pick_ftile(f_pad, tile):
    for cand in (tile, 512, 256, 128):
        if cand <= f_pad and f_pad % cand == 0:
            return cand
    return f_pad


def _pad2d(m, rows, cols):
    return jnp.zeros((rows, cols), m.dtype).at[: m.shape[0], : m.shape[1]].set(m)


def _pad1d(v, size, fill):
    return jnp.full((size,), fill, jnp.float32).at[: v.shape[0]].set(
        v.astype(jnp.float32))


# ----------------------------- Pallas kernels ------------------------------ #

def _xw_kernel(x_ref, w_ref, o_ref, acc_ref):
    """o = X @ W (bf16 MXU operands, f32 accumulation, bf16 output)."""
    k = pl.program_id(1)

    @pl.when(k == 0)
    def _():
        acc_ref[...] = jnp.zeros_like(acc_ref)

    acc_ref[...] += jnp.dot(x_ref[...], w_ref[...],
                            preferred_element_type=jnp.float32)

    @pl.when(k == pl.num_programs(1) - 1)
    def _():
        o_ref[...] = acc_ref[...].astype(o_ref.dtype)


def _rhs_slice(rhs_ref, k, tile, rhs_resident):
    if rhs_resident:
        row = pl.multiple_of(k * tile, tile)
        return rhs_ref[pl.ds(row, tile), :]
    return rhs_ref[...]


def _gcn_aggregate_kernel(a_ref, xw_ref, b_ref, o_ref, acc_ref, *, tile,
                          rhs_resident):
    """o = relu(A @ XW + b); A streamed in (tile, tile) blocks over the k axis."""
    k = pl.program_id(1)

    @pl.when(k == 0)
    def _():
        acc_ref[...] = jnp.zeros_like(acc_ref)

    rhs = _rhs_slice(xw_ref, k, tile, rhs_resident)
    acc_ref[...] += jnp.dot(a_ref[...], rhs, preferred_element_type=jnp.float32)

    @pl.when(k == pl.num_programs(1) - 1)
    def _():
        o_ref[...] = jnp.maximum(acc_ref[...] + b_ref[...], 0.0).astype(o_ref.dtype)


def _appnp_step_kernel(a_ref, h_ref, h0_ref, o_ref, acc_ref, *, alpha, tile,
                       rhs_resident):
    """One APPNP power-iteration step: o = (1-alpha) * A @ H + alpha * H0."""
    k = pl.program_id(1)

    @pl.when(k == 0)
    def _():
        acc_ref[...] = jnp.zeros_like(acc_ref)

    rhs = _rhs_slice(h_ref, k, tile, rhs_resident)
    acc_ref[...] += jnp.dot(a_ref[...], rhs, preferred_element_type=jnp.float32)

    @pl.when(k == pl.num_programs(1) - 1)
    def _():
        h0_i = h0_ref[...].astype(jnp.float32)
        h_new = (1.0 - alpha) * acc_ref[...] + alpha * h0_i
        o_ref[...] = h_new.astype(o_ref.dtype)


def _appnp_last_step_kernel(a_ref, h_ref, h0_ref, wfc_ref, bfc_ref, o_ref,
                            acc_ref, *, alpha, tile, rhs_resident):
    """Final APPNP step fused with the FC head + log_softmax (computed once)."""
    k = pl.program_id(1)

    @pl.when(k == 0)
    def _():
        acc_ref[...] = jnp.zeros_like(acc_ref)

    rhs = _rhs_slice(h_ref, k, tile, rhs_resident)
    acc_ref[...] += jnp.dot(a_ref[...], rhs, preferred_element_type=jnp.float32)

    @pl.when(k == pl.num_programs(1) - 1)
    def _():
        h0_i = h0_ref[...].astype(jnp.float32)
        h_new = (1.0 - alpha) * acc_ref[...] + alpha * h0_i
        logits = jnp.dot(h_new.astype(jnp.bfloat16), wfc_ref[...],
                         preferred_element_type=jnp.float32) + bfc_ref[...]
        m = jnp.max(logits, axis=-1, keepdims=True)
        z = logits - m
        lse = jnp.log(jnp.sum(jnp.exp(z), axis=-1, keepdims=True))
        o_ref[...] = z - lse


# ------------------------------ pallas_call wrappers ------------------------ #

def matmul_bf16(x, w, *, tile, vmem_limit):
    n_pad, f_in = x.shape
    f_out = w.shape[1]
    f_tile = _pick_ftile(f_in, tile)
    grid = (n_pad // tile, f_in // f_tile)
    return pl.pallas_call(
        _xw_kernel,
        out_shape=jax.ShapeDtypeStruct((n_pad, f_out), jnp.bfloat16),
        grid_spec=pltpu.PrefetchScalarGridSpec(
            num_scalar_prefetch=0,
            grid=grid,
            in_specs=[
                pl.BlockSpec((tile, f_tile), lambda i, k: (i, k)),   # X tile
                pl.BlockSpec((f_tile, f_out), lambda i, k: (k, 0)),  # W tile
            ],
            out_specs=pl.BlockSpec((tile, f_out), lambda i, k: (i, 0)),
            scratch_shapes=[pltpu.VMEM((tile, f_out), jnp.float32)],
        ),
        compiler_params=pltpu.CompilerParams(
            dimension_semantics=("parallel", "arbitrary"),
            vmem_limit_bytes=vmem_limit),
    )(x, w)


def _rhs_spec(n_pad, f, tile):
    """Resident full-array RHS (constant block index) when small; streamed else."""
    rhs_resident = 2 * n_pad * f <= RHS_RESIDENT_MAX_BYTES
    if rhs_resident:
        spec = pl.BlockSpec((n_pad, f), lambda i, k: (0, 0))
    else:
        spec = pl.BlockSpec((tile, f), lambda i, k: (k, 0))
    return rhs_resident, spec


def gcn_aggregate_relu(a, xw, b, *, tile, vmem_limit):
    n_pad = a.shape[0]
    f_out = xw.shape[1]
    n_tiles = n_pad // tile
    rhs_resident, xw_spec = _rhs_spec(n_pad, f_out, tile)
    kernel = functools.partial(_gcn_aggregate_kernel, tile=tile,
                               rhs_resident=rhs_resident)
    return pl.pallas_call(
        kernel,
        out_shape=jax.ShapeDtypeStruct((n_pad, f_out), jnp.bfloat16),
        grid_spec=pltpu.PrefetchScalarGridSpec(
            num_scalar_prefetch=0,
            grid=(n_tiles, n_tiles),
            in_specs=[
                pl.BlockSpec((tile, tile), lambda i, k: (i, k)),  # A_hat tile
                xw_spec,                                          # XW (resident/stream)
                pl.BlockSpec((1, f_out), lambda i, k: (0, 0)),    # bias (f32)
            ],
            out_specs=pl.BlockSpec((tile, f_out), lambda i, k: (i, 0)),
            scratch_shapes=[pltpu.VMEM((tile, f_out), jnp.float32)],
        ),
        compiler_params=pltpu.CompilerParams(
            dimension_semantics=("parallel", "arbitrary"),
            vmem_limit_bytes=vmem_limit),
    )(a, xw, b.reshape(1, f_out))


def gcn_conv_relu(a, x, w, b, *, tile, vmem_limit):
    # GCNConv: A_hat @ (X @ W) + b, then ReLU.  XW precomputed once (no per-row-tile
    # recompute; aggregation RHS has the output width).
    xw = matmul_bf16(x, w, tile=tile, vmem_limit=vmem_limit)
    return gcn_aggregate_relu(a, xw, b, tile=tile, vmem_limit=vmem_limit)


def appnp_step(a, h, h0, *, alpha, tile, vmem_limit):
    n_pad = a.shape[0]
    f = h.shape[1]
    n_tiles = n_pad // tile
    rhs_resident, h_spec = _rhs_spec(n_pad, f, tile)
    kernel = functools.partial(_appnp_step_kernel, alpha=float(alpha), tile=tile,
                               rhs_resident=rhs_resident)
    return pl.pallas_call(
        kernel,
        out_shape=jax.ShapeDtypeStruct((n_pad, f), jnp.bfloat16),
        grid_spec=pltpu.PrefetchScalarGridSpec(
            num_scalar_prefetch=0,
            grid=(n_tiles, n_tiles),
            in_specs=[
                pl.BlockSpec((tile, tile), lambda i, k: (i, k)),  # A_hat tile
                h_spec,                                           # H (resident/stream)
                pl.BlockSpec((tile, f), lambda i, k: (i, 0)),     # H0 row tile
            ],
            out_specs=pl.BlockSpec((tile, f), lambda i, k: (i, 0)),
            scratch_shapes=[pltpu.VMEM((tile, f), jnp.float32)],
        ),
        compiler_params=pltpu.CompilerParams(
            dimension_semantics=("parallel", "arbitrary"),
            vmem_limit_bytes=vmem_limit),
    )(a, h, h0)


def appnp_last_step(a, h, h0, w_fc, b_fc, *, alpha, tile, vmem_limit):
    n_pad = a.shape[0]
    f = h.shape[1]
    c_pad = w_fc.shape[1]
    n_tiles = n_pad // tile
    rhs_resident, h_spec = _rhs_spec(n_pad, f, tile)
    kernel = functools.partial(_appnp_last_step_kernel, alpha=float(alpha),
                               tile=tile, rhs_resident=rhs_resident)
    return pl.pallas_call(
        kernel,
        out_shape=jax.ShapeDtypeStruct((n_pad, c_pad), jnp.float32),
        grid_spec=pltpu.PrefetchScalarGridSpec(
            num_scalar_prefetch=0,
            grid=(n_tiles, n_tiles),
            in_specs=[
                pl.BlockSpec((tile, tile), lambda i, k: (i, k)),  # A_hat tile
                h_spec,                                           # H (resident/stream)
                pl.BlockSpec((tile, f), lambda i, k: (i, 0)),     # H0 row tile
                pl.BlockSpec((f, c_pad), lambda i, k: (0, 0)),    # W_fc (resident)
                pl.BlockSpec((1, c_pad), lambda i, k: (0, 0)),    # b_fc (masked pad)
            ],
            out_specs=pl.BlockSpec((tile, c_pad), lambda i, k: (i, 0)),
            scratch_shapes=[pltpu.VMEM((tile, f), jnp.float32)],
        ),
        compiler_params=pltpu.CompilerParams(
            dimension_semantics=("parallel", "arbitrary"),
            vmem_limit_bytes=vmem_limit),
    )(a, h, h0, w_fc, b_fc.reshape(1, c_pad))


# ------------------------------ Model (glue) -------------------------------- #

def build_norm_adj(edge_index, num_nodes):
    """D^-1/2 (A + remaining self loops) D^-1/2, dense (N, N) float32."""
    src, dst = edge_index[0], edge_index[1]
    a = jnp.zeros((num_nodes, num_nodes), jnp.float32).at[dst, src].add(1.0)
    idx = jnp.arange(num_nodes)
    diag = jnp.diagonal(a)
    a = a.at[idx, idx].set(jnp.where(diag > 0, diag, 1.0))
    deg = jnp.sum(a, axis=1)
    d_inv_sqrt = jnp.where(deg > 0, lax.rsqrt(deg), 0.0)
    return d_inv_sqrt[:, None] * a * d_inv_sqrt[None, :]


def init_params(key, in_features, hidden_dim, num_classes):
    def glorot(k, shape):
        lim = jnp.sqrt(6.0 / (shape[0] + shape[1]))
        return jax.random.uniform(k, shape, jnp.float32, -lim, lim)

    k1, k2, k3 = jax.random.split(key, 3)
    return {
        "conv1_w": glorot(k1, (in_features, hidden_dim)),
        "conv1_b": jnp.zeros((hidden_dim,), jnp.float32),
        "conv2_w": glorot(k2, (hidden_dim, hidden_dim)),
        "conv2_b": jnp.zeros((hidden_dim,), jnp.float32),
        "fc_w": glorot(k3, (hidden_dim, num_classes)),
        "fc_b": jnp.zeros((num_classes,), jnp.float32),
    }


def appnp_2layer_with_gcn(params, x, edge_index, *, K, alpha, num_classes):
    assert K >= 1
    n, in_f = x.shape
    hidden = params["conv1_w"].shape[1]

    tile, vmem_limit = _device_config()
    n_pad = _round_up(n, tile)          # pad to the preferred tile (never fall back)
    f_in_pad = _round_up(in_f, LANE)
    h_pad = _round_up(hidden, LANE)
    c_pad = _round_up(num_classes, LANE)

    a_hat = build_norm_adj(edge_index, n)
    a_p = _pad2d(a_hat, n_pad, n_pad).astype(jnp.bfloat16)
    x_p = _pad2d(x, n_pad, f_in_pad).astype(jnp.bfloat16)

    w1 = _pad2d(params["conv1_w"], f_in_pad, h_pad).astype(jnp.bfloat16)
    b1 = _pad1d(params["conv1_b"], h_pad, 0.0)
    w2 = _pad2d(params["conv2_w"], h_pad, h_pad).astype(jnp.bfloat16)
    b2 = _pad1d(params["conv2_b"], h_pad, 0.0)
    wf = _pad2d(params["fc_w"], h_pad, c_pad).astype(jnp.bfloat16)
    # Padded class lanes get a huge negative bias so exp() underflows to zero in the
    # fused log_softmax (output stays lane-dense; padding sliced below).
    bf_ = _pad1d(params["fc_b"], c_pad, -1e30)

    h = gcn_conv_relu(a_p, x_p, w1, b1, tile=tile, vmem_limit=vmem_limit)  # conv1
    h = gcn_conv_relu(a_p, h, w2, b2, tile=tile, vmem_limit=vmem_limit)    # conv2

    h0 = h
    for _ in range(K - 1):
        h = appnp_step(a_p, h, h0, alpha=alpha, tile=tile, vmem_limit=vmem_limit)
    out_p = appnp_last_step(a_p, h, h0, wf, bf_, alpha=alpha, tile=tile,
                            vmem_limit=vmem_limit)
    return out_p[:n, :num_classes]


def reference_forward(params, x, edge_index, *, K, alpha):
    """Pure-JAX f32 reference on bf16-rounded operands (loose-tolerance check)."""
    n = x.shape[0]
    bf = lambda v: v.astype(jnp.bfloat16).astype(jnp.float32)
    a = bf(build_norm_adj(edge_index, n))
    xw1 = bf(bf(x) @ bf(params["conv1_w"]))
    h = jnp.maximum(a @ xw1 + params["conv1_b"], 0.0)
    xw2 = bf(bf(h) @ bf(params["conv2_w"]))
    h = jnp.maximum(a @ xw2 + params["conv2_b"], 0.0)
    h = bf(h)
    h0 = h
    for _ in range(K):
        h = bf((1.0 - alpha) * (a @ bf(h)) + alpha * h0)
    logits = bf(h) @ bf(params["fc_w"]) + params["fc_b"]
    return jax.nn.log_softmax(logits, axis=1)


# ---------------------------------- main ------------------------------------ #

if __name__ == "__main__":
    N = 16
    IN_FEATURES = 8
    HIDDEN = 16
    NUM_CLASSES = 4
    ALPHA = 0.1
    K = 4
    # dropout: identity at inference (not implemented)

    key = jax.random.PRNGKey(0)
    k_x, k_p = jax.random.split(key)

    x = jax.random.normal(k_x, (N, IN_FEATURES), jnp.float32)

    # Deterministic undirected ring graph.
    src = jnp.arange(N, dtype=jnp.int32)
    dst = (src + 1) % N
    edge_index = jnp.stack([jnp.concatenate([src, dst]),
                            jnp.concatenate([dst, src])], axis=0)

    params = init_params(k_p, IN_FEATURES, HIDDEN, NUM_CLASSES)

    fwd = jax.jit(functools.partial(appnp_2layer_with_gcn, K=K, alpha=ALPHA,
                                    num_classes=NUM_CLASSES))
    out = jax.block_until_ready(fwd(params, x, edge_index))

    assert out.shape == (N, NUM_CLASSES)
    # log_softmax rows must exponentiate-sum to ~1
    row_sums = jnp.exp(out).sum(axis=1)
    assert bool(jnp.all(jnp.abs(row_sums - 1.0) < 1e-3))
    # loose check against a pure-JAX reference (bf16 operand rounding expected)
    ref = reference_forward(params, x, edge_index, K=K, alpha=ALPHA)
    max_err = float(jnp.max(jnp.abs(out - ref)))
    assert max_err < 0.1, f"max abs error vs reference: {max_err}"

    print("KERNEL_OK")
</pallas_src>

<mosaic_0001>
module attributes {stable_mosaic.version = 11 : i64} {
  func.func @_gcn_aggregate_kernel(%arg0: i32, %arg1: i32, %arg2: memref<256x256xbf16, #tpu.memory_space<vmem>>, %arg3: memref<256x128xbf16, #tpu.memory_space<vmem>>, %arg4: memref<1x128xf32, #tpu.memory_space<vmem>>, %arg5: memref<256x128xbf16, #tpu.memory_space<vmem>>, %arg6: memref<256x128xf32, #tpu.memory_space<vmem>>) attributes {dimension_semantics = [#tpu.dimension_semantics<parallel>, #tpu.dimension_semantics<arbitrary>], iteration_bounds = array<i64: 1, 1>, scalar_prefetch = 0 : i64, scratch_operands = 1 : i64, tpu.core_type = #tpu.core_type<tc>, window_params = [{transform_indices = @transform_0, window_bounds = array<i64: 256, 256>}, {pipeline_mode = #tpu.pipeline_mode<synchronous>, transform_indices = @transform_1, window_bounds = array<i64: 256, 128>}, {pipeline_mode = #tpu.pipeline_mode<synchronous>, transform_indices = @transform_2, window_bounds = array<i64: 1, 128>}, {transform_indices = @transform_3, window_bounds = array<i64: 256, 128>}]} {
    %c0_i32 = arith.constant 0 : i32
    %0 = arith.cmpi eq, %arg1, %c0_i32 : i32
    %1 = arith.extui %0 : i1 to i32
    %c0_i32_0 = arith.constant 0 : i32
    %2 = arith.cmpi ne, %1, %c0_i32_0 : i32
    scf.if %2 {
      %cst_9 = arith.constant 0.000000e+00 : f32
      %15 = vector.broadcast %cst_9 : f32 to vector<256x128xf32>
      %c0_10 = arith.constant 0 : index
      %c0_11 = arith.constant 0 : index
      %16 = vector.load %arg6[%c0_10, %c0_11] : memref<256x128xf32, #tpu.memory_space<vmem>>, vector<256x128xf32>
      tpu.vector_store %arg6[%c0_10, %c0_11], %15 {strides = array<i32>} : memref<256x128xf32, #tpu.memory_space<vmem>>, vector<256x128xf32>,
    } else {
    }
    %c256_i32 = arith.constant 256 : i32
    %3 = arith.muli %arg1, %c256_i32 : i32
    %4 = tpu.assume_multiple %3, 256 : i32
    %5 = arith.index_cast %4 : i32 to index
    %c0 = arith.constant 0 : index
    %6 = vector.load %arg3[%5, %c0] : memref<256x128xbf16, #tpu.memory_space<vmem>>, vector<256x128xbf16>
    %c0_1 = arith.constant 0 : index
    %c0_2 = arith.constant 0 : index
    %7 = vector.load %arg6[%c0_1, %c0_2] : memref<256x128xf32, #tpu.memory_space<vmem>>, vector<256x128xf32>
    %c0_3 = arith.constant 0 : index
    %c0_4 = arith.constant 0 : index
    %8 = vector.load %arg2[%c0_3, %c0_4] : memref<256x256xbf16, #tpu.memory_space<vmem>>, vector<256x256xbf16>
    %cst = arith.constant dense<0.000000e+00> : vector<256x128xf32>
    %9 = tpu.matmul %8, %6, %cst {dimension_numbers = #tpu.dot_dimension_numbers<[1], [0], [0], [1], [0, 0, 1, 1], [], []>} : vector<256x256xbf16>, vector<256x128xbf16>, vector<256x128xf32> -> vector<256x128xf32>
    %10 = arith.addf %7, %9 : vector<256x128xf32>
    %c0_5 = arith.constant 0 : index
    %c0_6 = arith.constant 0 : index
    %11 = vector.load %arg6[%c0_5, %c0_6] : memref<256x128xf32, #tpu.memory_space<vmem>>, vector<256x128xf32>
    tpu.vector_store %arg6[%c0_5, %c0_6], %10 {strides = array<i32>} : memref<256x128xf32, #tpu.memory_space<vmem>>, vector<256x128xf32>,
    %c0_i32_7 = arith.constant 0 : i32
    %12 = arith.cmpi eq, %arg1, %c0_i32_7 : i32
    %13 = arith.extui %12 : i1 to i32
    %c0_i32_8 = arith.constant 0 : i32
    %14 = arith.cmpi ne, %13, %c0_i32_8 : i32
    scf.if %14 {
      %c0_9 = arith.constant 0 : index
      %c0_10 = arith.constant 0 : index
      %15 = vector.load %arg6[%c0_9, %c0_10] : memref<256x128xf32, #tpu.memory_space<vmem>>, vector<256x128xf32>
      %c0_11 = arith.constant 0 : index
      %c0_12 = arith.constant 0 : index
      %16 = vector.load %arg4[%c0_11, %c0_12] : memref<1x128xf32, #tpu.memory_space<vmem>>, vector<1x128xf32>
      %17 = vector.broadcast %16 : vector<1x128xf32> to vector<256x128xf32>
      %18 = arith.addf %15, %17 : vector<256x128xf32>
      %cst_13 = arith.constant 0.000000e+00 : f32
      %19 = vector.broadcast %cst_13 : f32 to vector<256x128xf32>
      %20 = arith.maximumf %18, %19 : vector<256x128xf32>
      %21 = arith.truncf %20 : vector<256x128xf32> to vector<256x128xbf16>
      %c0_14 = arith.constant 0 : index
      %c0_15 = arith.constant 0 : index
      %22 = vector.load %arg5[%c0_14, %c0_15] : memref<256x128xbf16, #tpu.memory_space<vmem>>, vector<256x128xbf16>
      tpu.vector_store %arg5[%c0_14, %c0_15], %21 {strides = array<i32>} : memref<256x128xbf16, #tpu.memory_space<vmem>>, vector<256x128xbf16>,
    } else {
    }
    return
  }
  func.func @transform_0(%arg0: i32, %arg1: i32) -> (i32, i32) {
    %c0_i32 = arith.constant 0 : i32
    return %arg0, %arg1 : i32, i32
  }
  func.func @transform_1(%arg0: i32, %arg1: i32) -> (i32, i32) {
    %c0_i32 = arith.constant 0 : i32
    %c0_i32_0 = arith.constant 0 : i32
    %c0_i32_1 = arith.constant 0 : i32
    return %c0_i32, %c0_i32_0 : i32, i32
  }
  func.func @transform_2(%arg0: i32, %arg1: i32) -> (i32, i32) {
    %c0_i32 = arith.constant 0 : i32
    %c0_i32_0 = arith.constant 0 : i32
    %c0_i32_1 = arith.constant 0 : i32
    return %c0_i32, %c0_i32_0 : i32, i32
  }
  func.func @transform_3(%arg0: i32, %arg1: i32) -> (i32, i32) {
    %c0_i32 = arith.constant 0 : i32
    %c0_i32_0 = arith.constant 0 : i32
    return %arg0, %c0_i32 : i32, i32
  }
}

module attributes {stable_mosaic.version = 11 : i64} {
  func.func @_xw_kernel(%arg0: i32, %arg1: i32, %arg2: memref<256x128xbf16, #tpu.memory_space<vmem>>, %arg3: memref<128x128xbf16, #tpu.memory_space<vmem>>, %arg4: memref<256x128xbf16, #tpu.memory_space<vmem>>, %arg5: memref<256x128xf32, #tpu.memory_space<vmem>>) attributes {dimension_semantics = [#tpu.dimension_semantics<parallel>, #tpu.dimension_semantics<arbitrary>], iteration_bounds = array<i64: 1, 1>, scalar_prefetch = 0 : i64, scratch_operands = 1 : i64, tpu.core_type = #tpu.core_type<tc>, window_params = [{transform_indices = @transform_0, window_bounds = array<i64: 256, 128>}, {transform_indices = @transform_1, window_bounds = array<i64: 128, 128>}, {transform_indices = @transform_2, window_bounds = array<i64: 256, 128>}]} {
    %c0_i32 = arith.constant 0 : i32
    %0 = arith.cmpi eq, %arg1, %c0_i32 : i32
    %1 = arith.extui %0 : i1 to i32
    %c0_i32_0 = arith.constant 0 : i32
    %2 = arith.cmpi ne, %1, %c0_i32_0 : i32
    scf.if %2 {
      %cst_10 = arith.constant 0.000000e+00 : f32
      %12 = vector.broadcast %cst_10 : f32 to vector<256x128xf32>
      %c0_11 = arith.constant 0 : index
      %c0_12 = arith.constant 0 : index
      %13 = vector.load %arg5[%c0_11, %c0_12] : memref<256x128xf32, #tpu.memory_space<vmem>>, vector<256x128xf32>
      tpu.vector_store %arg5[%c0_11, %c0_12], %12 {strides = array<i32>} : memref<256x128xf32, #tpu.memory_space<vmem>>, vector<256x128xf32>,
    } else {
    }
    %c0 = arith.constant 0 : index
    %c0_1 = arith.constant 0 : index
    %3 = vector.load %arg5[%c0, %c0_1] : memref<256x128xf32, #tpu.memory_space<vmem>>, vector<256x128xf32>
    %c0_2 = arith.constant 0 : index
    %c0_3 = arith.constant 0 : index
    %4 = vector.load %arg2[%c0_2, %c0_3] : memref<256x128xbf16, #tpu.memory_space<vmem>>, vector<256x128xbf16>
    %c0_4 = arith.constant 0 : index
    %c0_5 = arith.constant 0 : index
    %5 = vector.load %arg3[%c0_4, %c0_5] : memref<128x128xbf16, #tpu.memory_space<vmem>>, vector<128x128xbf16>
    %cst = arith.constant dense<0.000000e+00> : vector<256x128xf32>
    %6 = tpu.matmul %4, %5, %cst {dimension_numbers = #tpu.dot_dimension_numbers<[1], [0], [0], [1], [0, 0, 1, 1], [], []>} : vector<256x128xbf16>, vector<128x128xbf16>, vector<256x128xf32> -> vector<256x128xf32>
    %7 = arith.addf %3, %6 : vector<256x128xf32>
    %c0_6 = arith.constant 0 : index
    %c0_7 = arith.constant 0 : index
    %8 = vector.load %arg5[%c0_6, %c0_7] : memref<256x128xf32, #tpu.memory_space<vmem>>, vector<256x128xf32>
    tpu.vector_store %arg5[%c0_6, %c0_7], %7 {strides = array<i32>} : memref<256x128xf32, #tpu.memory_space<vmem>>, vector<256x128xf32>,
    %c0_i32_8 = arith.constant 0 : i32
    %9 = arith.cmpi eq, %arg1, %c0_i32_8 : i32
    %10 = arith.extui %9 : i1 to i32
    %c0_i32_9 = arith.constant 0 : i32
    %11 = arith.cmpi ne, %10, %c0_i32_9 : i32
    scf.if %11 {
      %c0_10 = arith.constant 0 : index
      %c0_11 = arith.constant 0 : index
      %12 = vector.load %arg5[%c0_10, %c0_11] : memref<256x128xf32, #tpu.memory_space<vmem>>, vector<256x128xf32>
      %13 = arith.truncf %12 : vector<256x128xf32> to vector<256x128xbf16>
      %c0_12 = arith.constant 0 : index
      %c0_13 = arith.constant 0 : index
      %14 = vector.load %arg4[%c0_12, %c0_13] : memref<256x128xbf16, #tpu.memory_space<vmem>>, vector<256x128xbf16>
      tpu.vector_store %arg4[%c0_12, %c0_13], %13 {strides = array<i32>} : memref<256x128xbf16, #tpu.memory_space<vmem>>, vector<256x128xbf16>,
    } else {
    }
    return
  }
  func.func @transform_0(%arg0: i32, %arg1: i32) -> (i32, i32) {
    %c0_i32 = arith.constant 0 : i32
    return %arg0, %arg1 : i32, i32
  }
  func.func @transform_1(%arg0: i32, %arg1: i32) -> (i32, i32) {
    %c0_i32 = arith.constant 0 : i32
    %c0_i32_0 = arith.constant 0 : i32
    return %arg1, %c0_i32 : i32, i32
  }
  func.func @transform_2(%arg0: i32, %arg1: i32) -> (i32, i32) {
    %c0_i32 = arith.constant 0 : i32
    %c0_i32_0 = arith.constant 0 : i32
    return %arg0, %c0_i32 : i32, i32
  }
}

module attributes {stable_mosaic.version = 11 : i64} {
  func.func @_appnp_step_kernel(%arg0: i32, %arg1: i32, %arg2: memref<256x256xbf16, #tpu.memory_space<vmem>>, %arg3: memref<256x128xbf16, #tpu.memory_space<vmem>>, %arg4: memref<256x128xbf16, #tpu.memory_space<vmem>>, %arg5: memref<256x128xbf16, #tpu.memory_space<vmem>>, %arg6: memref<256x128xf32, #tpu.memory_space<vmem>>) attributes {dimension_semantics = [#tpu.dimension_semantics<parallel>, #tpu.dimension_semantics<arbitrary>], iteration_bounds = array<i64: 1, 1>, scalar_prefetch = 0 : i64, scratch_operands = 1 : i64, tpu.core_type = #tpu.core_type<tc>, window_params = [{transform_indices = @transform_0, window_bounds = array<i64: 256, 256>}, {pipeline_mode = #tpu.pipeline_mode<synchronous>, transform_indices = @transform_1, window_bounds = array<i64: 256, 128>}, {transform_indices = @transform_2, window_bounds = array<i64: 256, 128>}, {transform_indices = @transform_3, window_bounds = array<i64: 256, 128>}]} {
    %c0_i32 = arith.constant 0 : i32
    %0 = arith.cmpi eq, %arg1, %c0_i32 : i32
    %1 = arith.extui %0 : i1 to i32
    %c0_i32_0 = arith.constant 0 : i32
    %2 = arith.cmpi ne, %1, %c0_i32_0 : i32
    scf.if %2 {
      %cst_9 = arith.constant 0.000000e+00 : f32
      %15 = vector.broadcast %cst_9 : f32 to vector<256x128xf32>
      %c0_10 = arith.constant 0 : index
      %c0_11 = arith.constant 0 : index
      %16 = vector.load %arg6[%c0_10, %c0_11] : memref<256x128xf32, #tpu.memory_space<vmem>>, vector<256x128xf32>
      tpu.vector_store %arg6[%c0_10, %c0_11], %15 {strides = array<i32>} : memref<256x128xf32, #tpu.memory_space<vmem>>, vector<256x128xf32>,
    } else {
    }
    %c256_i32 = arith.constant 256 : i32
    %3 = arith.muli %arg1, %c256_i32 : i32
    %4 = tpu.assume_multiple %3, 256 : i32
    %5 = arith.index_cast %4 : i32 to index
    %c0 = arith.constant 0 : index
    %6 = vector.load %arg3[%5, %c0] : memref<256x128xbf16, #tpu.memory_space<vmem>>, vector<256x128xbf16>
    %c0_1 = arith.constant 0 : index
    %c0_2 = arith.constant 0 : index
    %7 = vector.load %arg6[%c0_1, %c0_2] : memref<256x128xf32, #tpu.memory_space<vmem>>, vector<256x128xf32>
    %c0_3 = arith.constant 0 : index
    %c0_4 = arith.constant 0 : index
    %8 = vector.load %arg2[%c0_3, %c0_4] : memref<256x256xbf16, #tpu.memory_space<vmem>>, vector<256x256xbf16>
    %cst = arith.constant dense<0.000000e+00> : vector<256x128xf32>
    %9 = tpu.matmul %8, %6, %cst {dimension_numbers = #tpu.dot_dimension_numbers<[1], [0], [0], [1], [0, 0, 1, 1], [], []>} : vector<256x256xbf16>, vector<256x128xbf16>, vector<256x128xf32> -> vector<256x128xf32>
    %10 = arith.addf %7, %9 : vector<256x128xf32>
    %c0_5 = arith.constant 0 : index
    %c0_6 = arith.constant 0 : index
    %11 = vector.load %arg6[%c0_5, %c0_6] : memref<256x128xf32, #tpu.memory_space<vmem>>, vector<256x128xf32>
    tpu.vector_store %arg6[%c0_5, %c0_6], %10 {strides = array<i32>} : memref<256x128xf32, #tpu.memory_space<vmem>>, vector<256x128xf32>,
    %c0_i32_7 = arith.constant 0 : i32
    %12 = arith.cmpi eq, %arg1, %c0_i32_7 : i32
    %13 = arith.extui %12 : i1 to i32
    %c0_i32_8 = arith.constant 0 : i32
    %14 = arith.cmpi ne, %13, %c0_i32_8 : i32
    scf.if %14 {
      %c0_9 = arith.constant 0 : index
      %c0_10 = arith.constant 0 : index
      %15 = vector.load %arg4[%c0_9, %c0_10] : memref<256x128xbf16, #tpu.memory_space<vmem>>, vector<256x128xbf16>
      %16 = arith.extf %15 : vector<256x128xbf16> to vector<256x128xf32>
      %c0_11 = arith.constant 0 : index
      %c0_12 = arith.constant 0 : index
      %17 = vector.load %arg6[%c0_11, %c0_12] : memref<256x128xf32, #tpu.memory_space<vmem>>, vector<256x128xf32>
      %cst_13 = arith.constant 0.899999976 : f32
      %18 = vector.broadcast %cst_13 : f32 to vector<256x128xf32>
      %19 = arith.mulf %18, %17 : vector<256x128xf32>
      %cst_14 = arith.constant 1.000000e-01 : f32
      %20 = vector.broadcast %cst_14 : f32 to vector<256x128xf32>
      %21 = arith.mulf %20, %16 : vector<256x128xf32>
      %22 = arith.addf %19, %21 : vector<256x128xf32>
      %23 = arith.truncf %22 : vector<256x128xf32> to vector<256x128xbf16>
      %c0_15 = arith.constant 0 : index
      %c0_16 = arith.constant 0 : index
      %24 = vector.load %arg5[%c0_15, %c0_16] : memref<256x128xbf16, #tpu.memory_space<vmem>>, vector<256x128xbf16>
      tpu.vector_store %arg5[%c0_15, %c0_16], %23 {strides = array<i32>} : memref<256x128xbf16, #tpu.memory_space<vmem>>, vector<256x128xbf16>,
    } else {
    }
    return
  }
  func.func @transform_0(%arg0: i32, %arg1: i32) -> (i32, i32) {
    %c0_i32 = arith.constant 0 : i32
    return %arg0, %arg1 : i32, i32
  }
  func.func @transform_1(%arg0: i32, %arg1: i32) -> (i32, i32) {
    %c0_i32 = arith.constant 0 : i32
    %c0_i32_0 = arith.constant 0 : i32
    %c0_i32_1 = arith.constant 0 : i32
    return %c0_i32, %c0_i32_0 : i32, i32
  }
  func.func @transform_2(%arg0: i32, %arg1: i32) -> (i32, i32) {
    %c0_i32 = arith.constant 0 : i32
    %c0_i32_0 = arith.constant 0 : i32
    return %arg0, %c0_i32 : i32, i32
  }
  func.func @transform_3(%arg0: i32, %arg1: i32) -> (i32, i32) {
    %c0_i32 = arith.constant 0 : i32
    %c0_i32_0 = arith.constant 0 : i32
    return %arg0, %c0_i32 : i32, i32
  }
}

module attributes {stable_mosaic.version = 11 : i64} {
  func.func @_appnp_last_step_kernel(%arg0: i32, %arg1: i32, %arg2: memref<256x256xbf16, #tpu.memory_space<vmem>>, %arg3: memref<256x128xbf16, #tpu.memory_space<vmem>>, %arg4: memref<256x128xbf16, #tpu.memory_space<vmem>>, %arg5: memref<128x128xbf16, #tpu.memory_space<vmem>>, %arg6: memref<1x128xf32, #tpu.memory_space<vmem>>, %arg7: memref<256x128xf32, #tpu.memory_space<vmem>>, %arg8: memref<256x128xf32, #tpu.memory_space<vmem>>) attributes {dimension_semantics = [#tpu.dimension_semantics<parallel>, #tpu.dimension_semantics<arbitrary>], iteration_bounds = array<i64: 1, 1>, scalar_prefetch = 0 : i64, scratch_operands = 1 : i64, tpu.core_type = #tpu.core_type<tc>, window_params = [{transform_indices = @transform_0, window_bounds = array<i64: 256, 256>}, {pipeline_mode = #tpu.pipeline_mode<synchronous>, transform_indices = @transform_1, window_bounds = array<i64: 256, 128>}, {transform_indices = @transform_2, window_bounds = array<i64: 256, 128>}, {pipeline_mode = #tpu.pipeline_mode<synchronous>, transform_indices = @transform_3, window_bounds = array<i64: 128, 128>}, {pipeline_mode = #tpu.pipeline_mode<synchronous>, transform_indices = @transform_4, window_bounds = array<i64: 1, 128>}, {transform_indices = @transform_5, window_bounds = array<i64: 256, 128>}]} {
    %c0_i32 = arith.constant 0 : i32
    %0 = arith.cmpi eq, %arg1, %c0_i32 : i32
    %1 = arith.extui %0 : i1 to i32
    %c0_i32_0 = arith.constant 0 : i32
    %2 = arith.cmpi ne, %1, %c0_i32_0 : i32
    scf.if %2 {
      %cst_9 = arith.constant 0.000000e+00 : f32
      %15 = vector.broadcast %cst_9 : f32 to vector<256x128xf32>
      %c0_10 = arith.constant 0 : index
      %c0_11 = arith.constant 0 : index
      %16 = vector.load %arg8[%c0_10, %c0_11] : memref<256x128xf32, #tpu.memory_space<vmem>>, vector<256x128xf32>
      tpu.vector_store %arg8[%c0_10, %c0_11], %15 {strides = array<i32>} : memref<256x128xf32, #tpu.memory_space<vmem>>, vector<256x128xf32>,
    } else {
    }
    %c256_i32 = arith.constant 256 : i32
    %3 = arith.muli %arg1, %c256_i32 : i32
    %4 = tpu.assume_multiple %3, 256 : i32
    %5 = arith.index_cast %4 : i32 to index
    %c0 = arith.constant 0 : index
    %6 = vector.load %arg3[%5, %c0] : memref<256x128xbf16, #tpu.memory_space<vmem>>, vector<256x128xbf16>
    %c0_1 = arith.constant 0 : index
    %c0_2 = arith.constant 0 : index
    %7 = vector.load %arg8[%c0_1, %c0_2] : memref<256x128xf32, #tpu.memory_space<vmem>>, vector<256x128xf32>
    %c0_3 = arith.constant 0 : index
    %c0_4 = arith.constant 0 : index
    %8 = vector.load %arg2[%c0_3, %c0_4] : memref<256x256xbf16, #tpu.memory_space<vmem>>, vector<256x256xbf16>
    %cst = arith.constant dense<0.000000e+00> : vector<256x128xf32>
    %9 = tpu.matmul %8, %6, %cst {dimension_numbers = #tpu.dot_dimension_numbers<[1], [0], [0], [1], [0, 0, 1, 1], [], []>} : vector<256x256xbf16>, vector<256x128xbf16>, vector<256x128xf32> -> vector<256x128xf32>
    %10 = arith.addf %7, %9 : vector<256x128xf32>
    %c0_5 = arith.constant 0 : index
    %c0_6 = arith.constant 0 : index
    %11 = vector.load %arg8[%c0_5, %c0_6] : memref<256x128xf32, #tpu.memory_space<vmem>>, vector<256x128xf32>
    tpu.vector_store %arg8[%c0_5, %c0_6], %10 {strides = array<i32>} : memref<256x128xf32, #tpu.memory_space<vmem>>, vector<256x128xf32>,
    %c0_i32_7 = arith.constant 0 : i32
    %12 = arith.cmpi eq, %arg1, %c0_i32_7 : i32
    %13 = arith.extui %12 : i1 to i32
    %c0_i32_8 = arith.constant 0 : i32
    %14 = arith.cmpi ne, %13, %c0_i32_8 : i32
    scf.if %14 {
      %c0_9 = arith.constant 0 : index
      %c0_10 = arith.constant 0 : index
      %15 = vector.load %arg4[%c0_9, %c0_10] : memref<256x128xbf16, #tpu.memory_space<vmem>>, vector<256x128xbf16>
      %16 = arith.extf %15 : vector<256x128xbf16> to vector<256x128xf32>
      %c0_11 = arith.constant 0 : index
      %c0_12 = arith.constant 0 : index
      %17 = vector.load %arg8[%c0_11, %c0_12] : memref<256x128xf32, #tpu.memory_space<vmem>>, vector<256x128xf32>
      %cst_13 = arith.constant 0.899999976 : f32
      %18 = vector.broadcast %cst_13 : f32 to vector<256x128xf32>
      %19 = arith.mulf %18, %17 : vector<256x128xf32>
      %cst_14 = arith.constant 1.000000e-01 : f32
      %20 = vector.broadcast %cst_14 : f32 to vector<256x128xf32>
      %21 = arith.mulf %20, %16 : vector<256x128xf32>
      %22 = arith.addf %19, %21 : vector<256x128xf32>
      %23 = arith.truncf %22 : vector<256x128xf32> to vector<256x128xbf16>
      %c0_15 = arith.constant 0 : index
      %c0_16 = arith.constant 0 : index
      %24 = vector.load %arg5[%c0_15, %c0_16] : memref<128x128xbf16, #tpu.memory_space<vmem>>, vector<128x128xbf16>
      %cst_17 = arith.constant dense<0.000000e+00> : vector<256x128xf32>
      %25 = tpu.matmul %23, %24, %cst_17 {dimension_numbers = #tpu.dot_dimension_numbers<[1], [0], [0], [1], [0, 0, 1, 1], [], []>} : vector<256x128xbf16>, vector<128x128xbf16>, vector<256x128xf32> -> vector<256x128xf32>
      %c0_18 = arith.constant 0 : index
      %c0_19 = arith.constant 0 : index
      %26 = vector.load %arg6[%c0_18, %c0_19] : memref<1x128xf32, #tpu.memory_space<vmem>>, vector<1x128xf32>
      %27 = vector.broadcast %26 : vector<1x128xf32> to vector<256x128xf32>
      %28 = arith.addf %25, %27 : vector<256x128xf32>
      %cst_20 = arith.constant dense<0xFF800000> : vector<256xf32>
      %29 = vector.multi_reduction <maximumf>, %28, %cst_20 [1] : vector<256x128xf32> to vector<256xf32>
      %30 = vector.shape_cast %29 : vector<256xf32> to vector<256x1xf32>
      %31 = vector.broadcast %30 : vector<256x1xf32> to vector<256x128xf32>
      %32 = arith.subf %28, %31 : vector<256x128xf32>
      %33 = math.exp %32 : vector<256x128xf32>
      %cst_21 = arith.constant dense<0.000000e+00> : vector<256xf32>
      %34 = vector.multi_reduction <add>, %33, %cst_21 [1] : vector<256x128xf32> to vector<256xf32>
      %35 = vector.shape_cast %34 : vector<256xf32> to vector<256x1xf32>
      %36 = math.log %35 : vector<256x1xf32>
      %37 = vector.broadcast %36 : vector<256x1xf32> to vector<256x128xf32>
      %38 = arith.subf %32, %37 : vector<256x128xf32>
      %c0_22 = arith.constant 0 : index
      %c0_23 = arith.constant 0 : index
      %39 = vector.load %arg7[%c0_22, %c0_23] : memref<256x128xf32, #tpu.memory_space<vmem>>, vector<256x128xf32>
      tpu.vector_store %arg7[%c0_22, %c0_23], %38 {strides = array<i32>} : memref<256x128xf32, #tpu.memory_space<vmem>>, vector<256x128xf32>,
    } else {
    }
    return
  }
  func.func @transform_0(%arg0: i32, %arg1: i32) -> (i32, i32) {
    %c0_i32 = arith.constant 0 : i32
    return %arg0, %arg1 : i32, i32
  }
  func.func @transform_1(%arg0: i32, %arg1: i32) -> (i32, i32) {
    %c0_i32 = arith.constant 0 : i32
    %c0_i32_0 = arith.constant 0 : i32
    %c0_i32_1 = arith.constant 0 : i32
    return %c0_i32, %c0_i32_0 : i32, i32
  }
  func.func @transform_2(%arg0: i32, %arg1: i32) -> (i32, i32) {
    %c0_i32 = arith.constant 0 : i32
    %c0_i32_0 = arith.constant 0 : i32
    return %arg0, %c0_i32 : i32, i32
  }
  func.func @transform_3(%arg0: i32, %arg1: i32) -> (i32, i32) {
    %c0_i32 = arith.constant 0 : i32
    %c0_i32_0 = arith.constant 0 : i32
    %c0_i32_1 = arith.constant 0 : i32
    return %c0_i32, %c0_i32_0 : i32, i32
  }
  func.func @transform_4(%arg0: i32, %arg1: i32) -> (i32, i32) {
    %c0_i32 = arith.constant 0 : i32
    %c0_i32_0 = arith.constant 0 : i32
    %c0_i32_1 = arith.constant 0 : i32
    return %c0_i32, %c0_i32_0 : i32, i32
  }
  func.func @transform_5(%arg0: i32, %arg1: i32) -> (i32, i32) {
    %c0_i32 = arith.constant 0 : i32
    %c0_i32_0 = arith.constant 0 : i32
    return %arg0, %c0_i32 : i32, i32
  }
}

</mosaic_0001>

<llo_original>
// kernel: appnp_2layer_with_gcn.9
$region0: #{appnp_2layer_with_gcn.9}
  #allocation0 [shape = 'u32[]', space=smem, size = 0x4, offset = 0x4, fixed_abs, tag = 'smem constant byte address 0x4 - core index']
  #allocation1 [shape = 'u32[72,128]{1,0:T(1,128)}', space=vmem, size = 0x9000, scoped, tag = 'internal scratch']
  #allocation2 [shape = 'f32[256,128]{1,0:T(8,128)}', space=vmem, size = 0x20000, scoped, tag = 'scratch operand']
  %s0 = inlined_call_operand.vmem [shape: bf16[256,256], index: 0, kind: input, shape index: {}]
  %s1 = inlined_call_operand.vmem [shape: bf16[256,128], index: 1, kind: input, shape index: {}]
  %s2 = inlined_call_operand.vmem [shape: f32[1,128], index: 2, kind: input, shape index: {}]
  %s3 = inlined_call_operand.vmem [shape: bf16[256,128], index: 3, kind: output, shape index: {}]
  %s4 = sld [smem:[#allocation0]]
  $region30: #{appnp_2layer_with_gcn.9} parent=0
    _
  %s6 = ssub.s32 1, %s4
  %s7 = scalar_select 0, %s6, %s4
  // Predicated region
  $region2: #{appnp_2layer_with_gcn.9} parent=0 // pred_check
    _
  $region3: #{appnp_2layer_with_gcn.9} parent=0 // pred_check_branch
    %9 = sbr.rel (0) target = $region5
  $region4: #{appnp_2layer_with_gcn.9} parent=0 // pred_region
    _
  $region5: #{appnp_2layer_with_gcn.9} parent=0 // pred_fallthru
    _
  // Predicated region
  $region6: #{appnp_2layer_with_gcn.9} parent=0 // pred_check
    _
  $region7: #{appnp_2layer_with_gcn.9} parent=0 // pred_check_branch
    %11 = sbr.rel (0) target = $region9
  $region8: #{appnp_2layer_with_gcn.9} parent=0 // pred_region
    _
  $region9: #{appnp_2layer_with_gcn.9} parent=0 // pred_fallthru
    _
  // Predicated region
  $region10: #{appnp_2layer_with_gcn.9} parent=0 // pred_check
    _
  $region11: #{appnp_2layer_with_gcn.9} parent=0 // pred_check_branch
    %13 = sbr.rel (0) target = $region13
  $region12: #{appnp_2layer_with_gcn.9} parent=0 // pred_region
    _
  $region13: #{appnp_2layer_with_gcn.9} parent=0 // pred_fallthru
    _
  %p14 = scmp.eq.s32.totalorder 0, 0
  // Predicated region
  $region14: #{appnp_2layer_with_gcn.9} parent=0 // pred_check
    %p15 = pneg %p14
  $region15: #{appnp_2layer_with_gcn.9} parent=0 // pred_check_branch
    %17 = sbr.rel (%p15) target = $region17
  $region16: #{appnp_2layer_with_gcn.9} parent=0 // pred_region
    %18 = vst [vmem:[#allocation2] sm:$0xff] 0.0
    %19 = vst [vmem:[#allocation2 + $0x8] sm:$0xff] 0.0
    %20 = vst [vmem:[#allocation2 + $0x10] sm:$0xff] 0.0
    %21 = vst [vmem:[#allocation2 + $0x18] sm:$0xff] 0.0
    %22 = vst [vmem:[#allocation2 + $0x20] sm:$0xff] 0.0
    %23 = vst [vmem:[#allocation2 + $0x28] sm:$0xff] 0.0
    %24 = vst [vmem:[#allocation2 + $0x30] sm:$0xff] 0.0
    %25 = vst [vmem:[#allocation2 + $0x38] sm:$0xff] 0.0
    %26 = vst [vmem:[#allocation2 + $0x40] sm:$0xff] 0.0
    %27 = vst [vmem:[#allocation2 + $0x48] sm:$0xff] 0.0
    %28 = vst [vmem:[#allocation2 + $0x50] sm:$0xff] 0.0
    %29 = vst [vmem:[#allocation2 + $0x58] sm:$0xff] 0.0
    %30 = vst [vmem:[#allocation2 + $0x60] sm:$0xff] 0.0
    %31 = vst [vmem:[#allocation2 + $0x68] sm:$0xff] 0.0
    %32 = vst [vmem:[#allocation2 + $0x70] sm:$0xff] 0.0
    %33 = vst [vmem:[#allocation2 + $0x78] sm:$0xff] 0.0
    %34 = vst [vmem:[#allocation2 + $0x80] sm:$0xff] 0.0
    %35 = vst [vmem:[#allocation2 + $0x88] sm:$0xff] 0.0
    %36 = vst [vmem:[#allocation2 + $0x90] sm:$0xff] 0.0
    %37 = vst [vmem:[#allocation2 + $0x98] sm:$0xff] 0.0
    %38 = vst [vmem:[#allocation2 + $0xa0] sm:$0xff] 0.0
    %39 = vst [vmem:[#allocation2 + $0xa8] sm:$0xff] 0.0
    %40 = vst [vmem:[#allocation2 + $0xb0] sm:$0xff] 0.0
    %41 = vst [vmem:[#allocation2 + $0xb8] sm:$0xff] 0.0
    %42 = vst [vmem:[#allocation2 + $0xc0] sm:$0xff] 0.0
    %43 = vst [vmem:[#allocation2 + $0xc8] sm:$0xff] 0.0
    %44 = vst [vmem:[#allocation2 + $0xd0] sm:$0xff] 0.0
    %45 = vst [vmem:[#allocation2 + $0xd8] sm:$0xff] 0.0
    %46 = vst [vmem:[#allocation2 + $0xe0] sm:$0xff] 0.0
    %47 = vst [vmem:[#allocation2 + $0xe8] sm:$0xff] 0.0
    %48 = vst [vmem:[#allocation2 + $0xf0] sm:$0xff] 0.0
    %49 = vst [vmem:[#allocation2 + $0xf8] sm:$0xff] 0.0
  $region17: #{appnp_2layer_with_gcn.9} parent=0 // pred_fallthru
    _
  %s50 = smul.u32 0, 256
  %s51 = sshra.s32 %s50, 3
  %s52 = sand.u32 %s50, 7
  %s53 = smul.addr %s51, 4
  %s54 = scalar_lea.vmem %s1, %s53
  %v55 = vld [vmem:[%s54] sm:$0xf]
  %v56 = vld [vmem:[%s54 + $0x4] sm:$0xf]
  %v57 = vld [vmem:[%s54 + $0x8] sm:$0xf]
  %v58 = vld [vmem:[%s54 + $0xc] sm:$0xf]
  %v59 = vld [vmem:[%s54 + $0x10] sm:$0xf]
  %v60 = vld [vmem:[%s54 + $0x14] sm:$0xf]
  %v61 = vld [vmem:[%s54 + $0x18] sm:$0xf]
  %v62 = vld [vmem:[%s54 + $0x1c] sm:$0xf]
  %v63 = vld [vmem:[%s54 + $0x20] sm:$0xf]
  %v64 = vld [vmem:[%s54 + $0x24] sm:$0xf]
  %v65 = vld [vmem:[%s54 + $0x28] sm:$0xf]
  %v66 = vld [vmem:[%s54 + $0x2c] sm:$0xf]
  %v67 = vld [vmem:[%s54 + $0x30] sm:$0xf]
  %v68 = vld [vmem:[%s54 + $0x34] sm:$0xf]
  %v69 = vld [vmem:[%s54 + $0x38] sm:$0xf]
  %v70 = vld [vmem:[%s54 + $0x3c] sm:$0xf]
  %v71 = vld [vmem:[%s54 + $0x40] sm:$0xf]
  %v72 = vld [vmem:[%s54 + $0x44] sm:$0xf]
  %v73 = vld [vmem:[%s54 + $0x48] sm:$0xf]
  %v74 = vld [vmem:[%s54 + $0x4c] sm:$0xf]
  %v75 = vld [vmem:[%s54 + $0x50] sm:$0xf]
  %v76 = vld [vmem:[%s54 + $0x54] sm:$0xf]
  %v77 = vld [vmem:[%s54 + $0x58] sm:$0xf]
  %v78 = vld [vmem:[%s54 + $0x5c] sm:$0xf]
  %v79 = vld [vmem:[%s54 + $0x60] sm:$0xf]
  %v80 = vld [vmem:[%s54 + $0x64] sm:$0xf]
  %v81 = vld [vmem:[%s54 + $0x68] sm:$0xf]
  %v82 = vld [vmem:[%s54 + $0x6c] sm:$0xf]
  %v83 = vld [vmem:[%s54 + $0x70] sm:$0xf]
  %v84 = vld [vmem:[%s54 + $0x74] sm:$0xf]
  %v85 = vld [vmem:[%s54 + $0x78] sm:$0xf]
  %v86 = vld [vmem:[%s54 + $0x7c] sm:$0xf]
  %v87 = vld [vmem:[#allocation2] sm:$0xff]
  %v88 = vld [vmem:[#allocation2 + $0x8] sm:$0xff]
  %v89 = vld [vmem:[#allocation2 + $0x10] sm:$0xff]
  %v90 = vld [vmem:[#allocation2 + $0x18] sm:$0xff]
  %v91 = vld [vmem:[#allocation2 + $0x20] sm:$0xff]
  %v92 = vld [vmem:[#allocation2 + $0x28] sm:$0xff]
  %v93 = vld [vmem:[#allocation2 + $0x30] sm:$0xff]
  %v94 = vld [vmem:[#allocation2 + $0x38] sm:$0xff]
  %v95 = vld [vmem:[#allocation2 + $0x40] sm:$0xff]
  %v96 = vld [vmem:[#allocation2 + $0x48] sm:$0xff]
  %v97 = vld [vmem:[#allocation2 + $0x50] sm:$0xff]
  %v98 = vld [vmem:[#allocation2 + $0x58] sm:$0xff]
  %v99 = vld [vmem:[#allocation2 + $0x60] sm:$0xff]
  %v100 = vld [vmem:[#allocation2 + $0x68] sm:$0xff]
  %v101 = vld [vmem:[#allocation2 + $0x70] sm:$0xff]
  %v102 = vld [vmem:[#allocation2 + $0x78] sm:$0xff]
  %v103 = vld [vmem:[#allocation2 + $0x80] sm:$0xff]
  %v104 = vld [vmem:[#allocation2 + $0x88] sm:$0xff]
  %v105 = vld [vmem:[#allocation2 + $0x90] sm:$0xff]
  %v106 = vld [vmem:[#allocation2 + $0x98] sm:$0xff]
  %v107 = vld [vmem:[#allocation2 + $0xa0] sm:$0xff]
  %v108 = vld [vmem:[#allocation2 + $0xa8] sm:$0xff]
  %v109 = vld [vmem:[#allocation2 + $0xb0] sm:$0xff]
  %v110 = vld [vmem:[#allocation2 + $0xb8] sm:$0xff]
  %v111 = vld [vmem:[#allocation2 + $0xc0] sm:$0xff]
  %v112 = vld [vmem:[#allocation2 + $0xc8] sm:$0xff]
  %v113 = vld [vmem:[#allocation2 + $0xd0] sm:$0xff]
  %v114 = vld [vmem:[#allocation2 + $0xd8] sm:$0xff]
  %v115 = vld [vmem:[#allocation2 + $0xe0] sm:$0xff]
  %v116 = vld [vmem:[#allocation2 + $0xe8] sm:$0xff]
  %v117 = vld [vmem:[#allocation2 + $0xf0] sm:$0xff]
  %v118 = vld [vmem:[#allocation2 + $0xf8] sm:$0xff]
  %v119 = vld [vmem:[%s0] sm:$0xff]
  %v120 = vld [vmem:[%s0 + $0x8] sm:$0xff]
  %v121 = vld [vmem:[%s0 + $0x10] sm:$0xff]
  %v122 = vld [vmem:[%s0 + $0x18] sm:$0xff]
  %v123 = vld [vmem:[%s0 + $0x20] sm:$0xff]
  %v124 = vld [vmem:[%s0 + $0x28] sm:$0xff]
  %v125 = vld [vmem:[%s0 + $0x30] sm:$0xff]
  %v126 = vld [vmem:[%s0 + $0x38] sm:$0xff]
  %v127 = vld [vmem:[%s0 + $0x40] sm:$0xff]
  %v128 = vld [vmem:[%s0 + $0x48] sm:$0xff]
  %v129 = vld [vmem:[%s0 + $0x50] sm:$0xff]
  %v130 = vld [vmem:[%s0 + $0x58] sm:$0xff]
  %v131 = vld [vmem:[%s0 + $0x60] sm:$0xff]
  %v132 = vld [vmem:[%s0 + $0x68] sm:$0xff]
  %v133 = vld [vmem:[%s0 + $0x70] sm:$0xff]
  %v134 = vld [vmem:[%s0 + $0x78] sm:$0xff]
  %v135 = vld [vmem:[%s0 + $0x80] sm:$0xff]
  %v136 = vld [vmem:[%s0 + $0x88] sm:$0xff]
  %v137 = vld [vmem:[%s0 + $0x90] sm:$0xff]
  %v138 = vld [vmem:[%s0 + $0x98] sm:$0xff]
  %v139 = vld [vmem:[%s0 + $0xa0] sm:$0xff]
  %v140 = vld [vmem:[%s0 + $0xa8] sm:$0xff]
  %v141 = vld [vmem:[%s0 + $0xb0] sm:$0xff]
  %v142 = vld [vmem:[%s0 + $0xb8] sm:$0xff]
  %v143 = vld [vmem:[%s0 + $0xc0] sm:$0xff]
  %v144 = vld [vmem:[%s0 + $0xc8] sm:$0xff]
  %v145 = vld [vmem:[%s0 + $0xd0] sm:$0xff]
  %v146 = vld [vmem:[%s0 + $0xd8] sm:$0xff]
  %v147 = vld [vmem:[%s0 + $0xe0] sm:$0xff]
  %v148 = vld [vmem:[%s0 + $0xe8] sm:$0xff]
  %v149 = vld [vmem:[%s0 + $0xf0] sm:$0xff]
  %v150 = vld [vmem:[%s0 + $0xf8] sm:$0xff]
  %v183 = vunpack.c.l.b16 %v119
  %v184 = vunpack.c.h.b16 %v119
  %v185 = vunpack.c.l.b16 %v120
  %v186 = vunpack.c.h.b16 %v120
  %v187 = vunpack.c.l.b16 %v121
  %v188 = vunpack.c.h.b16 %v121
  %v189 = vunpack.c.l.b16 %v122
  %v190 = vunpack.c.h.b16 %v122
  %v191 = vunpack.c.l.b16 %v123
  %v192 = vunpack.c.h.b16 %v123
  %v193 = vunpack.c.l.b16 %v124
  %v194 = vunpack.c.h.b16 %v124
  %v195 = vunpack.c.l.b16 %v125
  %v196 = vunpack.c.h.b16 %v125
  %v197 = vunpack.c.l.b16 %v126
  %v198 = vunpack.c.h.b16 %v126
  %v199 = vunpack.c.l.b16 %v127
  %v200 = vunpack.c.h.b16 %v127
  %v201 = vunpack.c.l.b16 %v128
  %v202 = vunpack.c.h.b16 %v128
  %v203 = vunpack.c.l.b16 %v129
  %v204 = vunpack.c.h.b16 %v129
  %v205 = vunpack.c.l.b16 %v130
  %v206 = vunpack.c.h.b16 %v130
  %v207 = vunpack.c.l.b16 %v131
  %v208 = vunpack.c.h.b16 %v131
  %v209 = vunpack.c.l.b16 %v132
  %v210 = vunpack.c.h.b16 %v132
  %v211 = vunpack.c.l.b16 %v133
  %v212 = vunpack.c.h.b16 %v133
  %v213 = vunpack.c.l.b16 %v134
  %v214 = vunpack.c.h.b16 %v134
  %v215 = vunpack.c.l.b16 %v135
  %v216 = vunpack.c.h.b16 %v135
  %v217 = vunpack.c.l.b16 %v136
  %v218 = vunpack.c.h.b16 %v136
  %v219 = vunpack.c.l.b16 %v137
  %v220 = vunpack.c.h.b16 %v137
  %v221 = vunpack.c.l.b16 %v138
  %v222 = vunpack.c.h.b16 %v138
  %v223 = vunpack.c.l.b16 %v139
  %v224 = vunpack.c.h.b16 %v139
  %v225 = vunpack.c.l.b16 %v140
  %v226 = vunpack.c.h.b16 %v140
  %v227 = vunpack.c.l.b16 %v141
  %v228 = vunpack.c.h.b16 %v141
  %v229 = vunpack.c.l.b16 %v142
  %v230 = vunpack.c.h.b16 %v142
  %v231 = vunpack.c.l.b16 %v143
  %v232 = vunpack.c.h.b16 %v143
  %v233 = vunpack.c.l.b16 %v144
  %v234 = vunpack.c.h.b16 %v144
  %v235 = vunpack.c.l.b16 %v145
  %v236 = vunpack.c.h.b16 %v145
  %v237 = vunpack.c.l.b16 %v146
  %v238 = vunpack.c.h.b16 %v146
  %v239 = vunpack.c.l.b16 %v147
  %v240 = vunpack.c.h.b16 %v147
  %v241 = vunpack.c.l.b16 %v148
  %v242 = vunpack.c.h.b16 %v148
  %v243 = vunpack.c.l.b16 %v149
  %v244 = vunpack.c.h.b16 %v149
  %v245 = vunpack.c.l.b16 %v150
  %v246 = vunpack.c.h.b16 %v150
  %v247 = vpack.c.b16 %v185, %v183
  %v248 = vpack.c.b16 %v186, %v184
  %v249 = vpack.c.b16 %v189, %v187
  %v250 = vpack.c.b16 %v190, %v188
  %v251 = vpack.c.b16 %v193, %v191
  %v252 = vpack.c.b16 %v194, %v192
  %v253 = vpack.c.b16 %v197, %v195
  %v254 = vpack.c.b16 %v198, %v196
  %v255 = vpack.c.b16 %v201, %v199
  %v256 = vpack.c.b16 %v202, %v200
  %v257 = vpack.c.b16 %v205, %v203
  %v258 = vpack.c.b16 %v206, %v204
  %v259 = vpack.c.b16 %v209, %v207
  %v260 = vpack.c.b16 %v210, %v208
  %v261 = vpack.c.b16 %v213, %v211
  %v262 = vpack.c.b16 %v214, %v212
  %v263 = vpack.c.b16 %v217, %v215
  %v264 = vpack.c.b16 %v218, %v216
  %v265 = vpack.c.b16 %v221, %v219
  %v266 = vpack.c.b16 %v222, %v220
  %v267 = vpack.c.b16 %v225, %v223
  %v268 = vpack.c.b16 %v226, %v224
  %v269 = vpack.c.b16 %v229, %v227
  %v270 = vpack.c.b16 %v230, %v228
  %v271 = vpack.c.b16 %v233, %v231
  %v272 = vpack.c.b16 %v234, %v232
  %v273 = vpack.c.b16 %v237, %v235
  %v274 = vpack.c.b16 %v238, %v236
  %v275 = vpack.c.b16 %v241, %v239
  %v276 = vpack.c.b16 %v242, %v240
  %v277 = vpack.c.b16 %v245, %v243
  %v278 = vpack.c.b16 %v246, %v244
  %v343 = vunpack.c.l.b16 %v55
  %v344 = vunpack.c.l.b16 %v56
  %v345 = vunpack.c.l.b16 %v57
  %v346 = vunpack.c.l.b16 %v58
  %v347 = vunpack.c.l.b16 %v59
  %v348 = vunpack.c.l.b16 %v60
  %v349 = vunpack.c.l.b16 %v61
  %v350 = vunpack.c.l.b16 %v62
  %v351 = vunpack.c.l.b16 %v63
  %v352 = vunpack.c.l.b16 %v64
  %v353 = vunpack.c.l.b16 %v65
  %v354 = vunpack.c.l.b16 %v66
  %v355 = vunpack.c.l.b16 %v67
  %v356 = vunpack.c.l.b16 %v68
  %v357 = vunpack.c.l.b16 %v69
  %v358 = vunpack.c.l.b16 %v70
  %v359 = vunpack.c.l.b16 %v71
  %v360 = vunpack.c.l.b16 %v72
  %v361 = vunpack.c.l.b16 %v73
  %v362 = vunpack.c.l.b16 %v74
  %v363 = vunpack.c.l.b16 %v75
  %v364 = vunpack.c.l.b16 %v76
  %v365 = vunpack.c.l.b16 %v77
  %v366 = vunpack.c.l.b16 %v78
  %v367 = vunpack.c.l.b16 %v79
  %v368 = vunpack.c.l.b16 %v80
  %v369 = vunpack.c.l.b16 %v81
  %v370 = vunpack.c.l.b16 %v82
  %v371 = vunpack.c.l.b16 %v83
  %v372 = vunpack.c.l.b16 %v84
  %v373 = vunpack.c.l.b16 %v85
  %v374 = vunpack.c.l.b16 %v86
  %v375 = vpack.c.b16 %v344, %v343
  %v376 = vpack.c.b16 %v346, %v345
  %v377 = vpack.c.b16 %v348, %v347
  %v378 = vpack.c.b16 %v350, %v349
  %v379 = vpack.c.b16 %v352, %v351
  %v380 = vpack.c.b16 %v354, %v353
  %v381 = vpack.c.b16 %v356, %v355
  %v382 = vpack.c.b16 %v358, %v357
  %v383 = vpack.c.b16 %v360, %v359
  %v384 = vpack.c.b16 %v362, %v361
  %v385 = vpack.c.b16 %v364, %v363
  %v386 = vpack.c.b16 %v366, %v365
  %v387 = vpack.c.b16 %v368, %v367
  %v388 = vpack.c.b16 %v370, %v369
  %v389 = vpack.c.b16 %v372, %v371
  %v390 = vpack.c.b16 %v374, %v373
  %407 = vmatpush.bf16.msra.mxu0 %v382
  %408 = vmatpush.bf16.msra.mxu0 %v381
  %409 = vmatpush.bf16.msra.mxu0 %v380
  %410 = vmatpush.bf16.msra.mxu0 %v379
  %411 = vmatpush.bf16.msra.mxu0 %v378
  %412 = vmatpush.bf16.msra.mxu0 %v377
  %413 = vmatpush.bf16.msra.mxu0 %v376
  %414 = vmatpush.bf16.msra.mxu0 %v375
  %415 = vmatmul.bf16.gmra.mxu0 %v247
  %v416 = vpop.f32.mrf.mxu0
  %v417 = vadd.f32 0.0, %v416
  %v418 = vpop.f32.mrf.mxu0
  %v419 = vadd.f32 0.0, %v418
  %420 = vmatmul.bf16.gmra.mxu0 %v249
  %v421 = vpop.f32.mrf.mxu0
  %v422 = vadd.f32 0.0, %v421
  %v423 = vpop.f32.mrf.mxu0
  %v424 = vadd.f32 0.0, %v423
  %425 = vmatmul.bf16.gmra.mxu0 %v251
  %v426 = vpop.f32.mrf.mxu0
  %v427 = vadd.f32 0.0, %v426
  %v428 = vpop.f32.mrf.mxu0
  %v429 = vadd.f32 0.0, %v428
  %430 = vmatmul.bf16.gmra.mxu0 %v253
  %v431 = vpop.f32.mrf.mxu0
  %v432 = vadd.f32 0.0, %v431
  %v433 = vpop.f32.mrf.mxu0
  %v434 = vadd.f32 0.0, %v433
  %435 = vmatmul.bf16.gmra.mxu0 %v255
  %v436 = vpop.f32.mrf.mxu0
  %v437 = vadd.f32 0.0, %v436
  %v438 = vpop.f32.mrf.mxu0
  %v439 = vadd.f32 0.0, %v438
  %440 = vmatmul.bf16.gmra.mxu0 %v257
  %v441 = vpop.f32.mrf.mxu0
  %v442 = vadd.f32 0.0, %v441
  %v443 = vpop.f32.mrf.mxu0
  %v444 = vadd.f32 0.0, %v443
  %445 = vmatmul.bf16.gmra.mxu0 %v259
  %v446 = vpop.f32.mrf.mxu0
  %v447 = vadd.f32 0.0, %v446
  %v448 = vpop.f32.mrf.mxu0
  %v449 = vadd.f32 0.0, %v448
  %450 = vmatmul.bf16.gmra.mxu0 %v261
  %v451 = vpop.f32.mrf.mxu0
  %v452 = vadd.f32 0.0, %v451
  %v453 = vpop.f32.mrf.mxu0
  %v454 = vadd.f32 0.0, %v453
  %455 = vmatmul.bf16.gmra.mxu0 %v263
  %v456 = vpop.f32.mrf.mxu0
  %v457 = vadd.f32 0.0, %v456
  %v458 = vpop.f32.mrf.mxu0
  %v459 = vadd.f32 0.0, %v458
  %460 = vmatmul.bf16.gmra.mxu0 %v265
  %v461 = vpop.f32.mrf.mxu0
  %v462 = vadd.f32 0.0, %v461
  %v463 = vpop.f32.mrf.mxu0
  %v464 = vadd.f32 0.0, %v463
  %465 = vmatmul.bf16.gmra.mxu0 %v267
  %v466 = vpop.f32.mrf.mxu0
  %v467 = vadd.f32 0.0, %v466
  %v468 = vpop.f32.mrf.mxu0
  %v469 = vadd.f32 0.0, %v468
  %470 = vmatmul.bf16.gmra.mxu0 %v269
  %v471 = vpop.f32.mrf.mxu0
  %v472 = vadd.f32 0.0, %v471
  %v473 = vpop.f32.mrf.mxu0
  %v474 = vadd.f32 0.0, %v473
  %475 = vmatmul.bf16.gmra.mxu0 %v271
  %v476 = vpop.f32.mrf.mxu0
  %v477 = vadd.f32 0.0, %v476
  %v478 = vpop.f32.mrf.mxu0
  %v479 = vadd.f32 0.0, %v478
  %480 = vmatmul.bf16.gmra.mxu0 %v273
  %v481 = vpop.f32.mrf.mxu0
  %v482 = vadd.f32 0.0, %v481
  %v483 = vpop.f32.mrf.mxu0
  %v484 = vadd.f32 0.0, %v483
  %485 = vmatmul.bf16.gmra.mxu0 %v275
  %v486 = vpop.f32.mrf.mxu0
  %v487 = vadd.f32 0.0, %v486
  %v488 = vpop.f32.mrf.mxu0
  %v489 = vadd.f32 0.0, %v488
  %490 = vmatmul.bf16.gmra.mxu0 %v277
  %v491 = vpop.f32.mrf.mxu0
  %v492 = vadd.f32 0.0, %v491
  %v493 = vpop.f32.mrf.mxu0
  %v494 = vadd.f32 0.0, %v493
  %495 = vdwg.mxu0
  %496 = vmatpush.bf16.msra.mxu0 %v390
  %497 = vmatpush.bf16.msra.mxu0 %v389
  %498 = vmatpush.bf16.msra.mxu0 %v388
  %499 = vmatpush.bf16.msra.mxu0 %v387
  %500 = vmatpush.bf16.msra.mxu0 %v386
  %501 = vmatpush.bf16.msra.mxu0 %v385
  %502 = vmatpush.bf16.msra.mxu0 %v384
  %503 = vmatpush.bf16.msra.mxu0 %v383
  %504 = vmatmul.bf16.gmra.mxu0 %v248
  %v505 = vpop.f32.mrf.mxu0
  %v506 = vadd.f32 %v417, %v505
  %v507 = vpop.f32.mrf.mxu0
  %v508 = vadd.f32 %v419, %v507
  %509 = vmatmul.bf16.gmra.mxu0 %v250
  %v510 = vpop.f32.mrf.mxu0
  %v511 = vadd.f32 %v422, %v510
  %v512 = vpop.f32.mrf.mxu0
  %v513 = vadd.f32 %v424, %v512
  %514 = vmatmul.bf16.gmra.mxu0 %v252
  %v515 = vpop.f32.mrf.mxu0
  %v516 = vadd.f32 %v427, %v515
  %v517 = vpop.f32.mrf.mxu0
  %v518 = vadd.f32 %v429, %v517
  %519 = vmatmul.bf16.gmra.mxu0 %v254
  %v520 = vpop.f32.mrf.mxu0
  %v521 = vadd.f32 %v432, %v520
  %v522 = vpop.f32.mrf.mxu0
  %v523 = vadd.f32 %v434, %v522
  %524 = vmatmul.bf16.gmra.mxu0 %v256
  %v525 = vpop.f32.mrf.mxu0
  %v526 = vadd.f32 %v437, %v525
  %v527 = vpop.f32.mrf.mxu0
  %v528 = vadd.f32 %v439, %v527
  %529 = vmatmul.bf16.gmra.mxu0 %v258
  %v530 = vpop.f32.mrf.mxu0
  %v531 = vadd.f32 %v442, %v530
  %v532 = vpop.f32.mrf.mxu0
  %v533 = vadd.f32 %v444, %v532
  %534 = vmatmul.bf16.gmra.mxu0 %v260
  %v535 = vpop.f32.mrf.mxu0
  %v536 = vadd.f32 %v447, %v535
  %v537 = vpop.f32.mrf.mxu0
  %v538 = vadd.f32 %v449, %v537
  %539 = vmatmul.bf16.gmra.mxu0 %v262
  %v540 = vpop.f32.mrf.mxu0
  %v541 = vadd.f32 %v452, %v540
  %v542 = vpop.f32.mrf.mxu0
  %v543 = vadd.f32 %v454, %v542
  %544 = vmatmul.bf16.gmra.mxu0 %v264
  %v545 = vpop.f32.mrf.mxu0
  %v546 = vadd.f32 %v457, %v545
  %v547 = vpop.f32.mrf.mxu0
  %v548 = vadd.f32 %v459, %v547
  %549 = vmatmul.bf16.gmra.mxu0 %v266
  %v550 = vpop.f32.mrf.mxu0
  %v551 = vadd.f32 %v462, %v550
  %v552 = vpop.f32.mrf.mxu0
  %v553 = vadd.f32 %v464, %v552
  %554 = vmatmul.bf16.gmra.mxu0 %v268
  %v555 = vpop.f32.mrf.mxu0
  %v556 = vadd.f32 %v467, %v555
  %v557 = vpop.f32.mrf.mxu0
  %v558 = vadd.f32 %v469, %v557
  %559 = vmatmul.bf16.gmra.mxu0 %v270
  %v560 = vpop.f32.mrf.mxu0
  %v561 = vadd.f32 %v472, %v560
  %v562 = vpop.f32.mrf.mxu0
  %v563 = vadd.f32 %v474, %v562
  %564 = vmatmul.bf16.gmra.mxu0 %v272
  %v565 = vpop.f32.mrf.mxu0
  %v566 = vadd.f32 %v477, %v565
  %v567 = vpop.f32.mrf.mxu0
  %v568 = vadd.f32 %v479, %v567
  %569 = vmatmul.bf16.gmra.mxu0 %v274
  %v570 = vpop.f32.mrf.mxu0
  %v571 = vadd.f32 %v482, %v570
  %v572 = vpop.f32.mrf.mxu0
  %v573 = vadd.f32 %v484, %v572
  %574 = vmatmul.bf16.gmra.mxu0 %v276
  %v575 = vpop.f32.mrf.mxu0
  %v576 = vadd.f32 %v487, %v575
  %v577 = vpop.f32.mrf.mxu0
  %v578 = vadd.f32 %v489, %v577
  %579 = vmatmul.bf16.gmra.mxu0 %v278
  %v580 = vpop.f32.mrf.mxu0
  %v581 = vadd.f32 %v492, %v580
  %v582 = vpop.f32.mrf.mxu0
  %v583 = vadd.f32 %v494, %v582
  %584 = vdwg.mxu0
  %v585 = vadd.f32 %v87, %v506
  %v586 = vadd.f32 %v88, %v508
  %v587 = vadd.f32 %v89, %v511
  %v588 = vadd.f32 %v90, %v513
  %v589 = vadd.f32 %v91, %v516
  %v590 = vadd.f32 %v92, %v518
  %v591 = vadd.f32 %v93, %v521
  %v592 = vadd.f32 %v94, %v523
  %v593 = vadd.f32 %v95, %v526
  %v594 = vadd.f32 %v96, %v528
  %v595 = vadd.f32 %v97, %v531
  %v596 = vadd.f32 %v98, %v533
  %v597 = vadd.f32 %v99, %v536
  %v598 = vadd.f32 %v100, %v538
  %v599 = vadd.f32 %v101, %v541
  %v600 = vadd.f32 %v102, %v543
  %v601 = vadd.f32 %v103, %v546
  %v602 = vadd.f32 %v104, %v548
  %v603 = vadd.f32 %v105, %v551
  %v604 = vadd.f32 %v106, %v553
  %v605 = vadd.f32 %v107, %v556
  %v606 = vadd.f32 %v108, %v558
  %v607 = vadd.f32 %v109, %v561
  %v608 = vadd.f32 %v110, %v563
  %v609 = vadd.f32 %v111, %v566
  %v610 = vadd.f32 %v112, %v568
  %v611 = vadd.f32 %v113, %v571
  %v612 = vadd.f32 %v114, %v573
  %v613 = vadd.f32 %v115, %v576
  %v614 = vadd.f32 %v116, %v578
  %v615 = vadd.f32 %v117, %v581
  %v616 = vadd.f32 %v118, %v583
  %617 = vst [vmem:[#allocation2] sm:$0xff] %v585
  %618 = vst [vmem:[#allocation2 + $0x8] sm:$0xff] %v586
  %619 = vst [vmem:[#allocation2 + $0x10] sm:$0xff] %v587
  %620 = vst [vmem:[#allocation2 + $0x18] sm:$0xff] %v588
  %621 = vst [vmem:[#allocation2 + $0x20] sm:$0xff] %v589
  %622 = vst [vmem:[#allocation2 + $0x28] sm:$0xff] %v590
  %623 = vst [vmem:[#allocation2 + $0x30] sm:$0xff] %v591
  %624 = vst [vmem:[#allocation2 + $0x38] sm:$0xff] %v592
  %625 = vst [vmem:[#allocation2 + $0x40] sm:$0xff] %v593
  %626 = vst [vmem:[#allocation2 + $0x48] sm:$0xff] %v594
  %627 = vst [vmem:[#allocation2 + $0x50] sm:$0xff] %v595
  %628 = vst [vmem:[#allocation2 + $0x58] sm:$0xff] %v596
  %629 = vst [vmem:[#allocation2 + $0x60] sm:$0xff] %v597
  %630 = vst [vmem:[#allocation2 + $0x68] sm:$0xff] %v598
  %631 = vst [vmem:[#allocation2 + $0x70] sm:$0xff] %v599
  %632 = vst [vmem:[#allocation2 + $0x78] sm:$0xff] %v600
  %633 = vst [vmem:[#allocation2 + $0x80] sm:$0xff] %v601
  %634 = vst [vmem:[#allocation2 + $0x88] sm:$0xff] %v602
  %635 = vst [vmem:[#allocation2 + $0x90] sm:$0xff] %v603
  %636 = vst [vmem:[#allocation2 + $0x98] sm:$0xff] %v604
  %637 = vst [vmem:[#allocation2 + $0xa0] sm:$0xff] %v605
  %638 = vst [vmem:[#allocation2 + $0xa8] sm:$0xff] %v606
  %639 = vst [vmem:[#allocation2 + $0xb0] sm:$0xff] %v607
  %640 = vst [vmem:[#allocation2 + $0xb8] sm:$0xff] %v608
  %641 = vst [vmem:[#allocation2 + $0xc0] sm:$0xff] %v609
  %642 = vst [vmem:[#allocation2 + $0xc8] sm:$0xff] %v610
  %643 = vst [vmem:[#allocation2 + $0xd0] sm:$0xff] %v611
  %644 = vst [vmem:[#allocation2 + $0xd8] sm:$0xff] %v612
  %645 = vst [vmem:[#allocation2 + $0xe0] sm:$0xff] %v613
  %646 = vst [vmem:[#allocation2 + $0xe8] sm:$0xff] %v614
  %647 = vst [vmem:[#allocation2 + $0xf0] sm:$0xff] %v615
  %648 = vst [vmem:[#allocation2 + $0xf8] sm:$0xff] %v616
  // Predicated region
  $region18: #{appnp_2layer_with_gcn.9} parent=0 // pred_check
    %p649 = pneg %p14
  $region19: #{appnp_2layer_with_gcn.9} parent=0 // pred_check_branch
    %651 = sbr.rel (%p649) target = $region21
  $region20: #{appnp_2layer_with_gcn.9} parent=0 // pred_region
    %v652 = vld [vmem:[#allocation2] sm:$0xff]
    %v653 = vld [vmem:[#allocation2 + $0x8] sm:$0xff]
    %v654 = vld [vmem:[#allocation2 + $0x10] sm:$0xff]
    %v655 = vld [vmem:[#allocation2 + $0x18] sm:$0xff]
    %v656 = vld [vmem:[#allocation2 + $0x20] sm:$0xff]
    %v657 = vld [vmem:[#allocation2 + $0x28] sm:$0xff]
    %v658 = vld [vmem:[#allocation2 + $0x30] sm:$0xff]
    %v659 = vld [vmem:[#allocation2 + $0x38] sm:$0xff]
    %v660 = vld [vmem:[#allocation2 + $0x40] sm:$0xff]
    %v661 = vld [vmem:[#allocation2 + $0x48] sm:$0xff]
    %v662 = vld [vmem:[#allocation2 + $0x50] sm:$0xff]
    %v663 = vld [vmem:[#allocation2 + $0x58] sm:$0xff]
    %v664 = vld [vmem:[#allocation2 + $0x60] sm:$0xff]
    %v665 = vld [vmem:[#allocation2 + $0x68] sm:$0xff]
    %v666 = vld [vmem:[#allocation2 + $0x70] sm:$0xff]
    %v667 = vld [vmem:[#allocation2 + $0x78] sm:$0xff]
    %v668 = vld [vmem:[#allocation2 + $0x80] sm:$0xff]
    %v669 = vld [vmem:[#allocation2 + $0x88] sm:$0xff]
    %v670 = vld [vmem:[#allocation2 + $0x90] sm:$0xff]
    %v671 = vld [vmem:[#allocation2 + $0x98] sm:$0xff]
    %v672 = vld [vmem:[#allocation2 + $0xa0] sm:$0xff]
    %v673 = vld [vmem:[#allocation2 + $0xa8] sm:$0xff]
    %v674 = vld [vmem:[#allocation2 + $0xb0] sm:$0xff]
    %v675 = vld [vmem:[#allocation2 + $0xb8] sm:$0xff]
    %v676 = vld [vmem:[#allocation2 + $0xc0] sm:$0xff]
    %v677 = vld [vmem:[#allocation2 + $0xc8] sm:$0xff]
    %v678 = vld [vmem:[#allocation2 + $0xd0] sm:$0xff]
    %v679 = vld [vmem:[#allocation2 + $0xd8] sm:$0xff]
    %v680 = vld [vmem:[#allocation2 + $0xe0] sm:$0xff]
    %v681 = vld [vmem:[#allocation2 + $0xe8] sm:$0xff]
    %v682 = vld [vmem:[#allocation2 + $0xf0] sm:$0xff]
    %v683 = vld [vmem:[#allocation2 + $0xf8] sm:$0xff]
    %v684 = vld [vmem:[%s2] sm:$0x1]
    %v686 = vperm.slane %v684, 0
    %v688 = vadd.f32 %v652, %v686
    %v689 = vadd.f32 %v653, %v686
    %v690 = vadd.f32 %v654, %v686
    %v691 = vadd.f32 %v655, %v686
    %v692 = vadd.f32 %v656, %v686
    %v693 = vadd.f32 %v657, %v686
    %v694 = vadd.f32 %v658, %v686
    %v695 = vadd.f32 %v659, %v686
    %v696 = vadd.f32 %v660, %v686
    %v697 = vadd.f32 %v661, %v686
    %v698 = vadd.f32 %v662, %v686
    %v699 = vadd.f32 %v663, %v686
    %v700 = vadd.f32 %v664, %v686
    %v701 = vadd.f32 %v665, %v686
    %v702 = vadd.f32 %v666, %v686
    %v703 = vadd.f32 %v667, %v686
    %v704 = vadd.f32 %v668, %v686
    %v705 = vadd.f32 %v669, %v686
    %v706 = vadd.f32 %v670, %v686
    %v707 = vadd.f32 %v671, %v686
    %v708 = vadd.f32 %v672, %v686
    %v709 = vadd.f32 %v673, %v686
    %v710 = vadd.f32 %v674, %v686
    %v711 = vadd.f32 %v675, %v686
    %v712 = vadd.f32 %v676, %v686
    %v713 = vadd.f32 %v677, %v686
    %v714 = vadd.f32 %v678, %v686
    %v715 = vadd.f32 %v679, %v686
    %v716 = vadd.f32 %v680, %v686
    %v717 = vadd.f32 %v681, %v686
    %v718 = vadd.f32 %v682, %v686
    %v719 = vadd.f32 %v683, %v686
    %v720 = vmax.f32 %v688, 0.0
    %v721 = vmax.f32 %v689, 0.0
    %v722 = vmax.f32 %v690, 0.0
    %v723 = vmax.f32 %v691, 0.0
    %v724 = vmax.f32 %v692, 0.0
    %v725 = vmax.f32 %v693, 0.0
    %v726 = vmax.f32 %v694, 0.0
    %v727 = vmax.f32 %v695, 0.0
    %v728 = vmax.f32 %v696, 0.0
    %v729 = vmax.f32 %v697, 0.0
    %v730 = vmax.f32 %v698, 0.0
    %v731 = vmax.f32 %v699, 0.0
    %v732 = vmax.f32 %v700, 0.0
    %v733 = vmax.f32 %v701, 0.0
    %v734 = vmax.f32 %v702, 0.0
    %v735 = vmax.f32 %v703, 0.0
    %v736 = vmax.f32 %v704, 0.0
    %v737 = vmax.f32 %v705, 0.0
    %v738 = vmax.f32 %v706, 0.0
    %v739 = vmax.f32 %v707, 0.0
    %v740 = vmax.f32 %v708, 0.0
    %v741 = vmax.f32 %v709, 0.0
    %v742 = vmax.f32 %v710, 0.0
    %v743 = vmax.f32 %v711, 0.0
    %v744 = vmax.f32 %v712, 0.0
    %v745 = vmax.f32 %v713, 0.0
    %v746 = vmax.f32 %v714, 0.0
    %v747 = vmax.f32 %v715, 0.0
    %v748 = vmax.f32 %v716, 0.0
    %v749 = vmax.f32 %v717, 0.0
    %v750 = vmax.f32 %v718, 0.0
    %v751 = vmax.f32 %v719, 0.0
    %v752 = vpack.c.bf16 %v720, %v720
    %v753 = vpack.c.bf16 %v721, %v721
    %v754 = vpack.c.bf16 %v722, %v722
    %v755 = vpack.c.bf16 %v723, %v723
    %v756 = vpack.c.bf16 %v724, %v724
    %v757 = vpack.c.bf16 %v725, %v725
    %v758 = vpack.c.bf16 %v726, %v726
    %v759 = vpack.c.bf16 %v727, %v727
    %v760 = vpack.c.bf16 %v728, %v728
    %v761 = vpack.c.bf16 %v729, %v729
    %v762 = vpack.c.bf16 %v730, %v730
    %v763 = vpack.c.bf16 %v731, %v731
    %v764 = vpack.c.bf16 %v732, %v732
    %v765 = vpack.c.bf16 %v733, %v733
    %v766 = vpack.c.bf16 %v734, %v734
    %v767 = vpack.c.bf16 %v735, %v735
    %v768 = vpack.c.bf16 %v736, %v736
    %v769 = vpack.c.bf16 %v737, %v737
    %v770 = vpack.c.bf16 %v738, %v738
    %v771 = vpack.c.bf16 %v739, %v739
    %v772 = vpack.c.bf16 %v740, %v740
    %v773 = vpack.c.bf16 %v741, %v741
    %v774 = vpack.c.bf16 %v742, %v742
    %v775 = vpack.c.bf16 %v743, %v743
    %v776 = vpack.c.bf16 %v744, %v744
    %v777 = vpack.c.bf16 %v745, %v745
    %v778 = vpack.c.bf16 %v746, %v746
    %v779 = vpack.c.bf16 %v747, %v747
    %v780 = vpack.c.bf16 %v748, %v748
    %v781 = vpack.c.bf16 %v749, %v749
    %v782 = vpack.c.bf16 %v750, %v750
    %v783 = vpack.c.bf16 %v751, %v751
    %784 = vst [vmem:[%s3] sm:$0xf] %v752
    %785 = vst [vmem:[%s3 + $0x4] sm:$0xf] %v753
    %786 = vst [vmem:[%s3 + $0x8] sm:$0xf] %v754
    %787 = vst [vmem:[%s3 + $0xc] sm:$0xf] %v755
    %788 = vst [vmem:[%s3 + $0x10] sm:$0xf] %v756
    %789 = vst [vmem:[%s3 + $0x14] sm:$0xf] %v757
    %790 = vst [vmem:[%s3 + $0x18] sm:$0xf] %v758
    %791 = vst [vmem:[%s3 + $0x1c] sm:$0xf] %v759
    %792 = vst [vmem:[%s3 + $0x20] sm:$0xf] %v760
    %793 = vst [vmem:[%s3 + $0x24] sm:$0xf] %v761
    %794 = vst [vmem:[%s3 + $0x28] sm:$0xf] %v762
    %795 = vst [vmem:[%s3 + $0x2c] sm:$0xf] %v763
    %796 = vst [vmem:[%s3 + $0x30] sm:$0xf] %v764
    %797 = vst [vmem:[%s3 + $0x34] sm:$0xf] %v765
    %798 = vst [vmem:[%s3 + $0x38] sm:$0xf] %v766
    %799 = vst [vmem:[%s3 + $0x3c] sm:$0xf] %v767
    %800 = vst [vmem:[%s3 + $0x40] sm:$0xf] %v768
    %801 = vst [vmem:[%s3 + $0x44] sm:$0xf] %v769
    %802 = vst [vmem:[%s3 + $0x48] sm:$0xf] %v770
    %803 = vst [vmem:[%s3 + $0x4c] sm:$0xf] %v771
    %804 = vst [vmem:[%s3 + $0x50] sm:$0xf] %v772
    %805 = vst [vmem:[%s3 + $0x54] sm:$0xf] %v773
    %806 = vst [vmem:[%s3 + $0x58] sm:$0xf] %v774
    %807 = vst [vmem:[%s3 + $0x5c] sm:$0xf] %v775
    %808 = vst [vmem:[%s3 + $0x60] sm:$0xf] %v776
    %809 = vst [vmem:[%s3 + $0x64] sm:$0xf] %v777
    %810 = vst [vmem:[%s3 + $0x68] sm:$0xf] %v778
    %811 = vst [vmem:[%s3 + $0x6c] sm:$0xf] %v779
    %812 = vst [vmem:[%s3 + $0x70] sm:$0xf] %v780
    %813 = vst [vmem:[%s3 + $0x74] sm:$0xf] %v781
    %814 = vst [vmem:[%s3 + $0x78] sm:$0xf] %v782
    %815 = vst [vmem:[%s3 + $0x7c] sm:$0xf] %v783
  $region21: #{appnp_2layer_with_gcn.9} parent=0 // pred_fallthru
    _
  // Predicated region
  $region22: #{appnp_2layer_with_gcn.9} parent=0 // pred_check
    _
  $region23: #{appnp_2layer_with_gcn.9} parent=0 // pred_check_branch
    %817 = sbr.rel (0) target = $region25
  $region24: #{appnp_2layer_with_gcn.9} parent=0 // pred_region
    _
  $region25: #{appnp_2layer_with_gcn.9} parent=0 // pred_fallthru
    _
  // Predicated region
  $region26: #{appnp_2layer_with_gcn.9} parent=0 // pred_check
    _
  $region27: #{appnp_2layer_with_gcn.9} parent=0 // pred_check_branch
    %819 = sbr.rel (0) target = $region29
  $region28: #{appnp_2layer_with_gcn.9} parent=0 // pred_region
    _
  $region29: #{appnp_2layer_with_gcn.9} parent=0 // pred_fallthru
    _

// kernel: appnp_2layer_with_gcn.8
$region0: #{appnp_2layer_with_gcn.8}
  #allocation0 [shape = 'u32[]', space=smem, size = 0x4, offset = 0x4, fixed_abs, tag = 'smem constant byte address 0x4 - core index']
  #allocation1 [shape = 'u32[72,128]{1,0:T(1,128)}', space=vmem, size = 0x9000, scoped, tag = 'internal scratch']
  #allocation2 [shape = 'f32[256,128]{1,0:T(8,128)}', space=vmem, size = 0x20000, scoped, tag = 'scratch operand']
  %s0 = inlined_call_operand.vmem [shape: bf16[256,128], index: 0, kind: input, shape index: {}]
  %s1 = inlined_call_operand.vmem [shape: bf16[128,128], index: 1, kind: input, shape index: {}]
  %s2 = inlined_call_operand.vmem [shape: bf16[256,128], index: 2, kind: output, shape index: {}]
  %s3 = sld [smem:[#allocation0]]
  $region26: #{appnp_2layer_with_gcn.8} parent=0
    _
  %s5 = ssub.s32 1, %s3
  %s6 = scalar_select 0, %s5, %s3
  // Predicated region
  $region2: #{appnp_2layer_with_gcn.8} parent=0 // pred_check
    _
  $region3: #{appnp_2layer_with_gcn.8} parent=0 // pred_check_branch
    %8 = sbr.rel (0) target = $region5
  $region4: #{appnp_2layer_with_gcn.8} parent=0 // pred_region
    _
  $region5: #{appnp_2layer_with_gcn.8} parent=0 // pred_fallthru
    _
  // Predicated region
  $region6: #{appnp_2layer_with_gcn.8} parent=0 // pred_check
    _
  $region7: #{appnp_2layer_with_gcn.8} parent=0 // pred_check_branch
    %10 = sbr.rel (0) target = $region9
  $region8: #{appnp_2layer_with_gcn.8} parent=0 // pred_region
    _
  $region9: #{appnp_2layer_with_gcn.8} parent=0 // pred_fallthru
    _
  %p11 = scmp.eq.s32.totalorder 0, 0
  // Predicated region
  $region10: #{appnp_2layer_with_gcn.8} parent=0 // pred_check
    %p12 = pneg %p11
  $region11: #{appnp_2layer_with_gcn.8} parent=0 // pred_check_branch
    %14 = sbr.rel (%p12) target = $region13
  $region12: #{appnp_2layer_with_gcn.8} parent=0 // pred_region
    %15 = vst [vmem:[#allocation2] sm:$0xff] 0.0
    %16 = vst [vmem:[#allocation2 + $0x8] sm:$0xff] 0.0
    %17 = vst [vmem:[#allocation2 + $0x10] sm:$0xff] 0.0
    %18 = vst [vmem:[#allocation2 + $0x18] sm:$0xff] 0.0
    %19 = vst [vmem:[#allocation2 + $0x20] sm:$0xff] 0.0
    %20 = vst [vmem:[#allocation2 + $0x28] sm:$0xff] 0.0
    %21 = vst [vmem:[#allocation2 + $0x30] sm:$0xff] 0.0
    %22 = vst [vmem:[#allocation2 + $0x38] sm:$0xff] 0.0
    %23 = vst [vmem:[#allocation2 + $0x40] sm:$0xff] 0.0
    %24 = vst [vmem:[#allocation2 + $0x48] sm:$0xff] 0.0
    %25 = vst [vmem:[#allocation2 + $0x50] sm:$0xff] 0.0
    %26 = vst [vmem:[#allocation2 + $0x58] sm:$0xff] 0.0
    %27 = vst [vmem:[#allocation2 + $0x60] sm:$0xff] 0.0
    %28 = vst [vmem:[#allocation2 + $0x68] sm:$0xff] 0.0
    %29 = vst [vmem:[#allocation2 + $0x70] sm:$0xff] 0.0
    %30 = vst [vmem:[#allocation2 + $0x78] sm:$0xff] 0.0
    %31 = vst [vmem:[#allocation2 + $0x80] sm:$0xff] 0.0
    %32 = vst [vmem:[#allocation2 + $0x88] sm:$0xff] 0.0
    %33 = vst [vmem:[#allocation2 + $0x90] sm:$0xff] 0.0
    %34 = vst [vmem:[#allocation2 + $0x98] sm:$0xff] 0.0
    %35 = vst [vmem:[#allocation2 + $0xa0] sm:$0xff] 0.0
    %36 = vst [vmem:[#allocation2 + $0xa8] sm:$0xff] 0.0
    %37 = vst [vmem:[#allocation2 + $0xb0] sm:$0xff] 0.0
    %38 = vst [vmem:[#allocation2 + $0xb8] sm:$0xff] 0.0
    %39 = vst [vmem:[#allocation2 + $0xc0] sm:$0xff] 0.0
    %40 = vst [vmem:[#allocation2 + $0xc8] sm:$0xff] 0.0
    %41 = vst [vmem:[#allocation2 + $0xd0] sm:$0xff] 0.0
    %42 = vst [vmem:[#allocation2 + $0xd8] sm:$0xff] 0.0
    %43 = vst [vmem:[#allocation2 + $0xe0] sm:$0xff] 0.0
    %44 = vst [vmem:[#allocation2 + $0xe8] sm:$0xff] 0.0
    %45 = vst [vmem:[#allocation2 + $0xf0] sm:$0xff] 0.0
    %46 = vst [vmem:[#allocation2 + $0xf8] sm:$0xff] 0.0
  $region13: #{appnp_2layer_with_gcn.8} parent=0 // pred_fallthru
    _
  %v47 = vld [vmem:[#allocation2] sm:$0xff]
  %v48 = vld [vmem:[#allocation2 + $0x8] sm:$0xff]
  %v49 = vld [vmem:[#allocation2 + $0x10] sm:$0xff]
  %v50 = vld [vmem:[#allocation2 + $0x18] sm:$0xff]
  %v51 = vld [vmem:[#allocation2 + $0x20] sm:$0xff]
  %v52 = vld [vmem:[#allocation2 + $0x28] sm:$0xff]
  %v53 = vld [vmem:[#allocation2 + $0x30] sm:$0xff]
  %v54 = vld [vmem:[#allocation2 + $0x38] sm:$0xff]
  %v55 = vld [vmem:[#allocation2 + $0x40] sm:$0xff]
  %v56 = vld [vmem:[#allocation2 + $0x48] sm:$0xff]
  %v57 = vld [vmem:[#allocation2 + $0x50] sm:$0xff]
  %v58 = vld [vmem:[#allocation2 + $0x58] sm:$0xff]
  %v59 = vld [vmem:[#allocation2 + $0x60] sm:$0xff]
  %v60 = vld [vmem:[#allocation2 + $0x68] sm:$0xff]
  %v61 = vld [vmem:[#allocation2 + $0x70] sm:$0xff]
  %v62 = vld [vmem:[#allocation2 + $0x78] sm:$0xff]
  %v63 = vld [vmem:[#allocation2 + $0x80] sm:$0xff]
  %v64 = vld [vmem:[#allocation2 + $0x88] sm:$0xff]
  %v65 = vld [vmem:[#allocation2 + $0x90] sm:$0xff]
  %v66 = vld [vmem:[#allocation2 + $0x98] sm:$0xff]
  %v67 = vld [vmem:[#allocation2 + $0xa0] sm:$0xff]
  %v68 = vld [vmem:[#allocation2 + $0xa8] sm:$0xff]
  %v69 = vld [vmem:[#allocation2 + $0xb0] sm:$0xff]
  %v70 = vld [vmem:[#allocation2 + $0xb8] sm:$0xff]
  %v71 = vld [vmem:[#allocation2 + $0xc0] sm:$0xff]
  %v72 = vld [vmem:[#allocation2 + $0xc8] sm:$0xff]
  %v73 = vld [vmem:[#allocation2 + $0xd0] sm:$0xff]
  %v74 = vld [vmem:[#allocation2 + $0xd8] sm:$0xff]
  %v75 = vld [vmem:[#allocation2 + $0xe0] sm:$0xff]
  %v76 = vld [vmem:[#allocation2 + $0xe8] sm:$0xff]
  %v77 = vld [vmem:[#allocation2 + $0xf0] sm:$0xff]
  %v78 = vld [vmem:[#allocation2 + $0xf8] sm:$0xff]
  %v79 = vld [vmem:[%s0] sm:$0xf]
  %v80 = vld [vmem:[%s0 + $0x4] sm:$0xf]
  %v81 = vld [vmem:[%s0 + $0x8] sm:$0xf]
  %v82 = vld [vmem:[%s0 + $0xc] sm:$0xf]
  %v83 = vld [vmem:[%s0 + $0x10] sm:$0xf]
  %v84 = vld [vmem:[%s0 + $0x14] sm:$0xf]
  %v85 = vld [vmem:[%s0 + $0x18] sm:$0xf]
  %v86 = vld [vmem:[%s0 + $0x1c] sm:$0xf]
  %v87 = vld [vmem:[%s0 + $0x20] sm:$0xf]
  %v88 = vld [vmem:[%s0 + $0x24] sm:$0xf]
  %v89 = vld [vmem:[%s0 + $0x28] sm:$0xf]
  %v90 = vld [vmem:[%s0 + $0x2c] sm:$0xf]
  %v91 = vld [vmem:[%s0 + $0x30] sm:$0xf]
  %v92 = vld [vmem:[%s0 + $0x34] sm:$0xf]
  %v93 = vld [vmem:[%s0 + $0x38] sm:$0xf]
  %v94 = vld [vmem:[%s0 + $0x3c] sm:$0xf]
  %v95 = vld [vmem:[%s0 + $0x40] sm:$0xf]
  %v96 = vld [vmem:[%s0 + $0x44] sm:$0xf]
  %v97 = vld [vmem:[%s0 + $0x48] sm:$0xf]
  %v98 = vld [vmem:[%s0 + $0x4c] sm:$0xf]
  %v99 = vld [vmem:[%s0 + $0x50] sm:$0xf]
  %v100 = vld [vmem:[%s0 + $0x54] sm:$0xf]
  %v101 = vld [vmem:[%s0 + $0x58] sm:$0xf]
  %v102 = vld [vmem:[%s0 + $0x5c] sm:$0xf]
  %v103 = vld [vmem:[%s0 + $0x60] sm:$0xf]
  %v104 = vld [vmem:[%s0 + $0x64] sm:$0xf]
  %v105 = vld [vmem:[%s0 + $0x68] sm:$0xf]
  %v106 = vld [vmem:[%s0 + $0x6c] sm:$0xf]
  %v107 = vld [vmem:[%s0 + $0x70] sm:$0xf]
  %v108 = vld [vmem:[%s0 + $0x74] sm:$0xf]
  %v109 = vld [vmem:[%s0 + $0x78] sm:$0xf]
  %v110 = vld [vmem:[%s0 + $0x7c] sm:$0xf]
  %v111 = vld [vmem:[%s1] sm:$0xf]
  %v112 = vld [vmem:[%s1 + $0x4] sm:$0xf]
  %v113 = vld [vmem:[%s1 + $0x8] sm:$0xf]
  %v114 = vld [vmem:[%s1 + $0xc] sm:$0xf]
  %v115 = vld [vmem:[%s1 + $0x10] sm:$0xf]
  %v116 = vld [vmem:[%s1 + $0x14] sm:$0xf]
  %v117 = vld [vmem:[%s1 + $0x18] sm:$0xf]
  %v118 = vld [vmem:[%s1 + $0x1c] sm:$0xf]
  %v119 = vld [vmem:[%s1 + $0x20] sm:$0xf]
  %v120 = vld [vmem:[%s1 + $0x24] sm:$0xf]
  %v121 = vld [vmem:[%s1 + $0x28] sm:$0xf]
  %v122 = vld [vmem:[%s1 + $0x2c] sm:$0xf]
  %v123 = vld [vmem:[%s1 + $0x30] sm:$0xf]
  %v124 = vld [vmem:[%s1 + $0x34] sm:$0xf]
  %v125 = vld [vmem:[%s1 + $0x38] sm:$0xf]
  %v126 = vld [vmem:[%s1 + $0x3c] sm:$0xf]
  %v159 = vunpack.c.l.b16 %v79
  %v160 = vunpack.c.l.b16 %v80
  %v161 = vunpack.c.l.b16 %v81
  %v162 = vunpack.c.l.b16 %v82
  %v163 = vunpack.c.l.b16 %v83
  %v164 = vunpack.c.l.b16 %v84
  %v165 = vunpack.c.l.b16 %v85
  %v166 = vunpack.c.l.b16 %v86
  %v167 = vunpack.c.l.b16 %v87
  %v168 = vunpack.c.l.b16 %v88
  %v169 = vunpack.c.l.b16 %v89
  %v170 = vunpack.c.l.b16 %v90
  %v171 = vunpack.c.l.b16 %v91
  %v172 = vunpack.c.l.b16 %v92
  %v173 = vunpack.c.l.b16 %v93
  %v174 = vunpack.c.l.b16 %v94
  %v175 = vunpack.c.l.b16 %v95
  %v176 = vunpack.c.l.b16 %v96
  %v177 = vunpack.c.l.b16 %v97
  %v178 = vunpack.c.l.b16 %v98
  %v179 = vunpack.c.l.b16 %v99
  %v180 = vunpack.c.l.b16 %v100
  %v181 = vunpack.c.l.b16 %v101
  %v182 = vunpack.c.l.b16 %v102
  %v183 = vunpack.c.l.b16 %v103
  %v184 = vunpack.c.l.b16 %v104
  %v185 = vunpack.c.l.b16 %v105
  %v186 = vunpack.c.l.b16 %v106
  %v187 = vunpack.c.l.b16 %v107
  %v188 = vunpack.c.l.b16 %v108
  %v189 = vunpack.c.l.b16 %v109
  %v190 = vunpack.c.l.b16 %v110
  %v191 = vpack.c.b16 %v160, %v159
  %v192 = vpack.c.b16 %v162, %v161
  %v193 = vpack.c.b16 %v164, %v163
  %v194 = vpack.c.b16 %v166, %v165
  %v195 = vpack.c.b16 %v168, %v167
  %v196 = vpack.c.b16 %v170, %v169
  %v197 = vpack.c.b16 %v172, %v171
  %v198 = vpack.c.b16 %v174, %v173
  %v199 = vpack.c.b16 %v176, %v175
  %v200 = vpack.c.b16 %v178, %v177
  %v201 = vpack.c.b16 %v180, %v179
  %v202 = vpack.c.b16 %v182, %v181
  %v203 = vpack.c.b16 %v184, %v183
  %v204 = vpack.c.b16 %v186, %v185
  %v205 = vpack.c.b16 %v188, %v187
  %v206 = vpack.c.b16 %v190, %v189
  %v239 = vunpack.c.l.b16 %v111
  %v240 = vunpack.c.l.b16 %v112
  %v241 = vunpack.c.l.b16 %v113
  %v242 = vunpack.c.l.b16 %v114
  %v243 = vunpack.c.l.b16 %v115
  %v244 = vunpack.c.l.b16 %v116
  %v245 = vunpack.c.l.b16 %v117
  %v246 = vunpack.c.l.b16 %v118
  %v247 = vunpack.c.l.b16 %v119
  %v248 = vunpack.c.l.b16 %v120
  %v249 = vunpack.c.l.b16 %v121
  %v250 = vunpack.c.l.b16 %v122
  %v251 = vunpack.c.l.b16 %v123
  %v252 = vunpack.c.l.b16 %v124
  %v253 = vunpack.c.l.b16 %v125
  %v254 = vunpack.c.l.b16 %v126
  %v255 = vpack.c.b16 %v240, %v239
  %v256 = vpack.c.b16 %v242, %v241
  %v257 = vpack.c.b16 %v244, %v243
  %v258 = vpack.c.b16 %v246, %v245
  %v259 = vpack.c.b16 %v248, %v247
  %v260 = vpack.c.b16 %v250, %v249
  %v261 = vpack.c.b16 %v252, %v251
  %v262 = vpack.c.b16 %v254, %v253
  %271 = vmatpush.bf16.msra.mxu0 %v262
  %272 = vmatpush.bf16.msra.mxu0 %v261
  %273 = vmatpush.bf16.msra.mxu0 %v260
  %274 = vmatpush.bf16.msra.mxu0 %v259
  %275 = vmatpush.bf16.msra.mxu0 %v258
  %276 = vmatpush.bf16.msra.mxu0 %v257
  %277 = vmatpush.bf16.msra.mxu0 %v256
  %278 = vmatpush.bf16.msra.mxu0 %v255
  %279 = vmatmul.bf16.gmra.mxu0 %v191
  %v280 = vpop.f32.mrf.mxu0
  %v281 = vadd.f32 0.0, %v280
  %v282 = vpop.f32.mrf.mxu0
  %v283 = vadd.f32 0.0, %v282
  %284 = vmatmul.bf16.gmra.mxu0 %v192
  %v285 = vpop.f32.mrf.mxu0
  %v286 = vadd.f32 0.0, %v285
  %v287 = vpop.f32.mrf.mxu0
  %v288 = vadd.f32 0.0, %v287
  %289 = vmatmul.bf16.gmra.mxu0 %v193
  %v290 = vpop.f32.mrf.mxu0
  %v291 = vadd.f32 0.0, %v290
  %v292 = vpop.f32.mrf.mxu0
  %v293 = vadd.f32 0.0, %v292
  %294 = vmatmul.bf16.gmra.mxu0 %v194
  %v295 = vpop.f32.mrf.mxu0
  %v296 = vadd.f32 0.0, %v295
  %v297 = vpop.f32.mrf.mxu0
  %v298 = vadd.f32 0.0, %v297
  %299 = vmatmul.bf16.gmra.mxu0 %v195
  %v300 = vpop.f32.mrf.mxu0
  %v301 = vadd.f32 0.0, %v300
  %v302 = vpop.f32.mrf.mxu0
  %v303 = vadd.f32 0.0, %v302
  %304 = vmatmul.bf16.gmra.mxu0 %v196
  %v305 = vpop.f32.mrf.mxu0
  %v306 = vadd.f32 0.0, %v305
  %v307 = vpop.f32.mrf.mxu0
  %v308 = vadd.f32 0.0, %v307
  %309 = vmatmul.bf16.gmra.mxu0 %v197
  %v310 = vpop.f32.mrf.mxu0
  %v311 = vadd.f32 0.0, %v310
  %v312 = vpop.f32.mrf.mxu0
  %v313 = vadd.f32 0.0, %v312
  %314 = vmatmul.bf16.gmra.mxu0 %v198
  %v315 = vpop.f32.mrf.mxu0
  %v316 = vadd.f32 0.0, %v315
  %v317 = vpop.f32.mrf.mxu0
  %v318 = vadd.f32 0.0, %v317
  %319 = vmatmul.bf16.gmra.mxu0 %v199
  %v320 = vpop.f32.mrf.mxu0
  %v321 = vadd.f32 0.0, %v320
  %v322 = vpop.f32.mrf.mxu0
  %v323 = vadd.f32 0.0, %v322
  %324 = vmatmul.bf16.gmra.mxu0 %v200
  %v325 = vpop.f32.mrf.mxu0
  %v326 = vadd.f32 0.0, %v325
  %v327 = vpop.f32.mrf.mxu0
  %v328 = vadd.f32 0.0, %v327
  %329 = vmatmul.bf16.gmra.mxu0 %v201
  %v330 = vpop.f32.mrf.mxu0
  %v331 = vadd.f32 0.0, %v330
  %v332 = vpop.f32.mrf.mxu0
  %v333 = vadd.f32 0.0, %v332
  %334 = vmatmul.bf16.gmra.mxu0 %v202
  %v335 = vpop.f32.mrf.mxu0
  %v336 = vadd.f32 0.0, %v335
  %v337 = vpop.f32.mrf.mxu0
  %v338 = vadd.f32 0.0, %v337
  %339 = vmatmul.bf16.gmra.mxu0 %v203
  %v340 = vpop.f32.mrf.mxu0
  %v341 = vadd.f32 0.0, %v340
  %v342 = vpop.f32.mrf.mxu0
  %v343 = vadd.f32 0.0, %v342
  %344 = vmatmul.bf16.gmra.mxu0 %v204
  %v345 = vpop.f32.mrf.mxu0
  %v346 = vadd.f32 0.0, %v345
  %v347 = vpop.f32.mrf.mxu0
  %v348 = vadd.f32 0.0, %v347
  %349 = vmatmul.bf16.gmra.mxu0 %v205
  %v350 = vpop.f32.mrf.mxu0
  %v351 = vadd.f32 0.0, %v350
  %v352 = vpop.f32.mrf.mxu0
  %v353 = vadd.f32 0.0, %v352
  %354 = vmatmul.bf16.gmra.mxu0 %v206
  %v355 = vpop.f32.mrf.mxu0
  %v356 = vadd.f32 0.0, %v355
  %v357 = vpop.f32.mrf.mxu0
  %v358 = vadd.f32 0.0, %v357
  %359 = vdwg.mxu0
  %v360 = vadd.f32 %v47, %v281
  %v361 = vadd.f32 %v48, %v283
  %v362 = vadd.f32 %v49, %v286
  %v363 = vadd.f32 %v50, %v288
  %v364 = vadd.f32 %v51, %v291
  %v365 = vadd.f32 %v52, %v293
  %v366 = vadd.f32 %v53, %v296
  %v367 = vadd.f32 %v54, %v298
  %v368 = vadd.f32 %v55, %v301
  %v369 = vadd.f32 %v56, %v303
  %v370 = vadd.f32 %v57, %v306
  %v371 = vadd.f32 %v58, %v308
  %v372 = vadd.f32 %v59, %v311
  %v373 = vadd.f32 %v60, %v313
  %v374 = vadd.f32 %v61, %v316
  %v375 = vadd.f32 %v62, %v318
  %v376 = vadd.f32 %v63, %v321
  %v377 = vadd.f32 %v64, %v323
  %v378 = vadd.f32 %v65, %v326
  %v379 = vadd.f32 %v66, %v328
  %v380 = vadd.f32 %v67, %v331
  %v381 = vadd.f32 %v68, %v333
  %v382 = vadd.f32 %v69, %v336
  %v383 = vadd.f32 %v70, %v338
  %v384 = vadd.f32 %v71, %v341
  %v385 = vadd.f32 %v72, %v343
  %v386 = vadd.f32 %v73, %v346
  %v387 = vadd.f32 %v74, %v348
  %v388 = vadd.f32 %v75, %v351
  %v389 = vadd.f32 %v76, %v353
  %v390 = vadd.f32 %v77, %v356
  %v391 = vadd.f32 %v78, %v358
  %392 = vst [vmem:[#allocation2] sm:$0xff] %v360
  %393 = vst [vmem:[#allocation2 + $0x8] sm:$0xff] %v361
  %394 = vst [vmem:[#allocation2 + $0x10] sm:$0xff] %v362
  %395 = vst [vmem:[#allocation2 + $0x18] sm:$0xff] %v363
  %396 = vst [vmem:[#allocation2 + $0x20] sm:$0xff] %v364
  %397 = vst [vmem:[#allocation2 + $0x28] sm:$0xff] %v365
  %398 = vst [vmem:[#allocation2 + $0x30] sm:$0xff] %v366
  %399 = vst [vmem:[#allocation2 + $0x38] sm:$0xff] %v367
  %400 = vst [vmem:[#allocation2 + $0x40] sm:$0xff] %v368
  %401 = vst [vmem:[#allocation2 + $0x48] sm:$0xff] %v369
  %402 = vst [vmem:[#allocation2 + $0x50] sm:$0xff] %v370
  %403 = vst [vmem:[#allocation2 + $0x58] sm:$0xff] %v371
  %404 = vst [vmem:[#allocation2 + $0x60] sm:$0xff] %v372
  %405 = vst [vmem:[#allocation2 + $0x68] sm:$0xff] %v373
  %406 = vst [vmem:[#allocation2 + $0x70] sm:$0xff] %v374
  %407 = vst [vmem:[#allocation2 + $0x78] sm:$0xff] %v375
  %408 = vst [vmem:[#allocation2 + $0x80] sm:$0xff] %v376
  %409 = vst [vmem:[#allocation2 + $0x88] sm:$0xff] %v377
  %410 = vst [vmem:[#allocation2 + $0x90] sm:$0xff] %v378
  %411 = vst [vmem:[#allocation2 + $0x98] sm:$0xff] %v379
  %412 = vst [vmem:[#allocation2 + $0xa0] sm:$0xff] %v380
  %413 = vst [vmem:[#allocation2 + $0xa8] sm:$0xff] %v381
  %414 = vst [vmem:[#allocation2 + $0xb0] sm:$0xff] %v382
  %415 = vst [vmem:[#allocation2 + $0xb8] sm:$0xff] %v383
  %416 = vst [vmem:[#allocation2 + $0xc0] sm:$0xff] %v384
  %417 = vst [vmem:[#allocation2 + $0xc8] sm:$0xff] %v385
  %418 = vst [vmem:[#allocation2 + $0xd0] sm:$0xff] %v386
  %419 = vst [vmem:[#allocation2 + $0xd8] sm:$0xff] %v387
  %420 = vst [vmem:[#allocation2 + $0xe0] sm:$0xff] %v388
  %421 = vst [vmem:[#allocation2 + $0xe8] sm:$0xff] %v389
  %422 = vst [vmem:[#allocation2 + $0xf0] sm:$0xff] %v390
  %423 = vst [vmem:[#allocation2 + $0xf8] sm:$0xff] %v391
  // Predicated region
  $region14: #{appnp_2layer_with_gcn.8} parent=0 // pred_check
    %p424 = pneg %p11
  $region15: #{appnp_2layer_with_gcn.8} parent=0 // pred_check_branch
    %426 = sbr.rel (%p424) target = $region17
  $region16: #{appnp_2layer_with_gcn.8} parent=0 // pred_region
    %v427 = vld [vmem:[#allocation2] sm:$0xff]
    %v428 = vld [vmem:[#allocation2 + $0x8] sm:$0xff]
    %v429 = vld [vmem:[#allocation2 + $0x10] sm:$0xff]
    %v430 = vld [vmem:[#allocation2 + $0x18] sm:$0xff]
    %v431 = vld [vmem:[#allocation2 + $0x20] sm:$0xff]
    %v432 = vld [vmem:[#allocation2 + $0x28] sm:$0xff]
    %v433 = vld [vmem:[#allocation2 + $0x30] sm:$0xff]
    %v434 = vld [vmem:[#allocation2 + $0x38] sm:$0xff]
    %v435 = vld [vmem:[#allocation2 + $0x40] sm:$0xff]
    %v436 = vld [vmem:[#allocation2 + $0x48] sm:$0xff]
    %v437 = vld [vmem:[#allocation2 + $0x50] sm:$0xff]
    %v438 = vld [vmem:[#allocation2 + $0x58] sm:$0xff]
    %v439 = vld [vmem:[#allocation2 + $0x60] sm:$0xff]
    %v440 = vld [vmem:[#allocation2 + $0x68] sm:$0xff]
    %v441 = vld [vmem:[#allocation2 + $0x70] sm:$0xff]
    %v442 = vld [vmem:[#allocation2 + $0x78] sm:$0xff]
    %v443 = vld [vmem:[#allocation2 + $0x80] sm:$0xff]
    %v444 = vld [vmem:[#allocation2 + $0x88] sm:$0xff]
    %v445 = vld [vmem:[#allocation2 + $0x90] sm:$0xff]
    %v446 = vld [vmem:[#allocation2 + $0x98] sm:$0xff]
    %v447 = vld [vmem:[#allocation2 + $0xa0] sm:$0xff]
    %v448 = vld [vmem:[#allocation2 + $0xa8] sm:$0xff]
    %v449 = vld [vmem:[#allocation2 + $0xb0] sm:$0xff]
    %v450 = vld [vmem:[#allocation2 + $0xb8] sm:$0xff]
    %v451 = vld [vmem:[#allocation2 + $0xc0] sm:$0xff]
    %v452 = vld [vmem:[#allocation2 + $0xc8] sm:$0xff]
    %v453 = vld [vmem:[#allocation2 + $0xd0] sm:$0xff]
    %v454 = vld [vmem:[#allocation2 + $0xd8] sm:$0xff]
    %v455 = vld [vmem:[#allocation2 + $0xe0] sm:$0xff]
    %v456 = vld [vmem:[#allocation2 + $0xe8] sm:$0xff]
    %v457 = vld [vmem:[#allocation2 + $0xf0] sm:$0xff]
    %v458 = vld [vmem:[#allocation2 + $0xf8] sm:$0xff]
    %v459 = vpack.c.bf16 %v427, %v427
    %v460 = vpack.c.bf16 %v428, %v428
    %v461 = vpack.c.bf16 %v429, %v429
    %v462 = vpack.c.bf16 %v430, %v430
    %v463 = vpack.c.bf16 %v431, %v431
    %v464 = vpack.c.bf16 %v432, %v432
    %v465 = vpack.c.bf16 %v433, %v433
    %v466 = vpack.c.bf16 %v434, %v434
    %v467 = vpack.c.bf16 %v435, %v435
    %v468 = vpack.c.bf16 %v436, %v436
    %v469 = vpack.c.bf16 %v437, %v437
    %v470 = vpack.c.bf16 %v438, %v438
    %v471 = vpack.c.bf16 %v439, %v439
    %v472 = vpack.c.bf16 %v440, %v440
    %v473 = vpack.c.bf16 %v441, %v441
    %v474 = vpack.c.bf16 %v442, %v442
    %v475 = vpack.c.bf16 %v443, %v443
    %v476 = vpack.c.bf16 %v444, %v444
    %v477 = vpack.c.bf16 %v445, %v445
    %v478 = vpack.c.bf16 %v446, %v446
    %v479 = vpack.c.bf16 %v447, %v447
    %v480 = vpack.c.bf16 %v448, %v448
    %v481 = vpack.c.bf16 %v449, %v449
    %v482 = vpack.c.bf16 %v450, %v450
    %v483 = vpack.c.bf16 %v451, %v451
    %v484 = vpack.c.bf16 %v452, %v452
    %v485 = vpack.c.bf16 %v453, %v453
    %v486 = vpack.c.bf16 %v454, %v454
    %v487 = vpack.c.bf16 %v455, %v455
    %v488 = vpack.c.bf16 %v456, %v456
    %v489 = vpack.c.bf16 %v457, %v457
    %v490 = vpack.c.bf16 %v458, %v458
    %491 = vst [vmem:[%s2] sm:$0xf] %v459
    %492 = vst [vmem:[%s2 + $0x4] sm:$0xf] %v460
    %493 = vst [vmem:[%s2 + $0x8] sm:$0xf] %v461
    %494 = vst [vmem:[%s2 + $0xc] sm:$0xf] %v462
    %495 = vst [vmem:[%s2 + $0x10] sm:$0xf] %v463
    %496 = vst [vmem:[%s2 + $0x14] sm:$0xf] %v464
    %497 = vst [vmem:[%s2 + $0x18] sm:$0xf] %v465
    %498 = vst [vmem:[%s2 + $0x1c] sm:$0xf] %v466
    %499 = vst [vmem:[%s2 + $0x20] sm:$0xf] %v467
    %500 = vst [vmem:[%s2 + $0x24] sm:$0xf] %v468
    %501 = vst [vmem:[%s2 + $0x28] sm:$0xf] %v469
    %502 = vst [vmem:[%s2 + $0x2c] sm:$0xf] %v470
    %503 = vst [vmem:[%s2 + $0x30] sm:$0xf] %v471
    %504 = vst [vmem:[%s2 + $0x34] sm:$0xf] %v472
    %505 = vst [vmem:[%s2 + $0x38] sm:$0xf] %v473
    %506 = vst [vmem:[%s2 + $0x3c] sm:$0xf] %v474
    %507 = vst [vmem:[%s2 + $0x40] sm:$0xf] %v475
    %508 = vst [vmem:[%s2 + $0x44] sm:$0xf] %v476
    %509 = vst [vmem:[%s2 + $0x48] sm:$0xf] %v477
    %510 = vst [vmem:[%s2 + $0x4c] sm:$0xf] %v478
    %511 = vst [vmem:[%s2 + $0x50] sm:$0xf] %v479
    %512 = vst [vmem:[%s2 + $0x54] sm:$0xf] %v480
    %513 = vst [vmem:[%s2 + $0x58] sm:$0xf] %v481
    %514 = vst [vmem:[%s2 + $0x5c] sm:$0xf] %v482
    %515 = vst [vmem:[%s2 + $0x60] sm:$0xf] %v483
    %516 = vst [vmem:[%s2 + $0x64] sm:$0xf] %v484
    %517 = vst [vmem:[%s2 + $0x68] sm:$0xf] %v485
    %518 = vst [vmem:[%s2 + $0x6c] sm:$0xf] %v486
    %519 = vst [vmem:[%s2 + $0x70] sm:$0xf] %v487
    %520 = vst [vmem:[%s2 + $0x74] sm:$0xf] %v488
    %521 = vst [vmem:[%s2 + $0x78] sm:$0xf] %v489
    %522 = vst [vmem:[%s2 + $0x7c] sm:$0xf] %v490
  $region17: #{appnp_2layer_with_gcn.8} parent=0 // pred_fallthru
    _
  // Predicated region
  $region18: #{appnp_2layer_with_gcn.8} parent=0 // pred_check
    _
  $region19: #{appnp_2layer_with_gcn.8} parent=0 // pred_check_branch
    %524 = sbr.rel (0) target = $region21
  $region20: #{appnp_2layer_with_gcn.8} parent=0 // pred_region
    _
  $region21: #{appnp_2layer_with_gcn.8} parent=0 // pred_fallthru
    _
  // Predicated region
  $region22: #{appnp_2layer_with_gcn.8} parent=0 // pred_check
    _
  $region23: #{appnp_2layer_with_gcn.8} parent=0 // pred_check_branch
    %526 = sbr.rel (0) target = $region25
  $region24: #{appnp_2layer_with_gcn.8} parent=0 // pred_region
    _
  $region25: #{appnp_2layer_with_gcn.8} parent=0 // pred_fallthru
    _

// kernel: appnp_2layer_with_gcn.12
$region0: #{appnp_2layer_with_gcn.12}
  #allocation0 [shape = 'u32[]', space=smem, size = 0x4, offset = 0x4, fixed_abs, tag = 'smem constant byte address 0x4 - core index']
  #allocation1 [shape = 'u32[72,128]{1,0:T(1,128)}', space=vmem, size = 0x9000, scoped, tag = 'internal scratch']
  #allocation2 [shape = 'f32[256,128]{1,0:T(8,128)}', space=vmem, size = 0x20000, scoped, tag = 'scratch operand']
  %s0 = inlined_call_operand.vmem [shape: bf16[256,256], index: 0, kind: input, shape index: {}]
  %s1 = inlined_call_operand.vmem [shape: bf16[256,128], index: 1, kind: input, shape index: {}, may-alias: {1,2}]
  %s2 = inlined_call_operand.vmem [shape: bf16[256,128], index: 2, kind: input, shape index: {}, may-alias: {1,2}]
  %s3 = inlined_call_operand.vmem [shape: bf16[256,128], index: 3, kind: output, shape index: {}]
  %s4 = sld [smem:[#allocation0]]
  $region30: #{appnp_2layer_with_gcn.12} parent=0
    _
  %s6 = ssub.s32 1, %s4
  %s7 = scalar_select 0, %s6, %s4
  // Predicated region
  $region2: #{appnp_2layer_with_gcn.12} parent=0 // pred_check
    _
  $region3: #{appnp_2layer_with_gcn.12} parent=0 // pred_check_branch
    %9 = sbr.rel (0) target = $region5
  $region4: #{appnp_2layer_with_gcn.12} parent=0 // pred_region
    _
  $region5: #{appnp_2layer_with_gcn.12} parent=0 // pred_fallthru
    _
  // Predicated region
  $region6: #{appnp_2layer_with_gcn.12} parent=0 // pred_check
    _
  $region7: #{appnp_2layer_with_gcn.12} parent=0 // pred_check_branch
    %11 = sbr.rel (0) target = $region9
  $region8: #{appnp_2layer_with_gcn.12} parent=0 // pred_region
    _
  $region9: #{appnp_2layer_with_gcn.12} parent=0 // pred_fallthru
    _
  // Predicated region
  $region10: #{appnp_2layer_with_gcn.12} parent=0 // pred_check
    _
  $region11: #{appnp_2layer_with_gcn.12} parent=0 // pred_check_branch
    %13 = sbr.rel (0) target = $region13
  $region12: #{appnp_2layer_with_gcn.12} parent=0 // pred_region
    _
  $region13: #{appnp_2layer_with_gcn.12} parent=0 // pred_fallthru
    _
  %p14 = scmp.eq.s32.totalorder 0, 0
  // Predicated region
  $region14: #{appnp_2layer_with_gcn.12} parent=0 // pred_check
    %p15 = pneg %p14
  $region15: #{appnp_2layer_with_gcn.12} parent=0 // pred_check_branch
    %17 = sbr.rel (%p15) target = $region17
  $region16: #{appnp_2layer_with_gcn.12} parent=0 // pred_region
    %18 = vst [vmem:[#allocation2] sm:$0xff] 0.0
    %19 = vst [vmem:[#allocation2 + $0x8] sm:$0xff] 0.0
    %20 = vst [vmem:[#allocation2 + $0x10] sm:$0xff] 0.0
    %21 = vst [vmem:[#allocation2 + $0x18] sm:$0xff] 0.0
    %22 = vst [vmem:[#allocation2 + $0x20] sm:$0xff] 0.0
    %23 = vst [vmem:[#allocation2 + $0x28] sm:$0xff] 0.0
    %24 = vst [vmem:[#allocation2 + $0x30] sm:$0xff] 0.0
    %25 = vst [vmem:[#allocation2 + $0x38] sm:$0xff] 0.0
    %26 = vst [vmem:[#allocation2 + $0x40] sm:$0xff] 0.0
    %27 = vst [vmem:[#allocation2 + $0x48] sm:$0xff] 0.0
    %28 = vst [vmem:[#allocation2 + $0x50] sm:$0xff] 0.0
    %29 = vst [vmem:[#allocation2 + $0x58] sm:$0xff] 0.0
    %30 = vst [vmem:[#allocation2 + $0x60] sm:$0xff] 0.0
    %31 = vst [vmem:[#allocation2 + $0x68] sm:$0xff] 0.0
    %32 = vst [vmem:[#allocation2 + $0x70] sm:$0xff] 0.0
    %33 = vst [vmem:[#allocation2 + $0x78] sm:$0xff] 0.0
    %34 = vst [vmem:[#allocation2 + $0x80] sm:$0xff] 0.0
    %35 = vst [vmem:[#allocation2 + $0x88] sm:$0xff] 0.0
    %36 = vst [vmem:[#allocation2 + $0x90] sm:$0xff] 0.0
    %37 = vst [vmem:[#allocation2 + $0x98] sm:$0xff] 0.0
    %38 = vst [vmem:[#allocation2 + $0xa0] sm:$0xff] 0.0
    %39 = vst [vmem:[#allocation2 + $0xa8] sm:$0xff] 0.0
    %40 = vst [vmem:[#allocation2 + $0xb0] sm:$0xff] 0.0
    %41 = vst [vmem:[#allocation2 + $0xb8] sm:$0xff] 0.0
    %42 = vst [vmem:[#allocation2 + $0xc0] sm:$0xff] 0.0
    %43 = vst [vmem:[#allocation2 + $0xc8] sm:$0xff] 0.0
    %44 = vst [vmem:[#allocation2 + $0xd0] sm:$0xff] 0.0
    %45 = vst [vmem:[#allocation2 + $0xd8] sm:$0xff] 0.0
    %46 = vst [vmem:[#allocation2 + $0xe0] sm:$0xff] 0.0
    %47 = vst [vmem:[#allocation2 + $0xe8] sm:$0xff] 0.0
    %48 = vst [vmem:[#allocation2 + $0xf0] sm:$0xff] 0.0
    %49 = vst [vmem:[#allocation2 + $0xf8] sm:$0xff] 0.0
  $region17: #{appnp_2layer_with_gcn.12} parent=0 // pred_fallthru
    _
  %s50 = smul.u32 0, 256
  %s51 = sshra.s32 %s50, 3
  %s52 = sand.u32 %s50, 7
  %s53 = smul.addr %s51, 4
  %s54 = scalar_lea.vmem %s1, %s53
  %v55 = vld [vmem:[%s54] sm:$0xf]
  %v56 = vld [vmem:[%s54 + $0x4] sm:$0xf]
  %v57 = vld [vmem:[%s54 + $0x8] sm:$0xf]
  %v58 = vld [vmem:[%s54 + $0xc] sm:$0xf]
  %v59 = vld [vmem:[%s54 + $0x10] sm:$0xf]
  %v60 = vld [vmem:[%s54 + $0x14] sm:$0xf]
  %v61 = vld [vmem:[%s54 + $0x18] sm:$0xf]
  %v62 = vld [vmem:[%s54 + $0x1c] sm:$0xf]
  %v63 = vld [vmem:[%s54 + $0x20] sm:$0xf]
  %v64 = vld [vmem:[%s54 + $0x24] sm:$0xf]
  %v65 = vld [vmem:[%s54 + $0x28] sm:$0xf]
  %v66 = vld [vmem:[%s54 + $0x2c] sm:$0xf]
  %v67 = vld [vmem:[%s54 + $0x30] sm:$0xf]
  %v68 = vld [vmem:[%s54 + $0x34] sm:$0xf]
  %v69 = vld [vmem:[%s54 + $0x38] sm:$0xf]
  %v70 = vld [vmem:[%s54 + $0x3c] sm:$0xf]
  %v71 = vld [vmem:[%s54 + $0x40] sm:$0xf]
  %v72 = vld [vmem:[%s54 + $0x44] sm:$0xf]
  %v73 = vld [vmem:[%s54 + $0x48] sm:$0xf]
  %v74 = vld [vmem:[%s54 + $0x4c] sm:$0xf]
  %v75 = vld [vmem:[%s54 + $0x50] sm:$0xf]
  %v76 = vld [vmem:[%s54 + $0x54] sm:$0xf]
  %v77 = vld [vmem:[%s54 + $0x58] sm:$0xf]
  %v78 = vld [vmem:[%s54 + $0x5c] sm:$0xf]
  %v79 = vld [vmem:[%s54 + $0x60] sm:$0xf]
  %v80 = vld [vmem:[%s54 + $0x64] sm:$0xf]
  %v81 = vld [vmem:[%s54 + $0x68] sm:$0xf]
  %v82 = vld [vmem:[%s54 + $0x6c] sm:$0xf]
  %v83 = vld [vmem:[%s54 + $0x70] sm:$0xf]
  %v84 = vld [vmem:[%s54 + $0x74] sm:$0xf]
  %v85 = vld [vmem:[%s54 + $0x78] sm:$0xf]
  %v86 = vld [vmem:[%s54 + $0x7c] sm:$0xf]
  %v87 = vld [vmem:[#allocation2] sm:$0xff]
  %v88 = vld [vmem:[#allocation2 + $0x8] sm:$0xff]
  %v89 = vld [vmem:[#allocation2 + $0x10] sm:$0xff]
  %v90 = vld [vmem:[#allocation2 + $0x18] sm:$0xff]
  %v91 = vld [vmem:[#allocation2 + $0x20] sm:$0xff]
  %v92 = vld [vmem:[#allocation2 + $0x28] sm:$0xff]
  %v93 = vld [vmem:[#allocation2 + $0x30] sm:$0xff]
  %v94 = vld [vmem:[#allocation2 + $0x38] sm:$0xff]
  %v95 = vld [vmem:[#allocation2 + $0x40] sm:$0xff]
  %v96 = vld [vmem:[#allocation2 + $0x48] sm:$0xff]
  %v97 = vld [vmem:[#allocation2 + $0x50] sm:$0xff]
  %v98 = vld [vmem:[#allocation2 + $0x58] sm:$0xff]
  %v99 = vld [vmem:[#allocation2 + $0x60] sm:$0xff]
  %v100 = vld [vmem:[#allocation2 + $0x68] sm:$0xff]
  %v101 = vld [vmem:[#allocation2 + $0x70] sm:$0xff]
  %v102 = vld [vmem:[#allocation2 + $0x78] sm:$0xff]
  %v103 = vld [vmem:[#allocation2 + $0x80] sm:$0xff]
  %v104 = vld [vmem:[#allocation2 + $0x88] sm:$0xff]
  %v105 = vld [vmem:[#allocation2 + $0x90] sm:$0xff]
  %v106 = vld [vmem:[#allocation2 + $0x98] sm:$0xff]
  %v107 = vld [vmem:[#allocation2 + $0xa0] sm:$0xff]
  %v108 = vld [vmem:[#allocation2 + $0xa8] sm:$0xff]
  %v109 = vld [vmem:[#allocation2 + $0xb0] sm:$0xff]
  %v110 = vld [vmem:[#allocation2 + $0xb8] sm:$0xff]
  %v111 = vld [vmem:[#allocation2 + $0xc0] sm:$0xff]
  %v112 = vld [vmem:[#allocation2 + $0xc8] sm:$0xff]
  %v113 = vld [vmem:[#allocation2 + $0xd0] sm:$0xff]
  %v114 = vld [vmem:[#allocation2 + $0xd8] sm:$0xff]
  %v115 = vld [vmem:[#allocation2 + $0xe0] sm:$0xff]
  %v116 = vld [vmem:[#allocation2 + $0xe8] sm:$0xff]
  %v117 = vld [vmem:[#allocation2 + $0xf0] sm:$0xff]
  %v118 = vld [vmem:[#allocation2 + $0xf8] sm:$0xff]
  %v119 = vld [vmem:[%s0] sm:$0xff]
  %v120 = vld [vmem:[%s0 + $0x8] sm:$0xff]
  %v121 = vld [vmem:[%s0 + $0x10] sm:$0xff]
  %v122 = vld [vmem:[%s0 + $0x18] sm:$0xff]
  %v123 = vld [vmem:[%s0 + $0x20] sm:$0xff]
  %v124 = vld [vmem:[%s0 + $0x28] sm:$0xff]
  %v125 = vld [vmem:[%s0 + $0x30] sm:$0xff]
  %v126 = vld [vmem:[%s0 + $0x38] sm:$0xff]
  %v127 = vld [vmem:[%s0 + $0x40] sm:$0xff]
  %v128 = vld [vmem:[%s0 + $0x48] sm:$0xff]
  %v129 = vld [vmem:[%s0 + $0x50] sm:$0xff]
  %v130 = vld [vmem:[%s0 + $0x58] sm:$0xff]
  %v131 = vld [vmem:[%s0 + $0x60] sm:$0xff]
  %v132 = vld [vmem:[%s0 + $0x68] sm:$0xff]
  %v133 = vld [vmem:[%s0 + $0x70] sm:$0xff]
  %v134 = vld [vmem:[%s0 + $0x78] sm:$0xff]
  %v135 = vld [vmem:[%s0 + $0x80] sm:$0xff]
  %v136 = vld [vmem:[%s0 + $0x88] sm:$0xff]
  %v137 = vld [vmem:[%s0 + $0x90] sm:$0xff]
  %v138 = vld [vmem:[%s0 + $0x98] sm:$0xff]
  %v139 = vld [vmem:[%s0 + $0xa0] sm:$0xff]
  %v140 = vld [vmem:[%s0 + $0xa8] sm:$0xff]
  %v141 = vld [vmem:[%s0 + $0xb0] sm:$0xff]
  %v142 = vld [vmem:[%s0 + $0xb8] sm:$0xff]
  %v143 = vld [vmem:[%s0 + $0xc0] sm:$0xff]
  %v144 = vld [vmem:[%s0 + $0xc8] sm:$0xff]
  %v145 = vld [vmem:[%s0 + $0xd0] sm:$0xff]
  %v146 = vld [vmem:[%s0 + $0xd8] sm:$0xff]
  %v147 = vld [vmem:[%s0 + $0xe0] sm:$0xff]
  %v148 = vld [vmem:[%s0 + $0xe8] sm:$0xff]
  %v149 = vld [vmem:[%s0 + $0xf0] sm:$0xff]
  %v150 = vld [vmem:[%s0 + $0xf8] sm:$0xff]
  %v183 = vunpack.c.l.b16 %v119
  %v184 = vunpack.c.h.b16 %v119
  %v185 = vunpack.c.l.b16 %v120
  %v186 = vunpack.c.h.b16 %v120
  %v187 = vunpack.c.l.b16 %v121
  %v188 = vunpack.c.h.b16 %v121
  %v189 = vunpack.c.l.b16 %v122
  %v190 = vunpack.c.h.b16 %v122
  %v191 = vunpack.c.l.b16 %v123
  %v192 = vunpack.c.h.b16 %v123
  %v193 = vunpack.c.l.b16 %v124
  %v194 = vunpack.c.h.b16 %v124
  %v195 = vunpack.c.l.b16 %v125
  %v196 = vunpack.c.h.b16 %v125
  %v197 = vunpack.c.l.b16 %v126
  %v198 = vunpack.c.h.b16 %v126
  %v199 = vunpack.c.l.b16 %v127
  %v200 = vunpack.c.h.b16 %v127
  %v201 = vunpack.c.l.b16 %v128
  %v202 = vunpack.c.h.b16 %v128
  %v203 = vunpack.c.l.b16 %v129
  %v204 = vunpack.c.h.b16 %v129
  %v205 = vunpack.c.l.b16 %v130
  %v206 = vunpack.c.h.b16 %v130
  %v207 = vunpack.c.l.b16 %v131
  %v208 = vunpack.c.h.b16 %v131
  %v209 = vunpack.c.l.b16 %v132
  %v210 = vunpack.c.h.b16 %v132
  %v211 = vunpack.c.l.b16 %v133
  %v212 = vunpack.c.h.b16 %v133
  %v213 = vunpack.c.l.b16 %v134
  %v214 = vunpack.c.h.b16 %v134
  %v215 = vunpack.c.l.b16 %v135
  %v216 = vunpack.c.h.b16 %v135
  %v217 = vunpack.c.l.b16 %v136
  %v218 = vunpack.c.h.b16 %v136
  %v219 = vunpack.c.l.b16 %v137
  %v220 = vunpack.c.h.b16 %v137
  %v221 = vunpack.c.l.b16 %v138
  %v222 = vunpack.c.h.b16 %v138
  %v223 = vunpack.c.l.b16 %v139
  %v224 = vunpack.c.h.b16 %v139
  %v225 = vunpack.c.l.b16 %v140
  %v226 = vunpack.c.h.b16 %v140
  %v227 = vunpack.c.l.b16 %v141
  %v228 = vunpack.c.h.b16 %v141
  %v229 = vunpack.c.l.b16 %v142
  %v230 = vunpack.c.h.b16 %v142
  %v231 = vunpack.c.l.b16 %v143
  %v232 = vunpack.c.h.b16 %v143
  %v233 = vunpack.c.l.b16 %v144
  %v234 = vunpack.c.h.b16 %v144
  %v235 = vunpack.c.l.b16 %v145
  %v236 = vunpack.c.h.b16 %v145
  %v237 = vunpack.c.l.b16 %v146
  %v238 = vunpack.c.h.b16 %v146
  %v239 = vunpack.c.l.b16 %v147
  %v240 = vunpack.c.h.b16 %v147
  %v241 = vunpack.c.l.b16 %v148
  %v242 = vunpack.c.h.b16 %v148
  %v243 = vunpack.c.l.b16 %v149
  %v244 = vunpack.c.h.b16 %v149
  %v245 = vunpack.c.l.b16 %v150
  %v246 = vunpack.c.h.b16 %v150
  %v247 = vpack.c.b16 %v185, %v183
  %v248 = vpack.c.b16 %v186, %v184
  %v249 = vpack.c.b16 %v189, %v187
  %v250 = vpack.c.b16 %v190, %v188
  %v251 = vpack.c.b16 %v193, %v191
  %v252 = vpack.c.b16 %v194, %v192
  %v253 = vpack.c.b16 %v197, %v195
  %v254 = vpack.c.b16 %v198, %v196
  %v255 = vpack.c.b16 %v201, %v199
  %v256 = vpack.c.b16 %v202, %v200
  %v257 = vpack.c.b16 %v205, %v203
  %v258 = vpack.c.b16 %v206, %v204
  %v259 = vpack.c.b16 %v209, %v207
  %v260 = vpack.c.b16 %v210, %v208
  %v261 = vpack.c.b16 %v213, %v211
  %v262 = vpack.c.b16 %v214, %v212
  %v263 = vpack.c.b16 %v217, %v215
  %v264 = vpack.c.b16 %v218, %v216
  %v265 = vpack.c.b16 %v221, %v219
  %v266 = vpack.c.b16 %v222, %v220
  %v267 = vpack.c.b16 %v225, %v223
  %v268 = vpack.c.b16 %v226, %v224
  %v269 = vpack.c.b16 %v229, %v227
  %v270 = vpack.c.b16 %v230, %v228
  %v271 = vpack.c.b16 %v233, %v231
  %v272 = vpack.c.b16 %v234, %v232
  %v273 = vpack.c.b16 %v237, %v235
  %v274 = vpack.c.b16 %v238, %v236
  %v275 = vpack.c.b16 %v241, %v239
  %v276 = vpack.c.b16 %v242, %v240
  %v277 = vpack.c.b16 %v245, %v243
  %v278 = vpack.c.b16 %v246, %v244
  %v343 = vunpack.c.l.b16 %v55
  %v344 = vunpack.c.l.b16 %v56
  %v345 = vunpack.c.l.b16 %v57
  %v346 = vunpack.c.l.b16 %v58
  %v347 = vunpack.c.l.b16 %v59
  %v348 = vunpack.c.l.b16 %v60
  %v349 = vunpack.c.l.b16 %v61
  %v350 = vunpack.c.l.b16 %v62
  %v351 = vunpack.c.l.b16 %v63
  %v352 = vunpack.c.l.b16 %v64
  %v353 = vunpack.c.l.b16 %v65
  %v354 = vunpack.c.l.b16 %v66
  %v355 = vunpack.c.l.b16 %v67
  %v356 = vunpack.c.l.b16 %v68
  %v357 = vunpack.c.l.b16 %v69
  %v358 = vunpack.c.l.b16 %v70
  %v359 = vunpack.c.l.b16 %v71
  %v360 = vunpack.c.l.b16 %v72
  %v361 = vunpack.c.l.b16 %v73
  %v362 = vunpack.c.l.b16 %v74
  %v363 = vunpack.c.l.b16 %v75
  %v364 = vunpack.c.l.b16 %v76
  %v365 = vunpack.c.l.b16 %v77
  %v366 = vunpack.c.l.b16 %v78
  %v367 = vunpack.c.l.b16 %v79
  %v368 = vunpack.c.l.b16 %v80
  %v369 = vunpack.c.l.b16 %v81
  %v370 = vunpack.c.l.b16 %v82
  %v371 = vunpack.c.l.b16 %v83
  %v372 = vunpack.c.l.b16 %v84
  %v373 = vunpack.c.l.b16 %v85
  %v374 = vunpack.c.l.b16 %v86
  %v375 = vpack.c.b16 %v344, %v343
  %v376 = vpack.c.b16 %v346, %v345
  %v377 = vpack.c.b16 %v348, %v347
  %v378 = vpack.c.b16 %v350, %v349
  %v379 = vpack.c.b16 %v352, %v351
  %v380 = vpack.c.b16 %v354, %v353
  %v381 = vpack.c.b16 %v356, %v355
  %v382 = vpack.c.b16 %v358, %v357
  %v383 = vpack.c.b16 %v360, %v359
  %v384 = vpack.c.b16 %v362, %v361
  %v385 = vpack.c.b16 %v364, %v363
  %v386 = vpack.c.b16 %v366, %v365
  %v387 = vpack.c.b16 %v368, %v367
  %v388 = vpack.c.b16 %v370, %v369
  %v389 = vpack.c.b16 %v372, %v371
  %v390 = vpack.c.b16 %v374, %v373
  %407 = vmatpush.bf16.msra.mxu0 %v382
  %408 = vmatpush.bf16.msra.mxu0 %v381
  %409 = vmatpush.bf16.msra.mxu0 %v380
  %410 = vmatpush.bf16.msra.mxu0 %v379
  %411 = vmatpush.bf16.msra.mxu0 %v378
  %412 = vmatpush.bf16.msra.mxu0 %v377
  %413 = vmatpush.bf16.msra.mxu0 %v376
  %414 = vmatpush.bf16.msra.mxu0 %v375
  %415 = vmatmul.bf16.gmra.mxu0 %v247
  %v416 = vpop.f32.mrf.mxu0
  %v417 = vadd.f32 0.0, %v416
  %v418 = vpop.f32.mrf.mxu0
  %v419 = vadd.f32 0.0, %v418
  %420 = vmatmul.bf16.gmra.mxu0 %v249
  %v421 = vpop.f32.mrf.mxu0
  %v422 = vadd.f32 0.0, %v421
  %v423 = vpop.f32.mrf.mxu0
  %v424 = vadd.f32 0.0, %v423
  %425 = vmatmul.bf16.gmra.mxu0 %v251
  %v426 = vpop.f32.mrf.mxu0
  %v427 = vadd.f32 0.0, %v426
  %v428 = vpop.f32.mrf.mxu0
  %v429 = vadd.f32 0.0, %v428
  %430 = vmatmul.bf16.gmra.mxu0 %v253
  %v431 = vpop.f32.mrf.mxu0
  %v432 = vadd.f32 0.0, %v431
  %v433 = vpop.f32.mrf.mxu0
  %v434 = vadd.f32 0.0, %v433
  %435 = vmatmul.bf16.gmra.mxu0 %v255
  %v436 = vpop.f32.mrf.mxu0
  %v437 = vadd.f32 0.0, %v436
  %v438 = vpop.f32.mrf.mxu0
  %v439 = vadd.f32 0.0, %v438
  %440 = vmatmul.bf16.gmra.mxu0 %v257
  %v441 = vpop.f32.mrf.mxu0
  %v442 = vadd.f32 0.0, %v441
  %v443 = vpop.f32.mrf.mxu0
  %v444 = vadd.f32 0.0, %v443
  %445 = vmatmul.bf16.gmra.mxu0 %v259
  %v446 = vpop.f32.mrf.mxu0
  %v447 = vadd.f32 0.0, %v446
  %v448 = vpop.f32.mrf.mxu0
  %v449 = vadd.f32 0.0, %v448
  %450 = vmatmul.bf16.gmra.mxu0 %v261
  %v451 = vpop.f32.mrf.mxu0
  %v452 = vadd.f32 0.0, %v451
  %v453 = vpop.f32.mrf.mxu0
  %v454 = vadd.f32 0.0, %v453
  %455 = vmatmul.bf16.gmra.mxu0 %v263
  %v456 = vpop.f32.mrf.mxu0
  %v457 = vadd.f32 0.0, %v456
  %v458 = vpop.f32.mrf.mxu0
  %v459 = vadd.f32 0.0, %v458
  %460 = vmatmul.bf16.gmra.mxu0 %v265
  %v461 = vpop.f32.mrf.mxu0
  %v462 = vadd.f32 0.0, %v461
  %v463 = vpop.f32.mrf.mxu0
  %v464 = vadd.f32 0.0, %v463
  %465 = vmatmul.bf16.gmra.mxu0 %v267
  %v466 = vpop.f32.mrf.mxu0
  %v467 = vadd.f32 0.0, %v466
  %v468 = vpop.f32.mrf.mxu0
  %v469 = vadd.f32 0.0, %v468
  %470 = vmatmul.bf16.gmra.mxu0 %v269
  %v471 = vpop.f32.mrf.mxu0
  %v472 = vadd.f32 0.0, %v471
  %v473 = vpop.f32.mrf.mxu0
  %v474 = vadd.f32 0.0, %v473
  %475 = vmatmul.bf16.gmra.mxu0 %v271
  %v476 = vpop.f32.mrf.mxu0
  %v477 = vadd.f32 0.0, %v476
  %v478 = vpop.f32.mrf.mxu0
  %v479 = vadd.f32 0.0, %v478
  %480 = vmatmul.bf16.gmra.mxu0 %v273
  %v481 = vpop.f32.mrf.mxu0
  %v482 = vadd.f32 0.0, %v481
  %v483 = vpop.f32.mrf.mxu0
  %v484 = vadd.f32 0.0, %v483
  %485 = vmatmul.bf16.gmra.mxu0 %v275
  %v486 = vpop.f32.mrf.mxu0
  %v487 = vadd.f32 0.0, %v486
  %v488 = vpop.f32.mrf.mxu0
  %v489 = vadd.f32 0.0, %v488
  %490 = vmatmul.bf16.gmra.mxu0 %v277
  %v491 = vpop.f32.mrf.mxu0
  %v492 = vadd.f32 0.0, %v491
  %v493 = vpop.f32.mrf.mxu0
  %v494 = vadd.f32 0.0, %v493
  %495 = vdwg.mxu0
  %496 = vmatpush.bf16.msra.mxu0 %v390
  %497 = vmatpush.bf16.msra.mxu0 %v389
  %498 = vmatpush.bf16.msra.mxu0 %v388
  %499 = vmatpush.bf16.msra.mxu0 %v387
  %500 = vmatpush.bf16.msra.mxu0 %v386
  %501 = vmatpush.bf16.msra.mxu0 %v385
  %502 = vmatpush.bf16.msra.mxu0 %v384
  %503 = vmatpush.bf16.msra.mxu0 %v383
  %504 = vmatmul.bf16.gmra.mxu0 %v248
  %v505 = vpop.f32.mrf.mxu0
  %v506 = vadd.f32 %v417, %v505
  %v507 = vpop.f32.mrf.mxu0
  %v508 = vadd.f32 %v419, %v507
  %509 = vmatmul.bf16.gmra.mxu0 %v250
  %v510 = vpop.f32.mrf.mxu0
  %v511 = vadd.f32 %v422, %v510
  %v512 = vpop.f32.mrf.mxu0
  %v513 = vadd.f32 %v424, %v512
  %514 = vmatmul.bf16.gmra.mxu0 %v252
  %v515 = vpop.f32.mrf.mxu0
  %v516 = vadd.f32 %v427, %v515
  %v517 = vpop.f32.mrf.mxu0
  %v518 = vadd.f32 %v429, %v517
  %519 = vmatmul.bf16.gmra.mxu0 %v254
  %v520 = vpop.f32.mrf.mxu0
  %v521 = vadd.f32 %v432, %v520
  %v522 = vpop.f32.mrf.mxu0
  %v523 = vadd.f32 %v434, %v522
  %524 = vmatmul.bf16.gmra.mxu0 %v256
  %v525 = vpop.f32.mrf.mxu0
  %v526 = vadd.f32 %v437, %v525
  %v527 = vpop.f32.mrf.mxu0
  %v528 = vadd.f32 %v439, %v527
  %529 = vmatmul.bf16.gmra.mxu0 %v258
  %v530 = vpop.f32.mrf.mxu0
  %v531 = vadd.f32 %v442, %v530
  %v532 = vpop.f32.mrf.mxu0
  %v533 = vadd.f32 %v444, %v532
  %534 = vmatmul.bf16.gmra.mxu0 %v260
  %v535 = vpop.f32.mrf.mxu0
  %v536 = vadd.f32 %v447, %v535
  %v537 = vpop.f32.mrf.mxu0
  %v538 = vadd.f32 %v449, %v537
  %539 = vmatmul.bf16.gmra.mxu0 %v262
  %v540 = vpop.f32.mrf.mxu0
  %v541 = vadd.f32 %v452, %v540
  %v542 = vpop.f32.mrf.mxu0
  %v543 = vadd.f32 %v454, %v542
  %544 = vmatmul.bf16.gmra.mxu0 %v264
  %v545 = vpop.f32.mrf.mxu0
  %v546 = vadd.f32 %v457, %v545
  %v547 = vpop.f32.mrf.mxu0
  %v548 = vadd.f32 %v459, %v547
  %549 = vmatmul.bf16.gmra.mxu0 %v266
  %v550 = vpop.f32.mrf.mxu0
  %v551 = vadd.f32 %v462, %v550
  %v552 = vpop.f32.mrf.mxu0
  %v553 = vadd.f32 %v464, %v552
  %554 = vmatmul.bf16.gmra.mxu0 %v268
  %v555 = vpop.f32.mrf.mxu0
  %v556 = vadd.f32 %v467, %v555
  %v557 = vpop.f32.mrf.mxu0
  %v558 = vadd.f32 %v469, %v557
  %559 = vmatmul.bf16.gmra.mxu0 %v270
  %v560 = vpop.f32.mrf.mxu0
  %v561 = vadd.f32 %v472, %v560
  %v562 = vpop.f32.mrf.mxu0
  %v563 = vadd.f32 %v474, %v562
  %564 = vmatmul.bf16.gmra.mxu0 %v272
  %v565 = vpop.f32.mrf.mxu0
  %v566 = vadd.f32 %v477, %v565
  %v567 = vpop.f32.mrf.mxu0
  %v568 = vadd.f32 %v479, %v567
  %569 = vmatmul.bf16.gmra.mxu0 %v274
  %v570 = vpop.f32.mrf.mxu0
  %v571 = vadd.f32 %v482, %v570
  %v572 = vpop.f32.mrf.mxu0
  %v573 = vadd.f32 %v484, %v572
  %574 = vmatmul.bf16.gmra.mxu0 %v276
  %v575 = vpop.f32.mrf.mxu0
  %v576 = vadd.f32 %v487, %v575
  %v577 = vpop.f32.mrf.mxu0
  %v578 = vadd.f32 %v489, %v577
  %579 = vmatmul.bf16.gmra.mxu0 %v278
  %v580 = vpop.f32.mrf.mxu0
  %v581 = vadd.f32 %v492, %v580
  %v582 = vpop.f32.mrf.mxu0
  %v583 = vadd.f32 %v494, %v582
  %584 = vdwg.mxu0
  %v585 = vadd.f32 %v87, %v506
  %v586 = vadd.f32 %v88, %v508
  %v587 = vadd.f32 %v89, %v511
  %v588 = vadd.f32 %v90, %v513
  %v589 = vadd.f32 %v91, %v516
  %v590 = vadd.f32 %v92, %v518
  %v591 = vadd.f32 %v93, %v521
  %v592 = vadd.f32 %v94, %v523
  %v593 = vadd.f32 %v95, %v526
  %v594 = vadd.f32 %v96, %v528
  %v595 = vadd.f32 %v97, %v531
  %v596 = vadd.f32 %v98, %v533
  %v597 = vadd.f32 %v99, %v536
  %v598 = vadd.f32 %v100, %v538
  %v599 = vadd.f32 %v101, %v541
  %v600 = vadd.f32 %v102, %v543
  %v601 = vadd.f32 %v103, %v546
  %v602 = vadd.f32 %v104, %v548
  %v603 = vadd.f32 %v105, %v551
  %v604 = vadd.f32 %v106, %v553
  %v605 = vadd.f32 %v107, %v556
  %v606 = vadd.f32 %v108, %v558
  %v607 = vadd.f32 %v109, %v561
  %v608 = vadd.f32 %v110, %v563
  %v609 = vadd.f32 %v111, %v566
  %v610 = vadd.f32 %v112, %v568
  %v611 = vadd.f32 %v113, %v571
  %v612 = vadd.f32 %v114, %v573
  %v613 = vadd.f32 %v115, %v576
  %v614 = vadd.f32 %v116, %v578
  %v615 = vadd.f32 %v117, %v581
  %v616 = vadd.f32 %v118, %v583
  %617 = vst [vmem:[#allocation2] sm:$0xff] %v585
  %618 = vst [vmem:[#allocation2 + $0x8] sm:$0xff] %v586
  %619 = vst [vmem:[#allocation2 + $0x10] sm:$0xff] %v587
  %620 = vst [vmem:[#allocation2 + $0x18] sm:$0xff] %v588
  %621 = vst [vmem:[#allocation2 + $0x20] sm:$0xff] %v589
  %622 = vst [vmem:[#allocation2 + $0x28] sm:$0xff] %v590
  %623 = vst [vmem:[#allocation2 + $0x30] sm:$0xff] %v591
  %624 = vst [vmem:[#allocation2 + $0x38] sm:$0xff] %v592
  %625 = vst [vmem:[#allocation2 + $0x40] sm:$0xff] %v593
  %626 = vst [vmem:[#allocation2 + $0x48] sm:$0xff] %v594
  %627 = vst [vmem:[#allocation2 + $0x50] sm:$0xff] %v595
  %628 = vst [vmem:[#allocation2 + $0x58] sm:$0xff] %v596
  %629 = vst [vmem:[#allocation2 + $0x60] sm:$0xff] %v597
  %630 = vst [vmem:[#allocation2 + $0x68] sm:$0xff] %v598
  %631 = vst [vmem:[#allocation2 + $0x70] sm:$0xff] %v599
  %632 = vst [vmem:[#allocation2 + $0x78] sm:$0xff] %v600
  %633 = vst [vmem:[#allocation2 + $0x80] sm:$0xff] %v601
  %634 = vst [vmem:[#allocation2 + $0x88] sm:$0xff] %v602
  %635 = vst [vmem:[#allocation2 + $0x90] sm:$0xff] %v603
  %636 = vst [vmem:[#allocation2 + $0x98] sm:$0xff] %v604
  %637 = vst [vmem:[#allocation2 + $0xa0] sm:$0xff] %v605
  %638 = vst [vmem:[#allocation2 + $0xa8] sm:$0xff] %v606
  %639 = vst [vmem:[#allocation2 + $0xb0] sm:$0xff] %v607
  %640 = vst [vmem:[#allocation2 + $0xb8] sm:$0xff] %v608
  %641 = vst [vmem:[#allocation2 + $0xc0] sm:$0xff] %v609
  %642 = vst [vmem:[#allocation2 + $0xc8] sm:$0xff] %v610
  %643 = vst [vmem:[#allocation2 + $0xd0] sm:$0xff] %v611
  %644 = vst [vmem:[#allocation2 + $0xd8] sm:$0xff] %v612
  %645 = vst [vmem:[#allocation2 + $0xe0] sm:$0xff] %v613
  %646 = vst [vmem:[#allocation2 + $0xe8] sm:$0xff] %v614
  %647 = vst [vmem:[#allocation2 + $0xf0] sm:$0xff] %v615
  %648 = vst [vmem:[#allocation2 + $0xf8] sm:$0xff] %v616
  // Predicated region
  $region18: #{appnp_2layer_with_gcn.12} parent=0 // pred_check
    %p649 = pneg %p14
  $region19: #{appnp_2layer_with_gcn.12} parent=0 // pred_check_branch
    %651 = sbr.rel (%p649) target = $region21
  $region20: #{appnp_2layer_with_gcn.12} parent=0 // pred_region
    %v652 = vld [vmem:[%s2] sm:$0xf]
    %v653 = vld [vmem:[%s2 + $0x4] sm:$0xf]
    %v654 = vld [vmem:[%s2 + $0x8] sm:$0xf]
    %v655 = vld [vmem:[%s2 + $0xc] sm:$0xf]
    %v656 = vld [vmem:[%s2 + $0x10] sm:$0xf]
    %v657 = vld [vmem:[%s2 + $0x14] sm:$0xf]
    %v658 = vld [vmem:[%s2 + $0x18] sm:$0xf]
    %v659 = vld [vmem:[%s2 + $0x1c] sm:$0xf]
    %v660 = vld [vmem:[%s2 + $0x20] sm:$0xf]
    %v661 = vld [vmem:[%s2 + $0x24] sm:$0xf]
    %v662 = vld [vmem:[%s2 + $0x28] sm:$0xf]
    %v663 = vld [vmem:[%s2 + $0x2c] sm:$0xf]
    %v664 = vld [vmem:[%s2 + $0x30] sm:$0xf]
    %v665 = vld [vmem:[%s2 + $0x34] sm:$0xf]
    %v666 = vld [vmem:[%s2 + $0x38] sm:$0xf]
    %v667 = vld [vmem:[%s2 + $0x3c] sm:$0xf]
    %v668 = vld [vmem:[%s2 + $0x40] sm:$0xf]
    %v669 = vld [vmem:[%s2 + $0x44] sm:$0xf]
    %v670 = vld [vmem:[%s2 + $0x48] sm:$0xf]
    %v671 = vld [vmem:[%s2 + $0x4c] sm:$0xf]
    %v672 = vld [vmem:[%s2 + $0x50] sm:$0xf]
    %v673 = vld [vmem:[%s2 + $0x54] sm:$0xf]
    %v674 = vld [vmem:[%s2 + $0x58] sm:$0xf]
    %v675 = vld [vmem:[%s2 + $0x5c] sm:$0xf]
    %v676 = vld [vmem:[%s2 + $0x60] sm:$0xf]
    %v677 = vld [vmem:[%s2 + $0x64] sm:$0xf]
    %v678 = vld [vmem:[%s2 + $0x68] sm:$0xf]
    %v679 = vld [vmem:[%s2 + $0x6c] sm:$0xf]
    %v680 = vld [vmem:[%s2 + $0x70] sm:$0xf]
    %v681 = vld [vmem:[%s2 + $0x74] sm:$0xf]
    %v682 = vld [vmem:[%s2 + $0x78] sm:$0xf]
    %v683 = vld [vmem:[%s2 + $0x7c] sm:$0xf]
    %v684 = vunpack.c.l.bf16 %v652
    %v685 = vunpack.c.l.bf16 %v653
    %v686 = vunpack.c.l.bf16 %v654
    %v687 = vunpack.c.l.bf16 %v655
    %v688 = vunpack.c.l.bf16 %v656
    %v689 = vunpack.c.l.bf16 %v657
    %v690 = vunpack.c.l.bf16 %v658
    %v691 = vunpack.c.l.bf16 %v659
    %v692 = vunpack.c.l.bf16 %v660
    %v693 = vunpack.c.l.bf16 %v661
    %v694 = vunpack.c.l.bf16 %v662
    %v695 = vunpack.c.l.bf16 %v663
    %v696 = vunpack.c.l.bf16 %v664
    %v697 = vunpack.c.l.bf16 %v665
    %v698 = vunpack.c.l.bf16 %v666
    %v699 = vunpack.c.l.bf16 %v667
    %v700 = vunpack.c.l.bf16 %v668
    %v701 = vunpack.c.l.bf16 %v669
    %v702 = vunpack.c.l.bf16 %v670
    %v703 = vunpack.c.l.bf16 %v671
    %v704 = vunpack.c.l.bf16 %v672
    %v705 = vunpack.c.l.bf16 %v673
    %v706 = vunpack.c.l.bf16 %v674
    %v707 = vunpack.c.l.bf16 %v675
    %v708 = vunpack.c.l.bf16 %v676
    %v709 = vunpack.c.l.bf16 %v677
    %v710 = vunpack.c.l.bf16 %v678
    %v711 = vunpack.c.l.bf16 %v679
    %v712 = vunpack.c.l.bf16 %v680
    %v713 = vunpack.c.l.bf16 %v681
    %v714 = vunpack.c.l.bf16 %v682
    %v715 = vunpack.c.l.bf16 %v683
    %v716 = vld [vmem:[#allocation2] sm:$0xff]
    %v717 = vld [vmem:[#allocation2 + $0x8] sm:$0xff]
    %v718 = vld [vmem:[#allocation2 + $0x10] sm:$0xff]
    %v719 = vld [vmem:[#allocation2 + $0x18] sm:$0xff]
    %v720 = vld [vmem:[#allocation2 + $0x20] sm:$0xff]
    %v721 = vld [vmem:[#allocation2 + $0x28] sm:$0xff]
    %v722 = vld [vmem:[#allocation2 + $0x30] sm:$0xff]
    %v723 = vld [vmem:[#allocation2 + $0x38] sm:$0xff]
    %v724 = vld [vmem:[#allocation2 + $0x40] sm:$0xff]
    %v725 = vld [vmem:[#allocation2 + $0x48] sm:$0xff]
    %v726 = vld [vmem:[#allocation2 + $0x50] sm:$0xff]
    %v727 = vld [vmem:[#allocation2 + $0x58] sm:$0xff]
    %v728 = vld [vmem:[#allocation2 + $0x60] sm:$0xff]
    %v729 = vld [vmem:[#allocation2 + $0x68] sm:$0xff]
    %v730 = vld [vmem:[#allocation2 + $0x70] sm:$0xff]
    %v731 = vld [vmem:[#allocation2 + $0x78] sm:$0xff]
    %v732 = vld [vmem:[#allocation2 + $0x80] sm:$0xff]
    %v733 = vld [vmem:[#allocation2 + $0x88] sm:$0xff]
    %v734 = vld [vmem:[#allocation2 + $0x90] sm:$0xff]
    %v735 = vld [vmem:[#allocation2 + $0x98] sm:$0xff]
    %v736 = vld [vmem:[#allocation2 + $0xa0] sm:$0xff]
    %v737 = vld [vmem:[#allocation2 + $0xa8] sm:$0xff]
    %v738 = vld [vmem:[#allocation2 + $0xb0] sm:$0xff]
    %v739 = vld [vmem:[#allocation2 + $0xb8] sm:$0xff]
    %v740 = vld [vmem:[#allocation2 + $0xc0] sm:$0xff]
    %v741 = vld [vmem:[#allocation2 + $0xc8] sm:$0xff]
    %v742 = vld [vmem:[#allocation2 + $0xd0] sm:$0xff]
    %v743 = vld [vmem:[#allocation2 + $0xd8] sm:$0xff]
    %v744 = vld [vmem:[#allocation2 + $0xe0] sm:$0xff]
    %v745 = vld [vmem:[#allocation2 + $0xe8] sm:$0xff]
    %v746 = vld [vmem:[#allocation2 + $0xf0] sm:$0xff]
    %v747 = vld [vmem:[#allocation2 + $0xf8] sm:$0xff]
    %v748 = vmul.f32 %v716, 0.9
    %v749 = vmul.f32 %v717, 0.9
    %v750 = vmul.f32 %v718, 0.9
    %v751 = vmul.f32 %v719, 0.9
    %v752 = vmul.f32 %v720, 0.9
    %v753 = vmul.f32 %v721, 0.9
    %v754 = vmul.f32 %v722, 0.9
    %v755 = vmul.f32 %v723, 0.9
    %v756 = vmul.f32 %v724, 0.9
    %v757 = vmul.f32 %v725, 0.9
    %v758 = vmul.f32 %v726, 0.9
    %v759 = vmul.f32 %v727, 0.9
    %v760 = vmul.f32 %v728, 0.9
    %v761 = vmul.f32 %v729, 0.9
    %v762 = vmul.f32 %v730, 0.9
    %v763 = vmul.f32 %v731, 0.9
    %v764 = vmul.f32 %v732, 0.9
    %v765 = vmul.f32 %v733, 0.9
    %v766 = vmul.f32 %v734, 0.9
    %v767 = vmul.f32 %v735, 0.9
    %v768 = vmul.f32 %v736, 0.9
    %v769 = vmul.f32 %v737, 0.9
    %v770 = vmul.f32 %v738, 0.9
    %v771 = vmul.f32 %v739, 0.9
    %v772 = vmul.f32 %v740, 0.9
    %v773 = vmul.f32 %v741, 0.9
    %v774 = vmul.f32 %v742, 0.9
    %v775 = vmul.f32 %v743, 0.9
    %v776 = vmul.f32 %v744, 0.9
    %v777 = vmul.f32 %v745, 0.9
    %v778 = vmul.f32 %v746, 0.9
    %v779 = vmul.f32 %v747, 0.9
    %v780 = vmul.f32 %v684, 0.1
    %v781 = vmul.f32 %v685, 0.1
    %v782 = vmul.f32 %v686, 0.1
    %v783 = vmul.f32 %v687, 0.1
    %v784 = vmul.f32 %v688, 0.1
    %v785 = vmul.f32 %v689, 0.1
    %v786 = vmul.f32 %v690, 0.1
    %v787 = vmul.f32 %v691, 0.1
    %v788 = vmul.f32 %v692, 0.1
    %v789 = vmul.f32 %v693, 0.1
    %v790 = vmul.f32 %v694, 0.1
    %v791 = vmul.f32 %v695, 0.1
    %v792 = vmul.f32 %v696, 0.1
    %v793 = vmul.f32 %v697, 0.1
    %v794 = vmul.f32 %v698, 0.1
    %v795 = vmul.f32 %v699, 0.1
    %v796 = vmul.f32 %v700, 0.1
    %v797 = vmul.f32 %v701, 0.1
    %v798 = vmul.f32 %v702, 0.1
    %v799 = vmul.f32 %v703, 0.1
    %v800 = vmul.f32 %v704, 0.1
    %v801 = vmul.f32 %v705, 0.1
    %v802 = vmul.f32 %v706, 0.1
    %v803 = vmul.f32 %v707, 0.1
    %v804 = vmul.f32 %v708, 0.1
    %v805 = vmul.f32 %v709, 0.1
    %v806 = vmul.f32 %v710, 0.1
    %v807 = vmul.f32 %v711, 0.1
    %v808 = vmul.f32 %v712, 0.1
    %v809 = vmul.f32 %v713, 0.1
    %v810 = vmul.f32 %v714, 0.1
    %v811 = vmul.f32 %v715, 0.1
    %v812 = vadd.f32 %v748, %v780
    %v813 = vadd.f32 %v749, %v781
    %v814 = vadd.f32 %v750, %v782
    %v815 = vadd.f32 %v751, %v783
    %v816 = vadd.f32 %v752, %v784
    %v817 = vadd.f32 %v753, %v785
    %v818 = vadd.f32 %v754, %v786
    %v819 = vadd.f32 %v755, %v787
    %v820 = vadd.f32 %v756, %v788
    %v821 = vadd.f32 %v757, %v789
    %v822 = vadd.f32 %v758, %v790
    %v823 = vadd.f32 %v759, %v791
    %v824 = vadd.f32 %v760, %v792
    %v825 = vadd.f32 %v761, %v793
    %v826 = vadd.f32 %v762, %v794
    %v827 = vadd.f32 %v763, %v795
    %v828 = vadd.f32 %v764, %v796
    %v829 = vadd.f32 %v765, %v797
    %v830 = vadd.f32 %v766, %v798
    %v831 = vadd.f32 %v767, %v799
    %v832 = vadd.f32 %v768, %v800
    %v833 = vadd.f32 %v769, %v801
    %v834 = vadd.f32 %v770, %v802
    %v835 = vadd.f32 %v771, %v803
    %v836 = vadd.f32 %v772, %v804
    %v837 = vadd.f32 %v773, %v805
    %v838 = vadd.f32 %v774, %v806
    %v839 = vadd.f32 %v775, %v807
    %v840 = vadd.f32 %v776, %v808
    %v841 = vadd.f32 %v777, %v809
    %v842 = vadd.f32 %v778, %v810
    %v843 = vadd.f32 %v779, %v811
    %v844 = vpack.c.bf16 %v812, %v812
    %v845 = vpack.c.bf16 %v813, %v813
    %v846 = vpack.c.bf16 %v814, %v814
    %v847 = vpack.c.bf16 %v815, %v815
    %v848 = vpack.c.bf16 %v816, %v816
    %v849 = vpack.c.bf16 %v817, %v817
    %v850 = vpack.c.bf16 %v818, %v818
    %v851 = vpack.c.bf16 %v819, %v819
    %v852 = vpack.c.bf16 %v820, %v820
    %v853 = vpack.c.bf16 %v821, %v821
    %v854 = vpack.c.bf16 %v822, %v822
    %v855 = vpack.c.bf16 %v823, %v823
    %v856 = vpack.c.bf16 %v824, %v824
    %v857 = vpack.c.bf16 %v825, %v825
    %v858 = vpack.c.bf16 %v826, %v826
    %v859 = vpack.c.bf16 %v827, %v827
    %v860 = vpack.c.bf16 %v828, %v828
    %v861 = vpack.c.bf16 %v829, %v829
    %v862 = vpack.c.bf16 %v830, %v830
    %v863 = vpack.c.bf16 %v831, %v831
    %v864 = vpack.c.bf16 %v832, %v832
    %v865 = vpack.c.bf16 %v833, %v833
    %v866 = vpack.c.bf16 %v834, %v834
    %v867 = vpack.c.bf16 %v835, %v835
    %v868 = vpack.c.bf16 %v836, %v836
    %v869 = vpack.c.bf16 %v837, %v837
    %v870 = vpack.c.bf16 %v838, %v838
    %v871 = vpack.c.bf16 %v839, %v839
    %v872 = vpack.c.bf16 %v840, %v840
    %v873 = vpack.c.bf16 %v841, %v841
    %v874 = vpack.c.bf16 %v842, %v842
    %v875 = vpack.c.bf16 %v843, %v843
    %876 = vst [vmem:[%s3] sm:$0xf] %v844
    %877 = vst [vmem:[%s3 + $0x4] sm:$0xf] %v845
    %878 = vst [vmem:[%s3 + $0x8] sm:$0xf] %v846
    %879 = vst [vmem:[%s3 + $0xc] sm:$0xf] %v847
    %880 = vst [vmem:[%s3 + $0x10] sm:$0xf] %v848
    %881 = vst [vmem:[%s3 + $0x14] sm:$0xf] %v849
    %882 = vst [vmem:[%s3 + $0x18] sm:$0xf] %v850
    %883 = vst [vmem:[%s3 + $0x1c] sm:$0xf] %v851
    %884 = vst [vmem:[%s3 + $0x20] sm:$0xf] %v852
    %885 = vst [vmem:[%s3 + $0x24] sm:$0xf] %v853
    %886 = vst [vmem:[%s3 + $0x28] sm:$0xf] %v854
    %887 = vst [vmem:[%s3 + $0x2c] sm:$0xf] %v855
    %888 = vst [vmem:[%s3 + $0x30] sm:$0xf] %v856
    %889 = vst [vmem:[%s3 + $0x34] sm:$0xf] %v857
    %890 = vst [vmem:[%s3 + $0x38] sm:$0xf] %v858
    %891 = vst [vmem:[%s3 + $0x3c] sm:$0xf] %v859
    %892 = vst [vmem:[%s3 + $0x40] sm:$0xf] %v860
    %893 = vst [vmem:[%s3 + $0x44] sm:$0xf] %v861
    %894 = vst [vmem:[%s3 + $0x48] sm:$0xf] %v862
    %895 = vst [vmem:[%s3 + $0x4c] sm:$0xf] %v863
    %896 = vst [vmem:[%s3 + $0x50] sm:$0xf] %v864
    %897 = vst [vmem:[%s3 + $0x54] sm:$0xf] %v865
    %898 = vst [vmem:[%s3 + $0x58] sm:$0xf] %v866
    %899 = vst [vmem:[%s3 + $0x5c] sm:$0xf] %v867
    %900 = vst [vmem:[%s3 + $0x60] sm:$0xf] %v868
    %901 = vst [vmem:[%s3 + $0x64] sm:$0xf] %v869
    %902 = vst [vmem:[%s3 + $0x68] sm:$0xf] %v870
    %903 = vst [vmem:[%s3 + $0x6c] sm:$0xf] %v871
    %904 = vst [vmem:[%s3 + $0x70] sm:$0xf] %v872
    %905 = vst [vmem:[%s3 + $0x74] sm:$0xf] %v873
    %906 = vst [vmem:[%s3 + $0x78] sm:$0xf] %v874
    %907 = vst [vmem:[%s3 + $0x7c] sm:$0xf] %v875
  $region21: #{appnp_2layer_with_gcn.12} parent=0 // pred_fallthru
    _
  // Predicated region
  $region22: #{appnp_2layer_with_gcn.12} parent=0 // pred_check
    _
  $region23: #{appnp_2layer_with_gcn.12} parent=0 // pred_check_branch
    %909 = sbr.rel (0) target = $region25
  $region24: #{appnp_2layer_with_gcn.12} parent=0 // pred_region
    _
  $region25: #{appnp_2layer_with_gcn.12} parent=0 // pred_fallthru
    _
  // Predicated region
  $region26: #{appnp_2layer_with_gcn.12} parent=0 // pred_check
    _
  $region27: #{appnp_2layer_with_gcn.12} parent=0 // pred_check_branch
    %911 = sbr.rel (0) target = $region29
  $region28: #{appnp_2layer_with_gcn.12} parent=0 // pred_region
    _
  $region29: #{appnp_2layer_with_gcn.12} parent=0 // pred_fallthru
    _

// kernel: appnp_2layer_with_gcn.15
$region0: #{appnp_2layer_with_gcn.15}
  #allocation0 [shape = 'u32[]', space=smem, size = 0x4, offset = 0x4, fixed_abs, tag = 'smem constant byte address 0x4 - core index']
  #allocation1 [shape = 'u32[72,128]{1,0:T(1,128)}', space=vmem, size = 0x9000, scoped, tag = 'internal scratch']
  #allocation2 [shape = 'f32[256,128]{1,0:T(8,128)}', space=vmem, size = 0x20000, scoped, tag = 'scratch operand']
  %s0 = inlined_call_operand.vmem [shape: bf16[256,256], index: 0, kind: input, shape index: {}]
  %s1 = inlined_call_operand.vmem [shape: bf16[256,128], index: 1, kind: input, shape index: {}]
  %s2 = inlined_call_operand.vmem [shape: bf16[256,128], index: 2, kind: input, shape index: {}]
  %s3 = inlined_call_operand.vmem [shape: bf16[128,128], index: 3, kind: input, shape index: {}]
  %s4 = inlined_call_operand.vmem [shape: f32[1,128], index: 4, kind: input, shape index: {}]
  %s5 = inlined_call_operand.vmem [shape: f32[256,128], index: 5, kind: output, shape index: {}]
  %s6 = sld [smem:[#allocation0]]
  $region38: #{appnp_2layer_with_gcn.15} parent=0
    _
  %s8 = ssub.s32 1, %s6
  %s9 = scalar_select 0, %s8, %s6
  // Predicated region
  $region2: #{appnp_2layer_with_gcn.15} parent=0 // pred_check
    _
  $region3: #{appnp_2layer_with_gcn.15} parent=0 // pred_check_branch
    %11 = sbr.rel (0) target = $region5
  $region4: #{appnp_2layer_with_gcn.15} parent=0 // pred_region
    _
  $region5: #{appnp_2layer_with_gcn.15} parent=0 // pred_fallthru
    _
  // Predicated region
  $region6: #{appnp_2layer_with_gcn.15} parent=0 // pred_check
    _
  $region7: #{appnp_2layer_with_gcn.15} parent=0 // pred_check_branch
    %13 = sbr.rel (0) target = $region9
  $region8: #{appnp_2layer_with_gcn.15} parent=0 // pred_region
    _
  $region9: #{appnp_2layer_with_gcn.15} parent=0 // pred_fallthru
    _
  // Predicated region
  $region10: #{appnp_2layer_with_gcn.15} parent=0 // pred_check
    _
  $region11: #{appnp_2layer_with_gcn.15} parent=0 // pred_check_branch
    %15 = sbr.rel (0) target = $region13
  $region12: #{appnp_2layer_with_gcn.15} parent=0 // pred_region
    _
  $region13: #{appnp_2layer_with_gcn.15} parent=0 // pred_fallthru
    _
  // Predicated region
  $region14: #{appnp_2layer_with_gcn.15} parent=0 // pred_check
    _
  $region15: #{appnp_2layer_with_gcn.15} parent=0 // pred_check_branch
    %17 = sbr.rel (0) target = $region17
  $region16: #{appnp_2layer_with_gcn.15} parent=0 // pred_region
    _
  $region17: #{appnp_2layer_with_gcn.15} parent=0 // pred_fallthru
    _
  // Predicated region
  $region18: #{appnp_2layer_with_gcn.15} parent=0 // pred_check
    _
  $region19: #{appnp_2layer_with_gcn.15} parent=0 // pred_check_branch
    %19 = sbr.rel (0) target = $region21
  $region20: #{appnp_2layer_with_gcn.15} parent=0 // pred_region
    _
  $region21: #{appnp_2layer_with_gcn.15} parent=0 // pred_fallthru
    _
  %p20 = scmp.eq.s32.totalorder 0, 0
  // Predicated region
  $region22: #{appnp_2layer_with_gcn.15} parent=0 // pred_check
    %p21 = pneg %p20
  $region23: #{appnp_2layer_with_gcn.15} parent=0 // pred_check_branch
    %23 = sbr.rel (%p21) target = $region25
  $region24: #{appnp_2layer_with_gcn.15} parent=0 // pred_region
    %24 = vst [vmem:[#allocation2] sm:$0xff] 0.0
    %25 = vst [vmem:[#allocation2 + $0x8] sm:$0xff] 0.0
    %26 = vst [vmem:[#allocation2 + $0x10] sm:$0xff] 0.0
    %27 = vst [vmem:[#allocation2 + $0x18] sm:$0xff] 0.0
    %28 = vst [vmem:[#allocation2 + $0x20] sm:$0xff] 0.0
    %29 = vst [vmem:[#allocation2 + $0x28] sm:$0xff] 0.0
    %30 = vst [vmem:[#allocation2 + $0x30] sm:$0xff] 0.0
    %31 = vst [vmem:[#allocation2 + $0x38] sm:$0xff] 0.0
    %32 = vst [vmem:[#allocation2 + $0x40] sm:$0xff] 0.0
    %33 = vst [vmem:[#allocation2 + $0x48] sm:$0xff] 0.0
    %34 = vst [vmem:[#allocation2 + $0x50] sm:$0xff] 0.0
    %35 = vst [vmem:[#allocation2 + $0x58] sm:$0xff] 0.0
    %36 = vst [vmem:[#allocation2 + $0x60] sm:$0xff] 0.0
    %37 = vst [vmem:[#allocation2 + $0x68] sm:$0xff] 0.0
    %38 = vst [vmem:[#allocation2 + $0x70] sm:$0xff] 0.0
    %39 = vst [vmem:[#allocation2 + $0x78] sm:$0xff] 0.0
    %40 = vst [vmem:[#allocation2 + $0x80] sm:$0xff] 0.0
    %41 = vst [vmem:[#allocation2 + $0x88] sm:$0xff] 0.0
    %42 = vst [vmem:[#allocation2 + $0x90] sm:$0xff] 0.0
    %43 = vst [vmem:[#allocation2 + $0x98] sm:$0xff] 0.0
    %44 = vst [vmem:[#allocation2 + $0xa0] sm:$0xff] 0.0
    %45 = vst [vmem:[#allocation2 + $0xa8] sm:$0xff] 0.0
    %46 = vst [vmem:[#allocation2 + $0xb0] sm:$0xff] 0.0
    %47 = vst [vmem:[#allocation2 + $0xb8] sm:$0xff] 0.0
    %48 = vst [vmem:[#allocation2 + $0xc0] sm:$0xff] 0.0
    %49 = vst [vmem:[#allocation2 + $0xc8] sm:$0xff] 0.0
    %50 = vst [vmem:[#allocation2 + $0xd0] sm:$0xff] 0.0
    %51 = vst [vmem:[#allocation2 + $0xd8] sm:$0xff] 0.0
    %52 = vst [vmem:[#allocation2 + $0xe0] sm:$0xff] 0.0
    %53 = vst [vmem:[#allocation2 + $0xe8] sm:$0xff] 0.0
    %54 = vst [vmem:[#allocation2 + $0xf0] sm:$0xff] 0.0
    %55 = vst [vmem:[#allocation2 + $0xf8] sm:$0xff] 0.0
  $region25: #{appnp_2layer_with_gcn.15} parent=0 // pred_fallthru
    _
  %s56 = smul.u32 0, 256
  %s57 = sshra.s32 %s56, 3
  %s58 = sand.u32 %s56, 7
  %s59 = smul.addr %s57, 4
  %s60 = scalar_lea.vmem %s1, %s59
  %v61 = vld [vmem:[%s60] sm:$0xf]
  %v62 = vld [vmem:[%s60 + $0x4] sm:$0xf]
  %v63 = vld [vmem:[%s60 + $0x8] sm:$0xf]
  %v64 = vld [vmem:[%s60 + $0xc] sm:$0xf]
  %v65 = vld [vmem:[%s60 + $0x10] sm:$0xf]
  %v66 = vld [vmem:[%s60 + $0x14] sm:$0xf]
  %v67 = vld [vmem:[%s60 + $0x18] sm:$0xf]
  %v68 = vld [vmem:[%s60 + $0x1c] sm:$0xf]
  %v69 = vld [vmem:[%s60 + $0x20] sm:$0xf]
  %v70 = vld [vmem:[%s60 + $0x24] sm:$0xf]
  %v71 = vld [vmem:[%s60 + $0x28] sm:$0xf]
  %v72 = vld [vmem:[%s60 + $0x2c] sm:$0xf]
  %v73 = vld [vmem:[%s60 + $0x30] sm:$0xf]
  %v74 = vld [vmem:[%s60 + $0x34] sm:$0xf]
  %v75 = vld [vmem:[%s60 + $0x38] sm:$0xf]
  %v76 = vld [vmem:[%s60 + $0x3c] sm:$0xf]
  %v77 = vld [vmem:[%s60 + $0x40] sm:$0xf]
  %v78 = vld [vmem:[%s60 + $0x44] sm:$0xf]
  %v79 = vld [vmem:[%s60 + $0x48] sm:$0xf]
  %v80 = vld [vmem:[%s60 + $0x4c] sm:$0xf]
  %v81 = vld [vmem:[%s60 + $0x50] sm:$0xf]
  %v82 = vld [vmem:[%s60 + $0x54] sm:$0xf]
  %v83 = vld [vmem:[%s60 + $0x58] sm:$0xf]
  %v84 = vld [vmem:[%s60 + $0x5c] sm:$0xf]
  %v85 = vld [vmem:[%s60 + $0x60] sm:$0xf]
  %v86 = vld [vmem:[%s60 + $0x64] sm:$0xf]
  %v87 = vld [vmem:[%s60 + $0x68] sm:$0xf]
  %v88 = vld [vmem:[%s60 + $0x6c] sm:$0xf]
  %v89 = vld [vmem:[%s60 + $0x70] sm:$0xf]
  %v90 = vld [vmem:[%s60 + $0x74] sm:$0xf]
  %v91 = vld [vmem:[%s60 + $0x78] sm:$0xf]
  %v92 = vld [vmem:[%s60 + $0x7c] sm:$0xf]
  %v93 = vld [vmem:[#allocation2] sm:$0xff]
  %v94 = vld [vmem:[#allocation2 + $0x8] sm:$0xff]
  %v95 = vld [vmem:[#allocation2 + $0x10] sm:$0xff]
  %v96 = vld [vmem:[#allocation2 + $0x18] sm:$0xff]
  %v97 = vld [vmem:[#allocation2 + $0x20] sm:$0xff]
  %v98 = vld [vmem:[#allocation2 + $0x28] sm:$0xff]
  %v99 = vld [vmem:[#allocation2 + $0x30] sm:$0xff]
  %v100 = vld [vmem:[#allocation2 + $0x38] sm:$0xff]
  %v101 = vld [vmem:[#allocation2 + $0x40] sm:$0xff]
  %v102 = vld [vmem:[#allocation2 + $0x48] sm:$0xff]
  %v103 = vld [vmem:[#allocation2 + $0x50] sm:$0xff]
  %v104 = vld [vmem:[#allocation2 + $0x58] sm:$0xff]
  %v105 = vld [vmem:[#allocation2 + $0x60] sm:$0xff]
  %v106 = vld [vmem:[#allocation2 + $0x68] sm:$0xff]
  %v107 = vld [vmem:[#allocation2 + $0x70] sm:$0xff]
  %v108 = vld [vmem:[#allocation2 + $0x78] sm:$0xff]
  %v109 = vld [vmem:[#allocation2 + $0x80] sm:$0xff]
  %v110 = vld [vmem:[#allocation2 + $0x88] sm:$0xff]
  %v111 = vld [vmem:[#allocation2 + $0x90] sm:$0xff]
  %v112 = vld [vmem:[#allocation2 + $0x98] sm:$0xff]
  %v113 = vld [vmem:[#allocation2 + $0xa0] sm:$0xff]
  %v114 = vld [vmem:[#allocation2 + $0xa8] sm:$0xff]
  %v115 = vld [vmem:[#allocation2 + $0xb0] sm:$0xff]
  %v116 = vld [vmem:[#allocation2 + $0xb8] sm:$0xff]
  %v117 = vld [vmem:[#allocation2 + $0xc0] sm:$0xff]
  %v118 = vld [vmem:[#allocation2 + $0xc8] sm:$0xff]
  %v119 = vld [vmem:[#allocation2 + $0xd0] sm:$0xff]
  %v120 = vld [vmem:[#allocation2 + $0xd8] sm:$0xff]
  %v121 = vld [vmem:[#allocation2 + $0xe0] sm:$0xff]
  %v122 = vld [vmem:[#allocation2 + $0xe8] sm:$0xff]
  %v123 = vld [vmem:[#allocation2 + $0xf0] sm:$0xff]
  %v124 = vld [vmem:[#allocation2 + $0xf8] sm:$0xff]
  %v125 = vld [vmem:[%s0] sm:$0xff]
  %v126 = vld [vmem:[%s0 + $0x8] sm:$0xff]
  %v127 = vld [vmem:[%s0 + $0x10] sm:$0xff]
  %v128 = vld [vmem:[%s0 + $0x18] sm:$0xff]
  %v129 = vld [vmem:[%s0 + $0x20] sm:$0xff]
  %v130 = vld [vmem:[%s0 + $0x28] sm:$0xff]
  %v131 = vld [vmem:[%s0 + $0x30] sm:$0xff]
  %v132 = vld [vmem:[%s0 + $0x38] sm:$0xff]
  %v133 = vld [vmem:[%s0 + $0x40] sm:$0xff]
  %v134 = vld [vmem:[%s0 + $0x48] sm:$0xff]
  %v135 = vld [vmem:[%s0 + $0x50] sm:$0xff]
  %v136 = vld [vmem:[%s0 + $0x58] sm:$0xff]
  %v137 = vld [vmem:[%s0 + $0x60] sm:$0xff]
  %v138 = vld [vmem:[%s0 + $0x68] sm:$0xff]
  %v139 = vld [vmem:[%s0 + $0x70] sm:$0xff]
  %v140 = vld [vmem:[%s0 + $0x78] sm:$0xff]
  %v141 = vld [vmem:[%s0 + $0x80] sm:$0xff]
  %v142 = vld [vmem:[%s0 + $0x88] sm:$0xff]
  %v143 = vld [vmem:[%s0 + $0x90] sm:$0xff]
  %v144 = vld [vmem:[%s0 + $0x98] sm:$0xff]
  %v145 = vld [vmem:[%s0 + $0xa0] sm:$0xff]
  %v146 = vld [vmem:[%s0 + $0xa8] sm:$0xff]
  %v147 = vld [vmem:[%s0 + $0xb0] sm:$0xff]
  %v148 = vld [vmem:[%s0 + $0xb8] sm:$0xff]
  %v149 = vld [vmem:[%s0 + $0xc0] sm:$0xff]
  %v150 = vld [vmem:[%s0 + $0xc8] sm:$0xff]
  %v151 = vld [vmem:[%s0 + $0xd0] sm:$0xff]
  %v152 = vld [vmem:[%s0 + $0xd8] sm:$0xff]
  %v153 = vld [vmem:[%s0 + $0xe0] sm:$0xff]
  %v154 = vld [vmem:[%s0 + $0xe8] sm:$0xff]
  %v155 = vld [vmem:[%s0 + $0xf0] sm:$0xff]
  %v156 = vld [vmem:[%s0 + $0xf8] sm:$0xff]
  %v189 = vunpack.c.l.b16 %v125
  %v190 = vunpack.c.h.b16 %v125
  %v191 = vunpack.c.l.b16 %v126
  %v192 = vunpack.c.h.b16 %v126
  %v193 = vunpack.c.l.b16 %v127
  %v194 = vunpack.c.h.b16 %v127
  %v195 = vunpack.c.l.b16 %v128
  %v196 = vunpack.c.h.b16 %v128
  %v197 = vunpack.c.l.b16 %v129
  %v198 = vunpack.c.h.b16 %v129
  %v199 = vunpack.c.l.b16 %v130
  %v200 = vunpack.c.h.b16 %v130
  %v201 = vunpack.c.l.b16 %v131
  %v202 = vunpack.c.h.b16 %v131
  %v203 = vunpack.c.l.b16 %v132
  %v204 = vunpack.c.h.b16 %v132
  %v205 = vunpack.c.l.b16 %v133
  %v206 = vunpack.c.h.b16 %v133
  %v207 = vunpack.c.l.b16 %v134
  %v208 = vunpack.c.h.b16 %v134
  %v209 = vunpack.c.l.b16 %v135
  %v210 = vunpack.c.h.b16 %v135
  %v211 = vunpack.c.l.b16 %v136
  %v212 = vunpack.c.h.b16 %v136
  %v213 = vunpack.c.l.b16 %v137
  %v214 = vunpack.c.h.b16 %v137
  %v215 = vunpack.c.l.b16 %v138
  %v216 = vunpack.c.h.b16 %v138
  %v217 = vunpack.c.l.b16 %v139
  %v218 = vunpack.c.h.b16 %v139
  %v219 = vunpack.c.l.b16 %v140
  %v220 = vunpack.c.h.b16 %v140
  %v221 = vunpack.c.l.b16 %v141
  %v222 = vunpack.c.h.b16 %v141
  %v223 = vunpack.c.l.b16 %v142
  %v224 = vunpack.c.h.b16 %v142
  %v225 = vunpack.c.l.b16 %v143
  %v226 = vunpack.c.h.b16 %v143
  %v227 = vunpack.c.l.b16 %v144
  %v228 = vunpack.c.h.b16 %v144
  %v229 = vunpack.c.l.b16 %v145
  %v230 = vunpack.c.h.b16 %v145
  %v231 = vunpack.c.l.b16 %v146
  %v232 = vunpack.c.h.b16 %v146
  %v233 = vunpack.c.l.b16 %v147
  %v234 = vunpack.c.h.b16 %v147
  %v235 = vunpack.c.l.b16 %v148
  %v236 = vunpack.c.h.b16 %v148
  %v237 = vunpack.c.l.b16 %v149
  %v238 = vunpack.c.h.b16 %v149
  %v239 = vunpack.c.l.b16 %v150
  %v240 = vunpack.c.h.b16 %v150
  %v241 = vunpack.c.l.b16 %v151
  %v242 = vunpack.c.h.b16 %v151
  %v243 = vunpack.c.l.b16 %v152
  %v244 = vunpack.c.h.b16 %v152
  %v245 = vunpack.c.l.b16 %v153
  %v246 = vunpack.c.h.b16 %v153
  %v247 = vunpack.c.l.b16 %v154
  %v248 = vunpack.c.h.b16 %v154
  %v249 = vunpack.c.l.b16 %v155
  %v250 = vunpack.c.h.b16 %v155
  %v251 = vunpack.c.l.b16 %v156
  %v252 = vunpack.c.h.b16 %v156
  %v253 = vpack.c.b16 %v191, %v189
  %v254 = vpack.c.b16 %v192, %v190
  %v255 = vpack.c.b16 %v195, %v193
  %v256 = vpack.c.b16 %v196, %v194
  %v257 = vpack.c.b16 %v199, %v197
  %v258 = vpack.c.b16 %v200, %v198
  %v259 = vpack.c.b16 %v203, %v201
  %v260 = vpack.c.b16 %v204, %v202
  %v261 = vpack.c.b16 %v207, %v205
  %v262 = vpack.c.b16 %v208, %v206
  %v263 = vpack.c.b16 %v211, %v209
  %v264 = vpack.c.b16 %v212, %v210
  %v265 = vpack.c.b16 %v215, %v213
  %v266 = vpack.c.b16 %v216, %v214
  %v267 = vpack.c.b16 %v219, %v217
  %v268 = vpack.c.b16 %v220, %v218
  %v269 = vpack.c.b16 %v223, %v221
  %v270 = vpack.c.b16 %v224, %v222
  %v271 = vpack.c.b16 %v227, %v225
  %v272 = vpack.c.b16 %v228, %v226
  %v273 = vpack.c.b16 %v231, %v229
  %v274 = vpack.c.b16 %v232, %v230
  %v275 = vpack.c.b16 %v235, %v233
  %v276 = vpack.c.b16 %v236, %v234
  %v277 = vpack.c.b16 %v239, %v237
  %v278 = vpack.c.b16 %v240, %v238
  %v279 = vpack.c.b16 %v243, %v241
  %v280 = vpack.c.b16 %v244, %v242
  %v281 = vpack.c.b16 %v247, %v245
  %v282 = vpack.c.b16 %v248, %v246
  %v283 = vpack.c.b16 %v251, %v249
  %v284 = vpack.c.b16 %v252, %v250
  %v349 = vunpack.c.l.b16 %v61
  %v350 = vunpack.c.l.b16 %v62
  %v351 = vunpack.c.l.b16 %v63
  %v352 = vunpack.c.l.b16 %v64
  %v353 = vunpack.c.l.b16 %v65
  %v354 = vunpack.c.l.b16 %v66
  %v355 = vunpack.c.l.b16 %v67
  %v356 = vunpack.c.l.b16 %v68
  %v357 = vunpack.c.l.b16 %v69
  %v358 = vunpack.c.l.b16 %v70
  %v359 = vunpack.c.l.b16 %v71
  %v360 = vunpack.c.l.b16 %v72
  %v361 = vunpack.c.l.b16 %v73
  %v362 = vunpack.c.l.b16 %v74
  %v363 = vunpack.c.l.b16 %v75
  %v364 = vunpack.c.l.b16 %v76
  %v365 = vunpack.c.l.b16 %v77
  %v366 = vunpack.c.l.b16 %v78
  %v367 = vunpack.c.l.b16 %v79
  %v368 = vunpack.c.l.b16 %v80
  %v369 = vunpack.c.l.b16 %v81
  %v370 = vunpack.c.l.b16 %v82
  %v371 = vunpack.c.l.b16 %v83
  %v372 = vunpack.c.l.b16 %v84
  %v373 = vunpack.c.l.b16 %v85
  %v374 = vunpack.c.l.b16 %v86
  %v375 = vunpack.c.l.b16 %v87
  %v376 = vunpack.c.l.b16 %v88
  %v377 = vunpack.c.l.b16 %v89
  %v378 = vunpack.c.l.b16 %v90
  %v379 = vunpack.c.l.b16 %v91
  %v380 = vunpack.c.l.b16 %v92
  %v381 = vpack.c.b16 %v350, %v349
  %v382 = vpack.c.b16 %v352, %v351
  %v383 = vpack.c.b16 %v354, %v353
  %v384 = vpack.c.b16 %v356, %v355
  %v385 = vpack.c.b16 %v358, %v357
  %v386 = vpack.c.b16 %v360, %v359
  %v387 = vpack.c.b16 %v362, %v361
  %v388 = vpack.c.b16 %v364, %v363
  %v389 = vpack.c.b16 %v366, %v365
  %v390 = vpack.c.b16 %v368, %v367
  %v391 = vpack.c.b16 %v370, %v369
  %v392 = vpack.c.b16 %v372, %v371
  %v393 = vpack.c.b16 %v374, %v373
  %v394 = vpack.c.b16 %v376, %v375
  %v395 = vpack.c.b16 %v378, %v377
  %v396 = vpack.c.b16 %v380, %v379
  %413 = vmatpush.bf16.msra.mxu0 %v388
  %414 = vmatpush.bf16.msra.mxu0 %v387
  %415 = vmatpush.bf16.msra.mxu0 %v386
  %416 = vmatpush.bf16.msra.mxu0 %v385
  %417 = vmatpush.bf16.msra.mxu0 %v384
  %418 = vmatpush.bf16.msra.mxu0 %v383
  %419 = vmatpush.bf16.msra.mxu0 %v382
  %420 = vmatpush.bf16.msra.mxu0 %v381
  %421 = vmatmul.bf16.gmra.mxu0 %v253
  %v422 = vpop.f32.mrf.mxu0
  %v423 = vadd.f32 0.0, %v422
  %v424 = vpop.f32.mrf.mxu0
  %v425 = vadd.f32 0.0, %v424
  %426 = vmatmul.bf16.gmra.mxu0 %v255
  %v427 = vpop.f32.mrf.mxu0
  %v428 = vadd.f32 0.0, %v427
  %v429 = vpop.f32.mrf.mxu0
  %v430 = vadd.f32 0.0, %v429
  %431 = vmatmul.bf16.gmra.mxu0 %v257
  %v432 = vpop.f32.mrf.mxu0
  %v433 = vadd.f32 0.0, %v432
  %v434 = vpop.f32.mrf.mxu0
  %v435 = vadd.f32 0.0, %v434
  %436 = vmatmul.bf16.gmra.mxu0 %v259
  %v437 = vpop.f32.mrf.mxu0
  %v438 = vadd.f32 0.0, %v437
  %v439 = vpop.f32.mrf.mxu0
  %v440 = vadd.f32 0.0, %v439
  %441 = vmatmul.bf16.gmra.mxu0 %v261
  %v442 = vpop.f32.mrf.mxu0
  %v443 = vadd.f32 0.0, %v442
  %v444 = vpop.f32.mrf.mxu0
  %v445 = vadd.f32 0.0, %v444
  %446 = vmatmul.bf16.gmra.mxu0 %v263
  %v447 = vpop.f32.mrf.mxu0
  %v448 = vadd.f32 0.0, %v447
  %v449 = vpop.f32.mrf.mxu0
  %v450 = vadd.f32 0.0, %v449
  %451 = vmatmul.bf16.gmra.mxu0 %v265
  %v452 = vpop.f32.mrf.mxu0
  %v453 = vadd.f32 0.0, %v452
  %v454 = vpop.f32.mrf.mxu0
  %v455 = vadd.f32 0.0, %v454
  %456 = vmatmul.bf16.gmra.mxu0 %v267
  %v457 = vpop.f32.mrf.mxu0
  %v458 = vadd.f32 0.0, %v457
  %v459 = vpop.f32.mrf.mxu0
  %v460 = vadd.f32 0.0, %v459
  %461 = vmatmul.bf16.gmra.mxu0 %v269
  %v462 = vpop.f32.mrf.mxu0
  %v463 = vadd.f32 0.0, %v462
  %v464 = vpop.f32.mrf.mxu0
  %v465 = vadd.f32 0.0, %v464
  %466 = vmatmul.bf16.gmra.mxu0 %v271
  %v467 = vpop.f32.mrf.mxu0
  %v468 = vadd.f32 0.0, %v467
  %v469 = vpop.f32.mrf.mxu0
  %v470 = vadd.f32 0.0, %v469
  %471 = vmatmul.bf16.gmra.mxu0 %v273
  %v472 = vpop.f32.mrf.mxu0
  %v473 = vadd.f32 0.0, %v472
  %v474 = vpop.f32.mrf.mxu0
  %v475 = vadd.f32 0.0, %v474
  %476 = vmatmul.bf16.gmra.mxu0 %v275
  %v477 = vpop.f32.mrf.mxu0
  %v478 = vadd.f32 0.0, %v477
  %v479 = vpop.f32.mrf.mxu0
  %v480 = vadd.f32 0.0, %v479
  %481 = vmatmul.bf16.gmra.mxu0 %v277
  %v482 = vpop.f32.mrf.mxu0
  %v483 = vadd.f32 0.0, %v482
  %v484 = vpop.f32.mrf.mxu0
  %v485 = vadd.f32 0.0, %v484
  %486 = vmatmul.bf16.gmra.mxu0 %v279
  %v487 = vpop.f32.mrf.mxu0
  %v488 = vadd.f32 0.0, %v487
  %v489 = vpop.f32.mrf.mxu0
  %v490 = vadd.f32 0.0, %v489
  %491 = vmatmul.bf16.gmra.mxu0 %v281
  %v492 = vpop.f32.mrf.mxu0
  %v493 = vadd.f32 0.0, %v492
  %v494 = vpop.f32.mrf.mxu0
  %v495 = vadd.f32 0.0, %v494
  %496 = vmatmul.bf16.gmra.mxu0 %v283
  %v497 = vpop.f32.mrf.mxu0
  %v498 = vadd.f32 0.0, %v497
  %v499 = vpop.f32.mrf.mxu0
  %v500 = vadd.f32 0.0, %v499
  %501 = vdwg.mxu0
  %502 = vmatpush.bf16.msra.mxu0 %v396
  %503 = vmatpush.bf16.msra.mxu0 %v395
  %504 = vmatpush.bf16.msra.mxu0 %v394
  %505 = vmatpush.bf16.msra.mxu0 %v393
  %506 = vmatpush.bf16.msra.mxu0 %v392
  %507 = vmatpush.bf16.msra.mxu0 %v391
  %508 = vmatpush.bf16.msra.mxu0 %v390
  %509 = vmatpush.bf16.msra.mxu0 %v389
  %510 = vmatmul.bf16.gmra.mxu0 %v254
  %v511 = vpop.f32.mrf.mxu0
  %v512 = vadd.f32 %v423, %v511
  %v513 = vpop.f32.mrf.mxu0
  %v514 = vadd.f32 %v425, %v513
  %515 = vmatmul.bf16.gmra.mxu0 %v256
  %v516 = vpop.f32.mrf.mxu0
  %v517 = vadd.f32 %v428, %v516
  %v518 = vpop.f32.mrf.mxu0
  %v519 = vadd.f32 %v430, %v518
  %520 = vmatmul.bf16.gmra.mxu0 %v258
  %v521 = vpop.f32.mrf.mxu0
  %v522 = vadd.f32 %v433, %v521
  %v523 = vpop.f32.mrf.mxu0
  %v524 = vadd.f32 %v435, %v523
  %525 = vmatmul.bf16.gmra.mxu0 %v260
  %v526 = vpop.f32.mrf.mxu0
  %v527 = vadd.f32 %v438, %v526
  %v528 = vpop.f32.mrf.mxu0
  %v529 = vadd.f32 %v440, %v528
  %530 = vmatmul.bf16.gmra.mxu0 %v262
  %v531 = vpop.f32.mrf.mxu0
  %v532 = vadd.f32 %v443, %v531
  %v533 = vpop.f32.mrf.mxu0
  %v534 = vadd.f32 %v445, %v533
  %535 = vmatmul.bf16.gmra.mxu0 %v264
  %v536 = vpop.f32.mrf.mxu0
  %v537 = vadd.f32 %v448, %v536
  %v538 = vpop.f32.mrf.mxu0
  %v539 = vadd.f32 %v450, %v538
  %540 = vmatmul.bf16.gmra.mxu0 %v266
  %v541 = vpop.f32.mrf.mxu0
  %v542 = vadd.f32 %v453, %v541
  %v543 = vpop.f32.mrf.mxu0
  %v544 = vadd.f32 %v455, %v543
  %545 = vmatmul.bf16.gmra.mxu0 %v268
  %v546 = vpop.f32.mrf.mxu0
  %v547 = vadd.f32 %v458, %v546
  %v548 = vpop.f32.mrf.mxu0
  %v549 = vadd.f32 %v460, %v548
  %550 = vmatmul.bf16.gmra.mxu0 %v270
  %v551 = vpop.f32.mrf.mxu0
  %v552 = vadd.f32 %v463, %v551
  %v553 = vpop.f32.mrf.mxu0
  %v554 = vadd.f32 %v465, %v553
  %555 = vmatmul.bf16.gmra.mxu0 %v272
  %v556 = vpop.f32.mrf.mxu0
  %v557 = vadd.f32 %v468, %v556
  %v558 = vpop.f32.mrf.mxu0
  %v559 = vadd.f32 %v470, %v558
  %560 = vmatmul.bf16.gmra.mxu0 %v274
  %v561 = vpop.f32.mrf.mxu0
  %v562 = vadd.f32 %v473, %v561
  %v563 = vpop.f32.mrf.mxu0
  %v564 = vadd.f32 %v475, %v563
  %565 = vmatmul.bf16.gmra.mxu0 %v276
  %v566 = vpop.f32.mrf.mxu0
  %v567 = vadd.f32 %v478, %v566
  %v568 = vpop.f32.mrf.mxu0
  %v569 = vadd.f32 %v480, %v568
  %570 = vmatmul.bf16.gmra.mxu0 %v278
  %v571 = vpop.f32.mrf.mxu0
  %v572 = vadd.f32 %v483, %v571
  %v573 = vpop.f32.mrf.mxu0
  %v574 = vadd.f32 %v485, %v573
  %575 = vmatmul.bf16.gmra.mxu0 %v280
  %v576 = vpop.f32.mrf.mxu0
  %v577 = vadd.f32 %v488, %v576
  %v578 = vpop.f32.mrf.mxu0
  %v579 = vadd.f32 %v490, %v578
  %580 = vmatmul.bf16.gmra.mxu0 %v282
  %v581 = vpop.f32.mrf.mxu0
  %v582 = vadd.f32 %v493, %v581
  %v583 = vpop.f32.mrf.mxu0
  %v584 = vadd.f32 %v495, %v583
  %585 = vmatmul.bf16.gmra.mxu0 %v284
  %v586 = vpop.f32.mrf.mxu0
  %v587 = vadd.f32 %v498, %v586
  %v588 = vpop.f32.mrf.mxu0
  %v589 = vadd.f32 %v500, %v588
  %590 = vdwg.mxu0
  %v591 = vadd.f32 %v93, %v512
  %v592 = vadd.f32 %v94, %v514
  %v593 = vadd.f32 %v95, %v517
  %v594 = vadd.f32 %v96, %v519
  %v595 = vadd.f32 %v97, %v522
  %v596 = vadd.f32 %v98, %v524
  %v597 = vadd.f32 %v99, %v527
  %v598 = vadd.f32 %v100, %v529
  %v599 = vadd.f32 %v101, %v532
  %v600 = vadd.f32 %v102, %v534
  %v601 = vadd.f32 %v103, %v537
  %v602 = vadd.f32 %v104, %v539
  %v603 = vadd.f32 %v105, %v542
  %v604 = vadd.f32 %v106, %v544
  %v605 = vadd.f32 %v107, %v547
  %v606 = vadd.f32 %v108, %v549
  %v607 = vadd.f32 %v109, %v552
  %v608 = vadd.f32 %v110, %v554
  %v609 = vadd.f32 %v111, %v557
  %v610 = vadd.f32 %v112, %v559
  %v611 = vadd.f32 %v113, %v562
  %v612 = vadd.f32 %v114, %v564
  %v613 = vadd.f32 %v115, %v567
  %v614 = vadd.f32 %v116, %v569
  %v615 = vadd.f32 %v117, %v572
  %v616 = vadd.f32 %v118, %v574
  %v617 = vadd.f32 %v119, %v577
  %v618 = vadd.f32 %v120, %v579
  %v619 = vadd.f32 %v121, %v582
  %v620 = vadd.f32 %v122, %v584
  %v621 = vadd.f32 %v123, %v587
  %v622 = vadd.f32 %v124, %v589
  %623 = vst [vmem:[#allocation2] sm:$0xff] %v591
  %624 = vst [vmem:[#allocation2 + $0x8] sm:$0xff] %v592
  %625 = vst [vmem:[#allocation2 + $0x10] sm:$0xff] %v593
  %626 = vst [vmem:[#allocation2 + $0x18] sm:$0xff] %v594
  %627 = vst [vmem:[#allocation2 + $0x20] sm:$0xff] %v595
  %628 = vst [vmem:[#allocation2 + $0x28] sm:$0xff] %v596
  %629 = vst [vmem:[#allocation2 + $0x30] sm:$0xff] %v597
  %630 = vst [vmem:[#allocation2 + $0x38] sm:$0xff] %v598
  %631 = vst [vmem:[#allocation2 + $0x40] sm:$0xff] %v599
  %632 = vst [vmem:[#allocation2 + $0x48] sm:$0xff] %v600
  %633 = vst [vmem:[#allocation2 + $0x50] sm:$0xff] %v601
  %634 = vst [vmem:[#allocation2 + $0x58] sm:$0xff] %v602
  %635 = vst [vmem:[#allocation2 + $0x60] sm:$0xff] %v603
  %636 = vst [vmem:[#allocation2 + $0x68] sm:$0xff] %v604
  %637 = vst [vmem:[#allocation2 + $0x70] sm:$0xff] %v605
  %638 = vst [vmem:[#allocation2 + $0x78] sm:$0xff] %v606
  %639 = vst [vmem:[#allocation2 + $0x80] sm:$0xff] %v607
  %640 = vst [vmem:[#allocation2 + $0x88] sm:$0xff] %v608
  %641 = vst [vmem:[#allocation2 + $0x90] sm:$0xff] %v609
  %642 = vst [vmem:[#allocation2 + $0x98] sm:$0xff] %v610
  %643 = vst [vmem:[#allocation2 + $0xa0] sm:$0xff] %v611
  %644 = vst [vmem:[#allocation2 + $0xa8] sm:$0xff] %v612
  %645 = vst [vmem:[#allocation2 + $0xb0] sm:$0xff] %v613
  %646 = vst [vmem:[#allocation2 + $0xb8] sm:$0xff] %v614
  %647 = vst [vmem:[#allocation2 + $0xc0] sm:$0xff] %v615
  %648 = vst [vmem:[#allocation2 + $0xc8] sm:$0xff] %v616
  %649 = vst [vmem:[#allocation2 + $0xd0] sm:$0xff] %v617
  %650 = vst [vmem:[#allocation2 + $0xd8] sm:$0xff] %v618
  %651 = vst [vmem:[#allocation2 + $0xe0] sm:$0xff] %v619
  %652 = vst [vmem:[#allocation2 + $0xe8] sm:$0xff] %v620
  %653 = vst [vmem:[#allocation2 + $0xf0] sm:$0xff] %v621
  %654 = vst [vmem:[#allocation2 + $0xf8] sm:$0xff] %v622
  // Predicated region
  $region26: #{appnp_2layer_with_gcn.15} parent=0 // pred_check
    %p655 = pneg %p20
  $region27: #{appnp_2layer_with_gcn.15} parent=0 // pred_check_branch
    %657 = sbr.rel (%p655) target = $region29
  $region28: #{appnp_2layer_with_gcn.15} parent=0 // pred_region
    %v658 = vld [vmem:[%s2] sm:$0xf]
    %v659 = vld [vmem:[%s2 + $0x4] sm:$0xf]
    %v660 = vld [vmem:[%s2 + $0x8] sm:$0xf]
    %v661 = vld [vmem:[%s2 + $0xc] sm:$0xf]
    %v662 = vld [vmem:[%s2 + $0x10] sm:$0xf]
    %v663 = vld [vmem:[%s2 + $0x14] sm:$0xf]
    %v664 = vld [vmem:[%s2 + $0x18] sm:$0xf]
    %v665 = vld [vmem:[%s2 + $0x1c] sm:$0xf]
    %v666 = vld [vmem:[%s2 + $0x20] sm:$0xf]
    %v667 = vld [vmem:[%s2 + $0x24] sm:$0xf]
    %v668 = vld [vmem:[%s2 + $0x28] sm:$0xf]
    %v669 = vld [vmem:[%s2 + $0x2c] sm:$0xf]
    %v670 = vld [vmem:[%s2 + $0x30] sm:$0xf]
    %v671 = vld [vmem:[%s2 + $0x34] sm:$0xf]
    %v672 = vld [vmem:[%s2 + $0x38] sm:$0xf]
    %v673 = vld [vmem:[%s2 + $0x3c] sm:$0xf]
    %v674 = vld [vmem:[%s2 + $0x40] sm:$0xf]
    %v675 = vld [vmem:[%s2 + $0x44] sm:$0xf]
    %v676 = vld [vmem:[%s2 + $0x48] sm:$0xf]
    %v677 = vld [vmem:[%s2 + $0x4c] sm:$0xf]
    %v678 = vld [vmem:[%s2 + $0x50] sm:$0xf]
    %v679 = vld [vmem:[%s2 + $0x54] sm:$0xf]
    %v680 = vld [vmem:[%s2 + $0x58] sm:$0xf]
    %v681 = vld [vmem:[%s2 + $0x5c] sm:$0xf]
    %v682 = vld [vmem:[%s2 + $0x60] sm:$0xf]
    %v683 = vld [vmem:[%s2 + $0x64] sm:$0xf]
    %v684 = vld [vmem:[%s2 + $0x68] sm:$0xf]
    %v685 = vld [vmem:[%s2 + $0x6c] sm:$0xf]
    %v686 = vld [vmem:[%s2 + $0x70] sm:$0xf]
    %v687 = vld [vmem:[%s2 + $0x74] sm:$0xf]
    %v688 = vld [vmem:[%s2 + $0x78] sm:$0xf]
    %v689 = vld [vmem:[%s2 + $0x7c] sm:$0xf]
    %v690 = vunpack.c.l.bf16 %v658
    %v691 = vunpack.c.l.bf16 %v659
    %v692 = vunpack.c.l.bf16 %v660
    %v693 = vunpack.c.l.bf16 %v661
    %v694 = vunpack.c.l.bf16 %v662
    %v695 = vunpack.c.l.bf16 %v663
    %v696 = vunpack.c.l.bf16 %v664
    %v697 = vunpack.c.l.bf16 %v665
    %v698 = vunpack.c.l.bf16 %v666
    %v699 = vunpack.c.l.bf16 %v667
    %v700 = vunpack.c.l.bf16 %v668
    %v701 = vunpack.c.l.bf16 %v669
    %v702 = vunpack.c.l.bf16 %v670
    %v703 = vunpack.c.l.bf16 %v671
    %v704 = vunpack.c.l.bf16 %v672
    %v705 = vunpack.c.l.bf16 %v673
    %v706 = vunpack.c.l.bf16 %v674
    %v707 = vunpack.c.l.bf16 %v675
    %v708 = vunpack.c.l.bf16 %v676
    %v709 = vunpack.c.l.bf16 %v677
    %v710 = vunpack.c.l.bf16 %v678
    %v711 = vunpack.c.l.bf16 %v679
    %v712 = vunpack.c.l.bf16 %v680
    %v713 = vunpack.c.l.bf16 %v681
    %v714 = vunpack.c.l.bf16 %v682
    %v715 = vunpack.c.l.bf16 %v683
    %v716 = vunpack.c.l.bf16 %v684
    %v717 = vunpack.c.l.bf16 %v685
    %v718 = vunpack.c.l.bf16 %v686
    %v719 = vunpack.c.l.bf16 %v687
    %v720 = vunpack.c.l.bf16 %v688
    %v721 = vunpack.c.l.bf16 %v689
    %v722 = vld [vmem:[#allocation2] sm:$0xff]
    %v723 = vld [vmem:[#allocation2 + $0x8] sm:$0xff]
    %v724 = vld [vmem:[#allocation2 + $0x10] sm:$0xff]
    %v725 = vld [vmem:[#allocation2 + $0x18] sm:$0xff]
    %v726 = vld [vmem:[#allocation2 + $0x20] sm:$0xff]
    %v727 = vld [vmem:[#allocation2 + $0x28] sm:$0xff]
    %v728 = vld [vmem:[#allocation2 + $0x30] sm:$0xff]
    %v729 = vld [vmem:[#allocation2 + $0x38] sm:$0xff]
    %v730 = vld [vmem:[#allocation2 + $0x40] sm:$0xff]
    %v731 = vld [vmem:[#allocation2 + $0x48] sm:$0xff]
    %v732 = vld [vmem:[#allocation2 + $0x50] sm:$0xff]
    %v733 = vld [vmem:[#allocation2 + $0x58] sm:$0xff]
    %v734 = vld [vmem:[#allocation2 + $0x60] sm:$0xff]
    %v735 = vld [vmem:[#allocation2 + $0x68] sm:$0xff]
    %v736 = vld [vmem:[#allocation2 + $0x70] sm:$0xff]
    %v737 = vld [vmem:[#allocation2 + $0x78] sm:$0xff]
    %v738 = vld [vmem:[#allocation2 + $0x80] sm:$0xff]
    %v739 = vld [vmem:[#allocation2 + $0x88] sm:$0xff]
    %v740 = vld [vmem:[#allocation2 + $0x90] sm:$0xff]
    %v741 = vld [vmem:[#allocation2 + $0x98] sm:$0xff]
    %v742 = vld [vmem:[#allocation2 + $0xa0] sm:$0xff]
    %v743 = vld [vmem:[#allocation2 + $0xa8] sm:$0xff]
    %v744 = vld [vmem:[#allocation2 + $0xb0] sm:$0xff]
    %v745 = vld [vmem:[#allocation2 + $0xb8] sm:$0xff]
    %v746 = vld [vmem:[#allocation2 + $0xc0] sm:$0xff]
    %v747 = vld [vmem:[#allocation2 + $0xc8] sm:$0xff]
    %v748 = vld [vmem:[#allocation2 + $0xd0] sm:$0xff]
    %v749 = vld [vmem:[#allocation2 + $0xd8] sm:$0xff]
    %v750 = vld [vmem:[#allocation2 + $0xe0] sm:$0xff]
    %v751 = vld [vmem:[#allocation2 + $0xe8] sm:$0xff]
    %v752 = vld [vmem:[#allocation2 + $0xf0] sm:$0xff]
    %v753 = vld [vmem:[#allocation2 + $0xf8] sm:$0xff]
    %v754 = vmul.f32 %v722, 0.9
    %v755 = vmul.f32 %v723, 0.9
    %v756 = vmul.f32 %v724, 0.9
    %v757 = vmul.f32 %v725, 0.9
    %v758 = vmul.f32 %v726, 0.9
    %v759 = vmul.f32 %v727, 0.9
    %v760 = vmul.f32 %v728, 0.9
    %v761 = vmul.f32 %v729, 0.9
    %v762 = vmul.f32 %v730, 0.9
    %v763 = vmul.f32 %v731, 0.9
    %v764 = vmul.f32 %v732, 0.9
    %v765 = vmul.f32 %v733, 0.9
    %v766 = vmul.f32 %v734, 0.9
    %v767 = vmul.f32 %v735, 0.9
    %v768 = vmul.f32 %v736, 0.9
    %v769 = vmul.f32 %v737, 0.9
    %v770 = vmul.f32 %v738, 0.9
    %v771 = vmul.f32 %v739, 0.9
    %v772 = vmul.f32 %v740, 0.9
    %v773 = vmul.f32 %v741, 0.9
    %v774 = vmul.f32 %v742, 0.9
    %v775 = vmul.f32 %v743, 0.9
    %v776 = vmul.f32 %v744, 0.9
    %v777 = vmul.f32 %v745, 0.9
    %v778 = vmul.f32 %v746, 0.9
    %v779 = vmul.f32 %v747, 0.9
    %v780 = vmul.f32 %v748, 0.9
    %v781 = vmul.f32 %v749, 0.9
    %v782 = vmul.f32 %v750, 0.9
    %v783 = vmul.f32 %v751, 0.9
    %v784 = vmul.f32 %v752, 0.9
    %v785 = vmul.f32 %v753, 0.9
    %v786 = vmul.f32 %v690, 0.1
    %v787 = vmul.f32 %v691, 0.1
    %v788 = vmul.f32 %v692, 0.1
    %v789 = vmul.f32 %v693, 0.1
    %v790 = vmul.f32 %v694, 0.1
    %v791 = vmul.f32 %v695, 0.1
    %v792 = vmul.f32 %v696, 0.1
    %v793 = vmul.f32 %v697, 0.1
    %v794 = vmul.f32 %v698, 0.1
    %v795 = vmul.f32 %v699, 0.1
    %v796 = vmul.f32 %v700, 0.1
    %v797 = vmul.f32 %v701, 0.1
    %v798 = vmul.f32 %v702, 0.1
    %v799 = vmul.f32 %v703, 0.1
    %v800 = vmul.f32 %v704, 0.1
    %v801 = vmul.f32 %v705, 0.1
    %v802 = vmul.f32 %v706, 0.1
    %v803 = vmul.f32 %v707, 0.1
    %v804 = vmul.f32 %v708, 0.1
    %v805 = vmul.f32 %v709, 0.1
    %v806 = vmul.f32 %v710, 0.1
    %v807 = vmul.f32 %v711, 0.1
    %v808 = vmul.f32 %v712, 0.1
    %v809 = vmul.f32 %v713, 0.1
    %v810 = vmul.f32 %v714, 0.1
    %v811 = vmul.f32 %v715, 0.1
    %v812 = vmul.f32 %v716, 0.1
    %v813 = vmul.f32 %v717, 0.1
    %v814 = vmul.f32 %v718, 0.1
    %v815 = vmul.f32 %v719, 0.1
    %v816 = vmul.f32 %v720, 0.1
    %v817 = vmul.f32 %v721, 0.1
    %v818 = vadd.f32 %v754, %v786
    %v819 = vadd.f32 %v755, %v787
    %v820 = vadd.f32 %v756, %v788
    %v821 = vadd.f32 %v757, %v789
    %v822 = vadd.f32 %v758, %v790
    %v823 = vadd.f32 %v759, %v791
    %v824 = vadd.f32 %v760, %v792
    %v825 = vadd.f32 %v761, %v793
    %v826 = vadd.f32 %v762, %v794
    %v827 = vadd.f32 %v763, %v795
    %v828 = vadd.f32 %v764, %v796
    %v829 = vadd.f32 %v765, %v797
    %v830 = vadd.f32 %v766, %v798
    %v831 = vadd.f32 %v767, %v799
    %v832 = vadd.f32 %v768, %v800
    %v833 = vadd.f32 %v769, %v801
    %v834 = vadd.f32 %v770, %v802
    %v835 = vadd.f32 %v771, %v803
    %v836 = vadd.f32 %v772, %v804
    %v837 = vadd.f32 %v773, %v805
    %v838 = vadd.f32 %v774, %v806
    %v839 = vadd.f32 %v775, %v807
    %v840 = vadd.f32 %v776, %v808
    %v841 = vadd.f32 %v777, %v809
    %v842 = vadd.f32 %v778, %v810
    %v843 = vadd.f32 %v779, %v811
    %v844 = vadd.f32 %v780, %v812
    %v845 = vadd.f32 %v781, %v813
    %v846 = vadd.f32 %v782, %v814
    %v847 = vadd.f32 %v783, %v815
    %v848 = vadd.f32 %v784, %v816
    %v849 = vadd.f32 %v785, %v817
    %v850 = vpack.c.bf16 %v819, %v818
    %v851 = vpack.c.bf16 %v821, %v820
    %v852 = vpack.c.bf16 %v823, %v822
    %v853 = vpack.c.bf16 %v825, %v824
    %v854 = vpack.c.bf16 %v827, %v826
    %v855 = vpack.c.bf16 %v829, %v828
    %v856 = vpack.c.bf16 %v831, %v830
    %v857 = vpack.c.bf16 %v833, %v832
    %v858 = vpack.c.bf16 %v835, %v834
    %v859 = vpack.c.bf16 %v837, %v836
    %v860 = vpack.c.bf16 %v839, %v838
    %v861 = vpack.c.bf16 %v841, %v840
    %v862 = vpack.c.bf16 %v843, %v842
    %v863 = vpack.c.bf16 %v845, %v844
    %v864 = vpack.c.bf16 %v847, %v846
    %v865 = vpack.c.bf16 %v849, %v848
    %v866 = vld [vmem:[%s3] sm:$0xf]
    %v867 = vld [vmem:[%s3 + $0x4] sm:$0xf]
    %v868 = vld [vmem:[%s3 + $0x8] sm:$0xf]
    %v869 = vld [vmem:[%s3 + $0xc] sm:$0xf]
    %v870 = vld [vmem:[%s3 + $0x10] sm:$0xf]
    %v871 = vld [vmem:[%s3 + $0x14] sm:$0xf]
    %v872 = vld [vmem:[%s3 + $0x18] sm:$0xf]
    %v873 = vld [vmem:[%s3 + $0x1c] sm:$0xf]
    %v874 = vld [vmem:[%s3 + $0x20] sm:$0xf]
    %v875 = vld [vmem:[%s3 + $0x24] sm:$0xf]
    %v876 = vld [vmem:[%s3 + $0x28] sm:$0xf]
    %v877 = vld [vmem:[%s3 + $0x2c] sm:$0xf]
    %v878 = vld [vmem:[%s3 + $0x30] sm:$0xf]
    %v879 = vld [vmem:[%s3 + $0x34] sm:$0xf]
    %v880 = vld [vmem:[%s3 + $0x38] sm:$0xf]
    %v881 = vld [vmem:[%s3 + $0x3c] sm:$0xf]
    %v882 = vld [vmem:[%s4] sm:$0x1]
    %v884 = vperm.slane %v882, 0
    %v902 = vunpack.c.l.b16 %v866
    %v903 = vunpack.c.l.b16 %v867
    %v904 = vunpack.c.l.b16 %v868
    %v905 = vunpack.c.l.b16 %v869
    %v906 = vunpack.c.l.b16 %v870
    %v907 = vunpack.c.l.b16 %v871
    %v908 = vunpack.c.l.b16 %v872
    %v909 = vunpack.c.l.b16 %v873
    %v910 = vunpack.c.l.b16 %v874
    %v911 = vunpack.c.l.b16 %v875
    %v912 = vunpack.c.l.b16 %v876
    %v913 = vunpack.c.l.b16 %v877
    %v914 = vunpack.c.l.b16 %v878
    %v915 = vunpack.c.l.b16 %v879
    %v916 = vunpack.c.l.b16 %v880
    %v917 = vunpack.c.l.b16 %v881
    %v918 = vpack.c.b16 %v903, %v902
    %v919 = vpack.c.b16 %v905, %v904
    %v920 = vpack.c.b16 %v907, %v906
    %v921 = vpack.c.b16 %v909, %v908
    %v922 = vpack.c.b16 %v911, %v910
    %v923 = vpack.c.b16 %v913, %v912
    %v924 = vpack.c.b16 %v915, %v914
    %v925 = vpack.c.b16 %v917, %v916
    %934 = vmatpush.bf16.msra.mxu0 %v925
    %935 = vmatpush.bf16.msra.mxu0 %v924
    %936 = vmatpush.bf16.msra.mxu0 %v923
    %937 = vmatpush.bf16.msra.mxu0 %v922
    %938 = vmatpush.bf16.msra.mxu0 %v921
    %939 = vmatpush.bf16.msra.mxu0 %v920
    %940 = vmatpush.bf16.msra.mxu0 %v919
    %941 = vmatpush.bf16.msra.mxu0 %v918
    %942 = vmatmul.bf16.gmra.mxu0 %v850
    %v943 = vpop.f32.mrf.mxu0
    %v944 = vadd.f32 %v884, %v943
    %v945 = vpop.f32.mrf.mxu0
    %v946 = vadd.f32 %v884, %v945
    %947 = vmatmul.bf16.gmra.mxu0 %v851
    %v948 = vpop.f32.mrf.mxu0
    %v949 = vadd.f32 %v884, %v948
    %v950 = vpop.f32.mrf.mxu0
    %v951 = vadd.f32 %v884, %v950
    %952 = vmatmul.bf16.gmra.mxu0 %v852
    %v953 = vpop.f32.mrf.mxu0
    %v954 = vadd.f32 %v884, %v953
    %v955 = vpop.f32.mrf.mxu0
    %v956 = vadd.f32 %v884, %v955
    %957 = vmatmul.bf16.gmra.mxu0 %v853
    %v958 = vpop.f32.mrf.mxu0
    %v959 = vadd.f32 %v884, %v958
    %v960 = vpop.f32.mrf.mxu0
    %v961 = vadd.f32 %v884, %v960
    %962 = vmatmul.bf16.gmra.mxu0 %v854
    %v963 = vpop.f32.mrf.mxu0
    %v964 = vadd.f32 %v884, %v963
    %v965 = vpop.f32.mrf.mxu0
    %v966 = vadd.f32 %v884, %v965
    %967 = vmatmul.bf16.gmra.mxu0 %v855
    %v968 = vpop.f32.mrf.mxu0
    %v969 = vadd.f32 %v884, %v968
    %v970 = vpop.f32.mrf.mxu0
    %v971 = vadd.f32 %v884, %v970
    %972 = vmatmul.bf16.gmra.mxu0 %v856
    %v973 = vpop.f32.mrf.mxu0
    %v974 = vadd.f32 %v884, %v973
    %v975 = vpop.f32.mrf.mxu0
    %v976 = vadd.f32 %v884, %v975
    %977 = vmatmul.bf16.gmra.mxu0 %v857
    %v978 = vpop.f32.mrf.mxu0
    %v979 = vadd.f32 %v884, %v978
    %v980 = vpop.f32.mrf.mxu0
    %v981 = vadd.f32 %v884, %v980
    %982 = vmatmul.bf16.gmra.mxu0 %v858
    %v983 = vpop.f32.mrf.mxu0
    %v984 = vadd.f32 %v884, %v983
    %v985 = vpop.f32.mrf.mxu0
    %v986 = vadd.f32 %v884, %v985
    %987 = vmatmul.bf16.gmra.mxu0 %v859
    %v988 = vpop.f32.mrf.mxu0
    %v989 = vadd.f32 %v884, %v988
    %v990 = vpop.f32.mrf.mxu0
    %v991 = vadd.f32 %v884, %v990
    %992 = vmatmul.bf16.gmra.mxu0 %v860
    %v993 = vpop.f32.mrf.mxu0
    %v994 = vadd.f32 %v884, %v993
    %v995 = vpop.f32.mrf.mxu0
    %v996 = vadd.f32 %v884, %v995
    %997 = vmatmul.bf16.gmra.mxu0 %v861
    %v998 = vpop.f32.mrf.mxu0
    %v999 = vadd.f32 %v884, %v998
    %v1000 = vpop.f32.mrf.mxu0
    %v1001 = vadd.f32 %v884, %v1000
    %1002 = vmatmul.bf16.gmra.mxu0 %v862
    %v1003 = vpop.f32.mrf.mxu0
    %v1004 = vadd.f32 %v884, %v1003
    %v1005 = vpop.f32.mrf.mxu0
    %v1006 = vadd.f32 %v884, %v1005
    %1007 = vmatmul.bf16.gmra.mxu0 %v863
    %v1008 = vpop.f32.mrf.mxu0
    %v1009 = vadd.f32 %v884, %v1008
    %v1010 = vpop.f32.mrf.mxu0
    %v1011 = vadd.f32 %v884, %v1010
    %1012 = vmatmul.bf16.gmra.mxu0 %v864
    %v1013 = vpop.f32.mrf.mxu0
    %v1014 = vadd.f32 %v884, %v1013
    %v1015 = vpop.f32.mrf.mxu0
    %v1016 = vadd.f32 %v884, %v1015
    %1017 = vmatmul.bf16.gmra.mxu0 %v865
    %v1018 = vpop.f32.mrf.mxu0
    %v1019 = vadd.f32 %v884, %v1018
    %v1020 = vpop.f32.mrf.mxu0
    %v1021 = vadd.f32 %v884, %v1020
    %1022 = vdwg.mxu0
    %1023 = vmax.xlane.f32.xlu0 %v944
    %v1024 = vpop.xlane.xlu0 %1023
    %1025 = vmax.xlane.f32.xlu0 %v946
    %v1026 = vpop.xlane.xlu0 %1025
    %1027 = vmax.xlane.f32.xlu0 %v949
    %v1028 = vpop.xlane.xlu0 %1027
    %1029 = vmax.xlane.f32.xlu0 %v951
    %v1030 = vpop.xlane.xlu0 %1029
    %1031 = vmax.xlane.f32.xlu0 %v954
    %v1032 = vpop.xlane.xlu0 %1031
    %1033 = vmax.xlane.f32.xlu0 %v956
    %v1034 = vpop.xlane.xlu0 %1033
    %1035 = vmax.xlane.f32.xlu0 %v959
    %v1036 = vpop.xlane.xlu0 %1035
    %1037 = vmax.xlane.f32.xlu0 %v961
    %v1038 = vpop.xlane.xlu0 %1037
    %1039 = vmax.xlane.f32.xlu0 %v964
    %v1040 = vpop.xlane.xlu0 %1039
    %1041 = vmax.xlane.f32.xlu0 %v966
    %v1042 = vpop.xlane.xlu0 %1041
    %1043 = vmax.xlane.f32.xlu0 %v969
    %v1044 = vpop.xlane.xlu0 %1043
    %1045 = vmax.xlane.f32.xlu0 %v971
    %v1046 = vpop.xlane.xlu0 %1045
    %1047 = vmax.xlane.f32.xlu0 %v974
    %v1048 = vpop.xlane.xlu0 %1047
    %1049 = vmax.xlane.f32.xlu0 %v976
    %v1050 = vpop.xlane.xlu0 %1049
    %1051 = vmax.xlane.f32.xlu0 %v979
    %v1052 = vpop.xlane.xlu0 %1051
    %1053 = vmax.xlane.f32.xlu0 %v981
    %v1054 = vpop.xlane.xlu0 %1053
    %1055 = vmax.xlane.f32.xlu0 %v984
    %v1056 = vpop.xlane.xlu0 %1055
    %1057 = vmax.xlane.f32.xlu0 %v986
    %v1058 = vpop.xlane.xlu0 %1057
    %1059 = vmax.xlane.f32.xlu0 %v989
    %v1060 = vpop.xlane.xlu0 %1059
    %1061 = vmax.xlane.f32.xlu0 %v991
    %v1062 = vpop.xlane.xlu0 %1061
    %1063 = vmax.xlane.f32.xlu0 %v994
    %v1064 = vpop.xlane.xlu0 %1063
    %1065 = vmax.xlane.f32.xlu0 %v996
    %v1066 = vpop.xlane.xlu0 %1065
    %1067 = vmax.xlane.f32.xlu0 %v999
    %v1068 = vpop.xlane.xlu0 %1067
    %1069 = vmax.xlane.f32.xlu0 %v1001
    %v1070 = vpop.xlane.xlu0 %1069
    %1071 = vmax.xlane.f32.xlu0 %v1004
    %v1072 = vpop.xlane.xlu0 %1071
    %1073 = vmax.xlane.f32.xlu0 %v1006
    %v1074 = vpop.xlane.xlu0 %1073
    %1075 = vmax.xlane.f32.xlu0 %v1009
    %v1076 = vpop.xlane.xlu0 %1075
    %1077 = vmax.xlane.f32.xlu0 %v1011
    %v1078 = vpop.xlane.xlu0 %1077
    %1079 = vmax.xlane.f32.xlu0 %v1014
    %v1080 = vpop.xlane.xlu0 %1079
    %1081 = vmax.xlane.f32.xlu0 %v1016
    %v1082 = vpop.xlane.xlu0 %1081
    %1083 = vmax.xlane.f32.xlu0 %v1019
    %v1084 = vpop.xlane.xlu0 %1083
    %1085 = vmax.xlane.f32.xlu0 %v1021
    %v1086 = vpop.xlane.xlu0 %1085
    %v1087 = vsub.f32 %v944, %v1024
    %v1088 = vsub.f32 %v946, %v1026
    %v1089 = vsub.f32 %v949, %v1028
    %v1090 = vsub.f32 %v951, %v1030
    %v1091 = vsub.f32 %v954, %v1032
    %v1092 = vsub.f32 %v956, %v1034
    %v1093 = vsub.f32 %v959, %v1036
    %v1094 = vsub.f32 %v961, %v1038
    %v1095 = vsub.f32 %v964, %v1040
    %v1096 = vsub.f32 %v966, %v1042
    %v1097 = vsub.f32 %v969, %v1044
    %v1098 = vsub.f32 %v971, %v1046
    %v1099 = vsub.f32 %v974, %v1048
    %v1100 = vsub.f32 %v976, %v1050
    %v1101 = vsub.f32 %v979, %v1052
    %v1102 = vsub.f32 %v981, %v1054
    %v1103 = vsub.f32 %v984, %v1056
    %v1104 = vsub.f32 %v986, %v1058
    %v1105 = vsub.f32 %v989, %v1060
    %v1106 = vsub.f32 %v991, %v1062
    %v1107 = vsub.f32 %v994, %v1064
    %v1108 = vsub.f32 %v996, %v1066
    %v1109 = vsub.f32 %v999, %v1068
    %v1110 = vsub.f32 %v1001, %v1070
    %v1111 = vsub.f32 %v1004, %v1072
    %v1112 = vsub.f32 %v1006, %v1074
    %v1113 = vsub.f32 %v1009, %v1076
    %v1114 = vsub.f32 %v1011, %v1078
    %v1115 = vsub.f32 %v1014, %v1080
    %v1116 = vsub.f32 %v1016, %v1082
    %v1117 = vsub.f32 %v1019, %v1084
    %v1118 = vsub.f32 %v1021, %v1086
    %v1119 = vmul.f32 %v1087, 1.442695
    %v1120 = vpow.pop %v1119
    %v1121 = vmul.f32 %v1088, 1.442695
    %v1122 = vpow.pop %v1121
    %v1123 = vmul.f32 %v1089, 1.442695
    %v1124 = vpow.pop %v1123
    %v1125 = vmul.f32 %v1090, 1.442695
    %v1126 = vpow.pop %v1125
    %v1127 = vmul.f32 %v1091, 1.442695
    %v1128 = vpow.pop %v1127
    %v1129 = vmul.f32 %v1092, 1.442695
    %v1130 = vpow.pop %v1129
    %v1131 = vmul.f32 %v1093, 1.442695
    %v1132 = vpow.pop %v1131
    %v1133 = vmul.f32 %v1094, 1.442695
    %v1134 = vpow.pop %v1133
    %v1135 = vmul.f32 %v1095, 1.442695
    %v1136 = vpow.pop %v1135
    %v1137 = vmul.f32 %v1096, 1.442695
    %v1138 = vpow.pop %v1137
    %v1139 = vmul.f32 %v1097, 1.442695
    %v1140 = vpow.pop %v1139
    %v1141 = vmul.f32 %v1098, 1.442695
    %v1142 = vpow.pop %v1141
    %v1143 = vmul.f32 %v1099, 1.442695
    %v1144 = vpow.pop %v1143
    %v1145 = vmul.f32 %v1100, 1.442695
    %v1146 = vpow.pop %v1145
    %v1147 = vmul.f32 %v1101, 1.442695
    %v1148 = vpow.pop %v1147
    %v1149 = vmul.f32 %v1102, 1.442695
    %v1150 = vpow.pop %v1149
    %v1151 = vmul.f32 %v1103, 1.442695
    %v1152 = vpow.pop %v1151
    %v1153 = vmul.f32 %v1104, 1.442695
    %v1154 = vpow.pop %v1153
    %v1155 = vmul.f32 %v1105, 1.442695
    %v1156 = vpow.pop %v1155
    %v1157 = vmul.f32 %v1106, 1.442695
    %v1158 = vpow.pop %v1157
    %v1159 = vmul.f32 %v1107, 1.442695
    %v1160 = vpow.pop %v1159
    %v1161 = vmul.f32 %v1108, 1.442695
    %v1162 = vpow.pop %v1161
    %v1163 = vmul.f32 %v1109, 1.442695
    %v1164 = vpow.pop %v1163
    %v1165 = vmul.f32 %v1110, 1.442695
    %v1166 = vpow.pop %v1165
    %v1167 = vmul.f32 %v1111, 1.442695
    %v1168 = vpow.pop %v1167
    %v1169 = vmul.f32 %v1112, 1.442695
    %v1170 = vpow.pop %v1169
    %v1171 = vmul.f32 %v1113, 1.442695
    %v1172 = vpow.pop %v1171
    %v1173 = vmul.f32 %v1114, 1.442695
    %v1174 = vpow.pop %v1173
    %v1175 = vmul.f32 %v1115, 1.442695
    %v1176 = vpow.pop %v1175
    %v1177 = vmul.f32 %v1116, 1.442695
    %v1178 = vpow.pop %v1177
    %v1179 = vmul.f32 %v1117, 1.442695
    %v1180 = vpow.pop %v1179
    %v1181 = vmul.f32 %v1118, 1.442695
    %v1182 = vpow.pop %v1181
    %1183 = vadd.xlane.f32.xlu0 %v1120
    %v1184 = vpop.xlane.xlu0 %1183
    %1185 = vadd.xlane.f32.xlu0 %v1122
    %v1186 = vpop.xlane.xlu0 %1185
    %1187 = vadd.xlane.f32.xlu0 %v1124
    %v1188 = vpop.xlane.xlu0 %1187
    %1189 = vadd.xlane.f32.xlu0 %v1126
    %v1190 = vpop.xlane.xlu0 %1189
    %1191 = vadd.xlane.f32.xlu0 %v1128
    %v1192 = vpop.xlane.xlu0 %1191
    %1193 = vadd.xlane.f32.xlu0 %v1130
    %v1194 = vpop.xlane.xlu0 %1193
    %1195 = vadd.xlane.f32.xlu0 %v1132
    %v1196 = vpop.xlane.xlu0 %1195
    %1197 = vadd.xlane.f32.xlu0 %v1134
    %v1198 = vpop.xlane.xlu0 %1197
    %1199 = vadd.xlane.f32.xlu0 %v1136
    %v1200 = vpop.xlane.xlu0 %1199
    %1201 = vadd.xlane.f32.xlu0 %v1138
    %v1202 = vpop.xlane.xlu0 %1201
    %1203 = vadd.xlane.f32.xlu0 %v1140
    %v1204 = vpop.xlane.xlu0 %1203
    %1205 = vadd.xlane.f32.xlu0 %v1142
    %v1206 = vpop.xlane.xlu0 %1205
    %1207 = vadd.xlane.f32.xlu0 %v1144
    %v1208 = vpop.xlane.xlu0 %1207
    %1209 = vadd.xlane.f32.xlu0 %v1146
    %v1210 = vpop.xlane.xlu0 %1209
    %1211 = vadd.xlane.f32.xlu0 %v1148
    %v1212 = vpop.xlane.xlu0 %1211
    %1213 = vadd.xlane.f32.xlu0 %v1150
    %v1214 = vpop.xlane.xlu0 %1213
    %1215 = vadd.xlane.f32.xlu0 %v1152
    %v1216 = vpop.xlane.xlu0 %1215
    %1217 = vadd.xlane.f32.xlu0 %v1154
    %v1218 = vpop.xlane.xlu0 %1217
    %1219 = vadd.xlane.f32.xlu0 %v1156
    %v1220 = vpop.xlane.xlu0 %1219
    %1221 = vadd.xlane.f32.xlu0 %v1158
    %v1222 = vpop.xlane.xlu0 %1221
    %1223 = vadd.xlane.f32.xlu0 %v1160
    %v1224 = vpop.xlane.xlu0 %1223
    %1225 = vadd.xlane.f32.xlu0 %v1162
    %v1226 = vpop.xlane.xlu0 %1225
    %1227 = vadd.xlane.f32.xlu0 %v1164
    %v1228 = vpop.xlane.xlu0 %1227
    %1229 = vadd.xlane.f32.xlu0 %v1166
    %v1230 = vpop.xlane.xlu0 %1229
    %1231 = vadd.xlane.f32.xlu0 %v1168
    %v1232 = vpop.xlane.xlu0 %1231
    %1233 = vadd.xlane.f32.xlu0 %v1170
    %v1234 = vpop.xlane.xlu0 %1233
    %1235 = vadd.xlane.f32.xlu0 %v1172
    %v1236 = vpop.xlane.xlu0 %1235
    %1237 = vadd.xlane.f32.xlu0 %v1174
    %v1238 = vpop.xlane.xlu0 %1237
    %1239 = vadd.xlane.f32.xlu0 %v1176
    %v1240 = vpop.xlane.xlu0 %1239
    %1241 = vadd.xlane.f32.xlu0 %v1178
    %v1242 = vpop.xlane.xlu0 %1241
    %1243 = vadd.xlane.f32.xlu0 %v1180
    %v1244 = vpop.xlane.xlu0 %1243
    %1245 = vadd.xlane.f32.xlu0 %v1182
    %v1246 = vpop.xlane.xlu0 %1245
    %v1247 = vlog2.pop %v1184
    %v1248 = vmul.f32 %v1247, 0.6931472
    %v1249 = vlog2.pop %v1186
    %v1250 = vmul.f32 %v1249, 0.6931472
    %v1251 = vlog2.pop %v1188
    %v1252 = vmul.f32 %v1251, 0.6931472
    %v1253 = vlog2.pop %v1190
    %v1254 = vmul.f32 %v1253, 0.6931472
    %v1255 = vlog2.pop %v1192
    %v1256 = vmul.f32 %v1255, 0.6931472
    %v1257 = vlog2.pop %v1194
    %v1258 = vmul.f32 %v1257, 0.6931472
    %v1259 = vlog2.pop %v1196
    %v1260 = vmul.f32 %v1259, 0.6931472
    %v1261 = vlog2.pop %v1198
    %v1262 = vmul.f32 %v1261, 0.6931472
    %v1263 = vlog2.pop %v1200
    %v1264 = vmul.f32 %v1263, 0.6931472
    %v1265 = vlog2.pop %v1202
    %v1266 = vmul.f32 %v1265, 0.6931472
    %v1267 = vlog2.pop %v1204
    %v1268 = vmul.f32 %v1267, 0.6931472
    %v1269 = vlog2.pop %v1206
    %v1270 = vmul.f32 %v1269, 0.6931472
    %v1271 = vlog2.pop %v1208
    %v1272 = vmul.f32 %v1271, 0.6931472
    %v1273 = vlog2.pop %v1210
    %v1274 = vmul.f32 %v1273, 0.6931472
    %v1275 = vlog2.pop %v1212
    %v1276 = vmul.f32 %v1275, 0.6931472
    %v1277 = vlog2.pop %v1214
    %v1278 = vmul.f32 %v1277, 0.6931472
    %v1279 = vlog2.pop %v1216
    %v1280 = vmul.f32 %v1279, 0.6931472
    %v1281 = vlog2.pop %v1218
    %v1282 = vmul.f32 %v1281, 0.6931472
    %v1283 = vlog2.pop %v1220
    %v1284 = vmul.f32 %v1283, 0.6931472
    %v1285 = vlog2.pop %v1222
    %v1286 = vmul.f32 %v1285, 0.6931472
    %v1287 = vlog2.pop %v1224
    %v1288 = vmul.f32 %v1287, 0.6931472
    %v1289 = vlog2.pop %v1226
    %v1290 = vmul.f32 %v1289, 0.6931472
    %v1291 = vlog2.pop %v1228
    %v1292 = vmul.f32 %v1291, 0.6931472
    %v1293 = vlog2.pop %v1230
    %v1294 = vmul.f32 %v1293, 0.6931472
    %v1295 = vlog2.pop %v1232
    %v1296 = vmul.f32 %v1295, 0.6931472
    %v1297 = vlog2.pop %v1234
    %v1298 = vmul.f32 %v1297, 0.6931472
    %v1299 = vlog2.pop %v1236
    %v1300 = vmul.f32 %v1299, 0.6931472
    %v1301 = vlog2.pop %v1238
    %v1302 = vmul.f32 %v1301, 0.6931472
    %v1303 = vlog2.pop %v1240
    %v1304 = vmul.f32 %v1303, 0.6931472
    %v1305 = vlog2.pop %v1242
    %v1306 = vmul.f32 %v1305, 0.6931472
    %v1307 = vlog2.pop %v1244
    %v1308 = vmul.f32 %v1307, 0.6931472
    %v1309 = vlog2.pop %v1246
    %v1310 = vmul.f32 %v1309, 0.6931472
    %v1311 = vsub.f32 %v1087, %v1248
    %v1312 = vsub.f32 %v1088, %v1250
    %v1313 = vsub.f32 %v1089, %v1252
    %v1314 = vsub.f32 %v1090, %v1254
    %v1315 = vsub.f32 %v1091, %v1256
    %v1316 = vsub.f32 %v1092, %v1258
    %v1317 = vsub.f32 %v1093, %v1260
    %v1318 = vsub.f32 %v1094, %v1262
    %v1319 = vsub.f32 %v1095, %v1264
    %v1320 = vsub.f32 %v1096, %v1266
    %v1321 = vsub.f32 %v1097, %v1268
    %v1322 = vsub.f32 %v1098, %v1270
    %v1323 = vsub.f32 %v1099, %v1272
    %v1324 = vsub.f32 %v1100, %v1274
    %v1325 = vsub.f32 %v1101, %v1276
    %v1326 = vsub.f32 %v1102, %v1278
    %v1327 = vsub.f32 %v1103, %v1280
    %v1328 = vsub.f32 %v1104, %v1282
    %v1329 = vsub.f32 %v1105, %v1284
    %v1330 = vsub.f32 %v1106, %v1286
    %v1331 = vsub.f32 %v1107, %v1288
    %v1332 = vsub.f32 %v1108, %v1290
    %v1333 = vsub.f32 %v1109, %v1292
    %v1334 = vsub.f32 %v1110, %v1294
    %v1335 = vsub.f32 %v1111, %v1296
    %v1336 = vsub.f32 %v1112, %v1298
    %v1337 = vsub.f32 %v1113, %v1300
    %v1338 = vsub.f32 %v1114, %v1302
    %v1339 = vsub.f32 %v1115, %v1304
    %v1340 = vsub.f32 %v1116, %v1306
    %v1341 = vsub.f32 %v1117, %v1308
    %v1342 = vsub.f32 %v1118, %v1310
    %1343 = vst [vmem:[%s5] sm:$0xff] %v1311
    %1344 = vst [vmem:[%s5 + $0x8] sm:$0xff] %v1312
    %1345 = vst [vmem:[%s5 + $0x10] sm:$0xff] %v1313
    %1346 = vst [vmem:[%s5 + $0x18] sm:$0xff] %v1314
    %1347 = vst [vmem:[%s5 + $0x20] sm:$0xff] %v1315
    %1348 = vst [vmem:[%s5 + $0x28] sm:$0xff] %v1316
    %1349 = vst [vmem:[%s5 + $0x30] sm:$0xff] %v1317
    %1350 = vst [vmem:[%s5 + $0x38] sm:$0xff] %v1318
    %1351 = vst [vmem:[%s5 + $0x40] sm:$0xff] %v1319
    %1352 = vst [vmem:[%s5 + $0x48] sm:$0xff] %v1320
    %1353 = vst [vmem:[%s5 + $0x50] sm:$0xff] %v1321
    %1354 = vst [vmem:[%s5 + $0x58] sm:$0xff] %v1322
    %1355 = vst [vmem:[%s5 + $0x60] sm:$0xff] %v1323
    %1356 = vst [vmem:[%s5 + $0x68] sm:$0xff] %v1324
    %1357 = vst [vmem:[%s5 + $0x70] sm:$0xff] %v1325
    %1358 = vst [vmem:[%s5 + $0x78] sm:$0xff] %v1326
    %1359 = vst [vmem:[%s5 + $0x80] sm:$0xff] %v1327
    %1360 = vst [vmem:[%s5 + $0x88] sm:$0xff] %v1328
    %1361 = vst [vmem:[%s5 + $0x90] sm:$0xff] %v1329
    %1362 = vst [vmem:[%s5 + $0x98] sm:$0xff] %v1330
    %1363 = vst [vmem:[%s5 + $0xa0] sm:$0xff] %v1331
    %1364 = vst [vmem:[%s5 + $0xa8] sm:$0xff] %v1332
    %1365 = vst [vmem:[%s5 + $0xb0] sm:$0xff] %v1333
    %1366 = vst [vmem:[%s5 + $0xb8] sm:$0xff] %v1334
    %1367 = vst [vmem:[%s5 + $0xc0] sm:$0xff] %v1335
    %1368 = vst [vmem:[%s5 + $0xc8] sm:$0xff] %v1336
    %1369 = vst [vmem:[%s5 + $0xd0] sm:$0xff] %v1337
    %1370 = vst [vmem:[%s5 + $0xd8] sm:$0xff] %v1338
    %1371 = vst [vmem:[%s5 + $0xe0] sm:$0xff] %v1339
    %1372 = vst [vmem:[%s5 + $0xe8] sm:$0xff] %v1340
    %1373 = vst [vmem:[%s5 + $0xf0] sm:$0xff] %v1341
    %1374 = vst [vmem:[%s5 + $0xf8] sm:$0xff] %v1342
  $region29: #{appnp_2layer_with_gcn.15} parent=0 // pred_fallthru
    _
  // Predicated region
  $region30: #{appnp_2layer_with_gcn.15} parent=0 // pred_check
    _
  $region31: #{appnp_2layer_with_gcn.15} parent=0 // pred_check_branch
    %1376 = sbr.rel (0) target = $region33
  $region32: #{appnp_2layer_with_gcn.15} parent=0 // pred_region
    _
  $region33: #{appnp_2layer_with_gcn.15} parent=0 // pred_fallthru
    _
  // Predicated region
  $region34: #{appnp_2layer_with_gcn.15} parent=0 // pred_check
    _
  $region35: #{appnp_2layer_with_gcn.15} parent=0 // pred_check_branch
    %1378 = sbr.rel (0) target = $region37
  $region36: #{appnp_2layer_with_gcn.15} parent=0 // pred_region
    _
  $region37: #{appnp_2layer_with_gcn.15} parent=0 // pred_fallthru
    _

</llo_original>
